<compile_context>
chip_gen: v7x
topology: tpu7x:2x2x1
jax: 0.10.0
libtpu: 0.0.40
codegen_flags: <defaults>
</compile_context>

<pallas_src>
import math
import jax
import jax.numpy as jnp
from jax.experimental import pallas as pl
from jax.experimental.pallas import tpu as pltpu

BN_EPS = 1e-5


def _simclr_kernel(x_ref, a_ref, p_ref, w_ref, wp_ref, bias_ref, y_ref):
    num_layers = w_ref.shape[1]
    hidden = w_ref.shape[2]
    emb = wp_ref.shape[3]
    num_graphs = p_ref.shape[0]

    A = a_ref[...]                                   # bf16 [N, N]  (= adjacency + I)
    P = p_ref[...]                                   # bf16 [G, N]  (one-hot pooling matrix)
    h_bf = x_ref[...].astype(jnp.bfloat16)           # bf16 [N, H]  (features zero-padded to H)
    inv_n = jnp.float32(1.0 / x_ref.shape[0])

    # Accumulator for the projection head's first Linear (replaces concat + matmul).
    proj_acc = jnp.zeros((num_graphs, emb), jnp.float32)

    for l in range(num_layers):                      # unrolled at trace time (L = 3)
        b1 = bias_ref[4 * l + 0:4 * l + 1, 0:hidden]
        b2 = bias_ref[4 * l + 1:4 * l + 2, 0:hidden]
        gamma = bias_ref[4 * l + 2:4 * l + 3, 0:hidden]
        beta = bias_ref[4 * l + 3:4 * l + 4, 0:hidden]

        # GINConv (eps = 0): MLP((A + I) @ h); self-loop already folded into A.
        agg = jnp.dot(A, h_bf, preferred_element_type=jnp.float32)
        t = jnp.dot(agg.astype(jnp.bfloat16), w_ref[0, l],
                    preferred_element_type=jnp.float32) + b1
        t = jnp.maximum(t, 0.0)
        t = jnp.dot(t.astype(jnp.bfloat16), w_ref[1, l],
                    preferred_element_type=jnp.float32) + b2

        # encoder: x = relu(conv(x)); x = bn(x)   (train-mode batch stats, biased var)
        t = jnp.maximum(t, 0.0)
        s = jnp.sum(t, axis=0, keepdims=True)              # single pass over t
        sq = jnp.sum(t * t, axis=0, keepdims=True)
        mean = s * inv_n
        var = jnp.maximum(sq * inv_n - mean * mean, 0.0)    # clamp f32 rounding
        scale = jax.lax.rsqrt(var + BN_EPS) * gamma         # folded BN: t*scale + shift
        shift = beta - mean * scale
        t = t * scale + shift

        # One bf16 cast, reused for pooling and the next layer's aggregation.
        t_bf = t.astype(jnp.bfloat16)

        # global_add_pool, then this layer's slice of proj-head Linear #1.
        pooled = jnp.dot(P, t_bf, preferred_element_type=jnp.float32)          # [G, H]
        proj_acc = proj_acc + jnp.dot(pooled.astype(jnp.bfloat16), wp_ref[0, l],
                                      preferred_element_type=jnp.float32)
        h_bf = t_bf

    # proj_head: Linear -> ReLU -> Linear (Linear #1 already accumulated above).
    bp1 = bias_ref[4 * num_layers + 0:4 * num_layers + 1, :]
    bp2 = bias_ref[4 * num_layers + 1:4 * num_layers + 2, :]
    zz = jnp.maximum(proj_acc + bp1, 0.0)
    zz_bf = zz.astype(jnp.bfloat16)
    y = bp2
    for l in range(num_layers):                      # zz @ wp2 via 128-aligned lane slices
        y = y + jnp.dot(zz_bf[:, l * hidden:(l + 1) * hidden], wp_ref[1, l],
                        preferred_element_type=jnp.float32)
    y_ref[...] = y


def simclr_forward(x, a_hat, pool_mat, params):
    """x: [B, N, F] f32, a_hat: [B, N, N] bf16 (A + I), pool_mat: [B, G, N] bf16."""
    w_all, wp_all, bias_slab = params
    num_batches, num_nodes, _ = x.shape
    num_layers, hidden = w_all.shape[1], w_all.shape[2]
    emb = wp_all.shape[3]
    num_graphs = pool_mat.shape[1]

    # Zero-pad node features up to `hidden` so the layer-0 weight stacks with
    # the other layers ([L, H, H]); padded feature columns contribute nothing.
    if x.shape[2] < hidden:
        x = jnp.pad(x, ((0, 0), (0, 0), (0, hidden - x.shape[2])))

    # Cost estimate (per minibatch, times B) so XLA can schedule around this call.
    flops_mb = num_layers * (2 * num_nodes * num_nodes * hidden          # A @ h
                             + 2 * 2 * num_nodes * hidden * hidden       # GIN MLP
                             + 2 * num_graphs * num_nodes * hidden       # P @ t
                             + 2 * num_graphs * hidden * emb)            # proj Linear #1
    flops_mb += 2 * num_graphs * emb * emb                               # proj Linear #2
    bytes_mb = (4 * num_nodes * hidden + 2 * num_nodes * num_nodes
                + 2 * num_graphs * num_nodes + 4 * num_graphs * emb)
    bytes_w = w_all.size * 2 + wp_all.size * 2 + bias_slab.size * 4
    cost = pl.CostEstimate(flops=flops_mb * num_batches,
                           transcendentals=num_layers * hidden * num_batches,
                           bytes_accessed=bytes_mb * num_batches + bytes_w)

    return pl.pallas_call(
        _simclr_kernel,
        out_shape=jax.ShapeDtypeStruct((num_batches, num_graphs, emb), jnp.float32),
        grid=(num_batches,),
        in_specs=[
            pl.BlockSpec((None, num_nodes, hidden), lambda b: (b, 0, 0)),       # x
            pl.BlockSpec((None, num_nodes, num_nodes), lambda b: (b, 0, 0)),    # A + I
            pl.BlockSpec((None, num_graphs, num_nodes), lambda b: (b, 0, 0)),   # P
            pl.BlockSpec((2, num_layers, hidden, hidden),                        # GIN weights
                         lambda b: (0, 0, 0, 0)),
            pl.BlockSpec((2, num_layers, hidden, emb),                           # proj weights
                         lambda b: (0, 0, 0, 0)),
            pl.BlockSpec((4 * num_layers + 2, emb), lambda b: (0, 0)),           # biases / BN
        ],
        out_specs=pl.BlockSpec((None, num_graphs, emb), lambda b: (b, 0, 0)),
        compiler_params=pltpu.CompilerParams(dimension_semantics=("parallel",)),
        cost_estimate=cost,
    )(x, a_hat, pool_mat, w_all, wp_all, bias_slab)


# ---------------- parameter construction (deterministic, xavier-uniform) -----

def xavier_uniform(key, fan_in, fan_out):
    bound = math.sqrt(6.0 / (fan_in + fan_out))
    return jax.random.uniform(key, (fan_in, fan_out), jnp.float32, -bound, bound)


def make_params(key, num_features, hidden, num_layers):
    """Packed parameters:
       w_all  [2, L, H, H]   bf16  (GIN MLP Linear #1 / #2 weights per layer)
       wp_all [2, L, H, EMB] bf16  (proj Linear #1 / #2 split into per-layer H-slices)
       bias   [4L+2, EMB]    f32   (rows 4l..4l+3 = b1,b2,gamma,beta in cols 0:H;
                                    rows 4L, 4L+1 = proj-head biases)."""
    emb = hidden * num_layers
    keys = jax.random.split(key, 2 * num_layers + 2)
    ki = 0
    w1_stack, w2_stack = [], []
    for layer in range(num_layers):
        in_dim = num_features if layer == 0 else hidden
        w1 = xavier_uniform(keys[ki], in_dim, hidden); ki += 1
        if in_dim < hidden:                      # zero rows for padded features
            w1 = jnp.pad(w1, ((0, hidden - in_dim), (0, 0)))
        w1_stack.append(w1)
        w2_stack.append(xavier_uniform(keys[ki], hidden, hidden)); ki += 1
    wp1 = xavier_uniform(keys[ki], emb, emb); ki += 1
    wp2 = xavier_uniform(keys[ki], emb, emb); ki += 1

    w_all = jnp.stack([jnp.stack(w1_stack), jnp.stack(w2_stack)]).astype(jnp.bfloat16)
    wp_all = jnp.stack([wp1.reshape(num_layers, hidden, emb),
                        wp2.reshape(num_layers, hidden, emb)]).astype(jnp.bfloat16)

    bias_slab = jnp.zeros((4 * num_layers + 2, emb), jnp.float32)
    for layer in range(num_layers):              # b1 = b2 = beta = 0, gamma = 1
        bias_slab = bias_slab.at[4 * layer + 2, :hidden].set(1.0)
    # rows 4L / 4L+1 (proj-head biases) stay 0, matching init_emb().
    return w_all, wp_all, bias_slab


# ---------------- main --------------------------------------------------------

if __name__ == "__main__":
    NUM_BATCHES = 4       # independent minibatches per pallas_call (grid axis)
    NUM_NODES = 256       # nodes per batched minibatch graph
    NUM_FEATURES = 4      # dataset.num_features
    HIDDEN = 128          # hidden_dim (lane-dense); embedding_dim = 384
    NUM_GC_LAYERS = 3     # num_gc_layers
    NUM_GRAPHS = 8        # graphs per minibatch (8-aligned sublanes)

    key = jax.random.PRNGKey(0)
    k_x, k_e, k_p = jax.random.split(key, 3)

    # node features for all minibatches
    x = jax.random.normal(k_x, (NUM_BATCHES, NUM_NODES, NUM_FEATURES), jnp.float32)

    # deterministic random undirected graphs -> dense adjacency (sum aggregation),
    # no self-loops; then fold the GIN "+ h" self term into A as (A + I).
    n_edges = 512
    eye = jnp.eye(NUM_NODES, dtype=jnp.float32)
    a_list = []
    for b in range(NUM_BATCHES):
        kb = jax.random.fold_in(k_e, b)
        src = jax.random.randint(kb, (n_edges,), 0, NUM_NODES)
        dst = jax.random.randint(jax.random.fold_in(kb, 1), (n_edges,), 0, NUM_NODES)
        A = jnp.zeros((NUM_NODES, NUM_NODES), jnp.float32)
        A = A.at[dst, src].set(1.0)
        A = A.at[src, dst].set(1.0)
        A = A * (1.0 - eye)
        a_list.append(A + eye)
    A_hat = jnp.stack(a_list).astype(jnp.bfloat16)          # [B, N, N]

    # contiguous equal-size graph assignment; one-hot pooling matrix [G, N],
    # identical structure for every minibatch here.
    batch = jnp.repeat(jnp.arange(NUM_GRAPHS, dtype=jnp.int32),
                       NUM_NODES // NUM_GRAPHS)
    P = jax.nn.one_hot(batch, NUM_GRAPHS, dtype=jnp.float32).T
    P = jnp.broadcast_to(P, (NUM_BATCHES, NUM_GRAPHS, NUM_NODES)).astype(jnp.bfloat16)

    params = make_params(k_p, NUM_FEATURES, HIDDEN, NUM_GC_LAYERS)

    y = simclr_forward(x, A_hat, P, params)
    y = jax.block_until_ready(y)
    assert y.shape == (NUM_BATCHES, NUM_GRAPHS, HIDDEN * NUM_GC_LAYERS)
    assert bool(jnp.all(jnp.isfinite(y)))
    print("KERNEL_OK")
</pallas_src>

<mosaic_0001>
module attributes {stable_mosaic.version = 11 : i64} {
  func.func @_simclr_kernel(%arg0: i32, %arg1: memref<1x256x128xf32, #tpu.memory_space<vmem>>, %arg2: memref<1x256x256xbf16, #tpu.memory_space<vmem>>, %arg3: memref<1x8x256xbf16, #tpu.memory_space<vmem>>, %arg4: memref<2x3x128x128xbf16, #tpu.memory_space<vmem>>, %arg5: memref<2x3x128x384xbf16, #tpu.memory_space<vmem>>, %arg6: memref<14x384xf32, #tpu.memory_space<vmem>>, %arg7: memref<1x8x384xf32, #tpu.memory_space<vmem>>) attributes {dimension_semantics = [#tpu.dimension_semantics<parallel>], iteration_bounds = array<i64: 4>, scalar_prefetch = 0 : i64, scratch_operands = 0 : i64, tpu.core_type = #tpu.core_type<tc>, window_params = [{transform_indices = @transform_0, window_bounds = array<i64: 1, 256, 128>}, {transform_indices = @transform_1, window_bounds = array<i64: 1, 256, 256>}, {transform_indices = @transform_2, window_bounds = array<i64: 1, 8, 256>}, {pipeline_mode = #tpu.pipeline_mode<synchronous>, transform_indices = @transform_3, window_bounds = array<i64: 2, 3, 128, 128>}, {pipeline_mode = #tpu.pipeline_mode<synchronous>, transform_indices = @transform_4, window_bounds = array<i64: 2, 3, 128, 384>}, {pipeline_mode = #tpu.pipeline_mode<synchronous>, transform_indices = @transform_5, window_bounds = array<i64: 14, 384>}, {transform_indices = @transform_6, window_bounds = array<i64: 1, 8, 384>}]} {
    %c0 = arith.constant 0 : index
    %c0_0 = arith.constant 0 : index
    %c0_1 = arith.constant 0 : index
    %0 = vector.load %arg2[%c0, %c0_0, %c0_1] : memref<1x256x256xbf16, #tpu.memory_space<vmem>>, vector<1x256x256xbf16>
    %1 = vector.shape_cast %0 : vector<1x256x256xbf16> to vector<256x256xbf16>
    %c0_2 = arith.constant 0 : index
    %c0_3 = arith.constant 0 : index
    %c0_4 = arith.constant 0 : index
    %2 = vector.load %arg3[%c0_2, %c0_3, %c0_4] : memref<1x8x256xbf16, #tpu.memory_space<vmem>>, vector<1x8x256xbf16>
    %3 = vector.shape_cast %2 : vector<1x8x256xbf16> to vector<8x256xbf16>
    %c0_5 = arith.constant 0 : index
    %c0_6 = arith.constant 0 : index
    %c0_7 = arith.constant 0 : index
    %4 = vector.load %arg1[%c0_5, %c0_6, %c0_7] : memref<1x256x128xf32, #tpu.memory_space<vmem>>, vector<1x256x128xf32>
    %5 = vector.shape_cast %4 : vector<1x256x128xf32> to vector<256x128xf32>
    %6 = arith.truncf %5 : vector<256x128xf32> to vector<256x128xbf16>
    %cst = arith.constant 0.000000e+00 : f32
    %7 = vector.broadcast %cst : f32 to vector<8x384xf32>
    %c0_8 = arith.constant 0 : index
    %c0_9 = arith.constant 0 : index
    %8 = vector.load %arg6[%c0_8, %c0_9] : memref<14x384xf32, #tpu.memory_space<vmem>>, vector<1x128xf32>
    %c1 = arith.constant 1 : index
    %c0_10 = arith.constant 0 : index
    %9 = vector.load %arg6[%c1, %c0_10] : memref<14x384xf32, #tpu.memory_space<vmem>>, vector<1x128xf32>
    %c2 = arith.constant 2 : index
    %c0_11 = arith.constant 0 : index
    %10 = vector.load %arg6[%c2, %c0_11] : memref<14x384xf32, #tpu.memory_space<vmem>>, vector<1x128xf32>
    %c3 = arith.constant 3 : index
    %c0_12 = arith.constant 0 : index
    %11 = vector.load %arg6[%c3, %c0_12] : memref<14x384xf32, #tpu.memory_space<vmem>>, vector<1x128xf32>
    %cst_13 = arith.constant dense<0.000000e+00> : vector<256x128xf32>
    %12 = tpu.matmul %1, %6, %cst_13 {dimension_numbers = #tpu.dot_dimension_numbers<[1], [0], [0], [1], [0, 0, 1, 1], [], []>} : vector<256x256xbf16>, vector<256x128xbf16>, vector<256x128xf32> -> vector<256x128xf32>
    %13 = arith.truncf %12 : vector<256x128xf32> to vector<256x128xbf16>
    %c0_14 = arith.constant 0 : index
    %c0_15 = arith.constant 0 : index
    %c0_16 = arith.constant 0 : index
    %c0_17 = arith.constant 0 : index
    %14 = vector.load %arg4[%c0_14, %c0_15, %c0_16, %c0_17] : memref<2x3x128x128xbf16, #tpu.memory_space<vmem>>, vector<1x1x128x128xbf16>
    %15 = vector.shape_cast %14 : vector<1x1x128x128xbf16> to vector<128x128xbf16>
    %cst_18 = arith.constant dense<0.000000e+00> : vector<256x128xf32>
    %16 = tpu.matmul %13, %15, %cst_18 {dimension_numbers = #tpu.dot_dimension_numbers<[1], [0], [0], [1], [0, 0, 1, 1], [], []>} : vector<256x128xbf16>, vector<128x128xbf16>, vector<256x128xf32> -> vector<256x128xf32>
    %17 = vector.broadcast %8 : vector<1x128xf32> to vector<256x128xf32>
    %18 = arith.addf %16, %17 : vector<256x128xf32>
    %cst_19 = arith.constant 0.000000e+00 : f32
    %19 = vector.broadcast %cst_19 : f32 to vector<256x128xf32>
    %20 = arith.maximumf %18, %19 : vector<256x128xf32>
    %21 = arith.truncf %20 : vector<256x128xf32> to vector<256x128xbf16>
    %c1_20 = arith.constant 1 : index
    %c0_21 = arith.constant 0 : index
    %c0_22 = arith.constant 0 : index
    %c0_23 = arith.constant 0 : index
    %22 = vector.load %arg4[%c1_20, %c0_21, %c0_22, %c0_23] : memref<2x3x128x128xbf16, #tpu.memory_space<vmem>>, vector<1x1x128x128xbf16>
    %23 = vector.shape_cast %22 : vector<1x1x128x128xbf16> to vector<128x128xbf16>
    %cst_24 = arith.constant dense<0.000000e+00> : vector<256x128xf32>
    %24 = tpu.matmul %21, %23, %cst_24 {dimension_numbers = #tpu.dot_dimension_numbers<[1], [0], [0], [1], [0, 0, 1, 1], [], []>} : vector<256x128xbf16>, vector<128x128xbf16>, vector<256x128xf32> -> vector<256x128xf32>
    %25 = vector.broadcast %9 : vector<1x128xf32> to vector<256x128xf32>
    %26 = arith.addf %24, %25 : vector<256x128xf32>
    %cst_25 = arith.constant 0.000000e+00 : f32
    %27 = vector.broadcast %cst_25 : f32 to vector<256x128xf32>
    %28 = arith.maximumf %26, %27 : vector<256x128xf32>
    %cst_26 = arith.constant dense<0.000000e+00> : vector<128xf32>
    %29 = vector.multi_reduction <add>, %28, %cst_26 [0] : vector<256x128xf32> to vector<128xf32>
    %30 = vector.shape_cast %29 : vector<128xf32> to vector<1x128xf32>
    %31 = arith.mulf %28, %28 : vector<256x128xf32>
    %cst_27 = arith.constant dense<0.000000e+00> : vector<128xf32>
    %32 = vector.multi_reduction <add>, %31, %cst_27 [0] : vector<256x128xf32> to vector<128xf32>
    %33 = vector.shape_cast %32 : vector<128xf32> to vector<1x128xf32>
    %cst_28 = arith.constant 3.906250e-03 : f32
    %34 = vector.broadcast %cst_28 : f32 to vector<1x128xf32>
    %35 = arith.mulf %30, %34 : vector<1x128xf32>
    %cst_29 = arith.constant 3.906250e-03 : f32
    %36 = vector.broadcast %cst_29 : f32 to vector<1x128xf32>
    %37 = arith.mulf %33, %36 : vector<1x128xf32>
    %38 = arith.mulf %35, %35 : vector<1x128xf32>
    %39 = arith.subf %37, %38 : vector<1x128xf32>
    %cst_30 = arith.constant 0.000000e+00 : f32
    %40 = vector.broadcast %cst_30 : f32 to vector<1x128xf32>
    %41 = arith.maximumf %39, %40 : vector<1x128xf32>
    %cst_31 = arith.constant 9.99999974E-6 : f32
    %42 = vector.broadcast %cst_31 : f32 to vector<1x128xf32>
    %43 = arith.addf %41, %42 : vector<1x128xf32>
    %44 = math.rsqrt %43 : vector<1x128xf32>
    %45 = arith.mulf %44, %10 : vector<1x128xf32>
    %46 = arith.mulf %35, %45 : vector<1x128xf32>
    %47 = arith.subf %11, %46 : vector<1x128xf32>
    %48 = vector.broadcast %45 : vector<1x128xf32> to vector<256x128xf32>
    %49 = arith.mulf %28, %48 : vector<256x128xf32>
    %50 = vector.broadcast %47 : vector<1x128xf32> to vector<256x128xf32>
    %51 = arith.addf %49, %50 : vector<256x128xf32>
    %52 = arith.truncf %51 : vector<256x128xf32> to vector<256x128xbf16>
    %cst_32 = arith.constant dense<0.000000e+00> : vector<8x128xf32>
    %53 = tpu.matmul %3, %52, %cst_32 {dimension_numbers = #tpu.dot_dimension_numbers<[1], [0], [0], [1], [0, 0, 1, 1], [], []>} : vector<8x256xbf16>, vector<256x128xbf16>, vector<8x128xf32> -> vector<8x128xf32>
    %54 = arith.truncf %53 : vector<8x128xf32> to vector<8x128xbf16>
    %c0_33 = arith.constant 0 : index
    %c0_34 = arith.constant 0 : index
    %c0_35 = arith.constant 0 : index
    %c0_36 = arith.constant 0 : index
    %55 = vector.load %arg5[%c0_33, %c0_34, %c0_35, %c0_36] : memref<2x3x128x384xbf16, #tpu.memory_space<vmem>>, vector<1x1x128x384xbf16>
    %56 = vector.shape_cast %55 : vector<1x1x128x384xbf16> to vector<128x384xbf16>
    %cst_37 = arith.constant dense<0.000000e+00> : vector<8x384xf32>
    %57 = tpu.matmul %54, %56, %cst_37 {dimension_numbers = #tpu.dot_dimension_numbers<[1], [0], [0], [1], [0, 0, 1, 1], [], []>} : vector<8x128xbf16>, vector<128x384xbf16>, vector<8x384xf32> -> vector<8x384xf32>
    %58 = arith.addf %7, %57 : vector<8x384xf32>
    %c4 = arith.constant 4 : index
    %c0_38 = arith.constant 0 : index
    %59 = vector.load %arg6[%c4, %c0_38] : memref<14x384xf32, #tpu.memory_space<vmem>>, vector<1x128xf32>
    %c5 = arith.constant 5 : index
    %c0_39 = arith.constant 0 : index
    %60 = vector.load %arg6[%c5, %c0_39] : memref<14x384xf32, #tpu.memory_space<vmem>>, vector<1x128xf32>
    %c6 = arith.constant 6 : index
    %c0_40 = arith.constant 0 : index
    %61 = vector.load %arg6[%c6, %c0_40] : memref<14x384xf32, #tpu.memory_space<vmem>>, vector<1x128xf32>
    %c7 = arith.constant 7 : index
    %c0_41 = arith.constant 0 : index
    %62 = vector.load %arg6[%c7, %c0_41] : memref<14x384xf32, #tpu.memory_space<vmem>>, vector<1x128xf32>
    %cst_42 = arith.constant dense<0.000000e+00> : vector<256x128xf32>
    %63 = tpu.matmul %1, %52, %cst_42 {dimension_numbers = #tpu.dot_dimension_numbers<[1], [0], [0], [1], [0, 0, 1, 1], [], []>} : vector<256x256xbf16>, vector<256x128xbf16>, vector<256x128xf32> -> vector<256x128xf32>
    %64 = arith.truncf %63 : vector<256x128xf32> to vector<256x128xbf16>
    %c0_43 = arith.constant 0 : index
    %c1_44 = arith.constant 1 : index
    %c0_45 = arith.constant 0 : index
    %c0_46 = arith.constant 0 : index
    %65 = vector.load %arg4[%c0_43, %c1_44, %c0_45, %c0_46] : memref<2x3x128x128xbf16, #tpu.memory_space<vmem>>, vector<1x1x128x128xbf16>
    %66 = vector.shape_cast %65 : vector<1x1x128x128xbf16> to vector<128x128xbf16>
    %cst_47 = arith.constant dense<0.000000e+00> : vector<256x128xf32>
    %67 = tpu.matmul %64, %66, %cst_47 {dimension_numbers = #tpu.dot_dimension_numbers<[1], [0], [0], [1], [0, 0, 1, 1], [], []>} : vector<256x128xbf16>, vector<128x128xbf16>, vector<256x128xf32> -> vector<256x128xf32>
    %68 = vector.broadcast %59 : vector<1x128xf32> to vector<256x128xf32>
    %69 = arith.addf %67, %68 : vector<256x128xf32>
    %cst_48 = arith.constant 0.000000e+00 : f32
    %70 = vector.broadcast %cst_48 : f32 to vector<256x128xf32>
    %71 = arith.maximumf %69, %70 : vector<256x128xf32>
    %72 = arith.truncf %71 : vector<256x128xf32> to vector<256x128xbf16>
    %c1_49 = arith.constant 1 : index
    %c1_50 = arith.constant 1 : index
    %c0_51 = arith.constant 0 : index
    %c0_52 = arith.constant 0 : index
    %73 = vector.load %arg4[%c1_49, %c1_50, %c0_51, %c0_52] : memref<2x3x128x128xbf16, #tpu.memory_space<vmem>>, vector<1x1x128x128xbf16>
    %74 = vector.shape_cast %73 : vector<1x1x128x128xbf16> to vector<128x128xbf16>
    %cst_53 = arith.constant dense<0.000000e+00> : vector<256x128xf32>
    %75 = tpu.matmul %72, %74, %cst_53 {dimension_numbers = #tpu.dot_dimension_numbers<[1], [0], [0], [1], [0, 0, 1, 1], [], []>} : vector<256x128xbf16>, vector<128x128xbf16>, vector<256x128xf32> -> vector<256x128xf32>
    %76 = vector.broadcast %60 : vector<1x128xf32> to vector<256x128xf32>
    %77 = arith.addf %75, %76 : vector<256x128xf32>
    %cst_54 = arith.constant 0.000000e+00 : f32
    %78 = vector.broadcast %cst_54 : f32 to vector<256x128xf32>
    %79 = arith.maximumf %77, %78 : vector<256x128xf32>
    %cst_55 = arith.constant dense<0.000000e+00> : vector<128xf32>
    %80 = vector.multi_reduction <add>, %79, %cst_55 [0] : vector<256x128xf32> to vector<128xf32>
    %81 = vector.shape_cast %80 : vector<128xf32> to vector<1x128xf32>
    %82 = arith.mulf %79, %79 : vector<256x128xf32>
    %cst_56 = arith.constant dense<0.000000e+00> : vector<128xf32>
    %83 = vector.multi_reduction <add>, %82, %cst_56 [0] : vector<256x128xf32> to vector<128xf32>
    %84 = vector.shape_cast %83 : vector<128xf32> to vector<1x128xf32>
    %cst_57 = arith.constant 3.906250e-03 : f32
    %85 = vector.broadcast %cst_57 : f32 to vector<1x128xf32>
    %86 = arith.mulf %81, %85 : vector<1x128xf32>
    %cst_58 = arith.constant 3.906250e-03 : f32
    %87 = vector.broadcast %cst_58 : f32 to vector<1x128xf32>
    %88 = arith.mulf %84, %87 : vector<1x128xf32>
    %89 = arith.mulf %86, %86 : vector<1x128xf32>
    %90 = arith.subf %88, %89 : vector<1x128xf32>
    %cst_59 = arith.constant 0.000000e+00 : f32
    %91 = vector.broadcast %cst_59 : f32 to vector<1x128xf32>
    %92 = arith.maximumf %90, %91 : vector<1x128xf32>
    %cst_60 = arith.constant 9.99999974E-6 : f32
    %93 = vector.broadcast %cst_60 : f32 to vector<1x128xf32>
    %94 = arith.addf %92, %93 : vector<1x128xf32>
    %95 = math.rsqrt %94 : vector<1x128xf32>
    %96 = arith.mulf %95, %61 : vector<1x128xf32>
    %97 = arith.mulf %86, %96 : vector<1x128xf32>
    %98 = arith.subf %62, %97 : vector<1x128xf32>
    %99 = vector.broadcast %96 : vector<1x128xf32> to vector<256x128xf32>
    %100 = arith.mulf %79, %99 : vector<256x128xf32>
    %101 = vector.broadcast %98 : vector<1x128xf32> to vector<256x128xf32>
    %102 = arith.addf %100, %101 : vector<256x128xf32>
    %103 = arith.truncf %102 : vector<256x128xf32> to vector<256x128xbf16>
    %cst_61 = arith.constant dense<0.000000e+00> : vector<8x128xf32>
    %104 = tpu.matmul %3, %103, %cst_61 {dimension_numbers = #tpu.dot_dimension_numbers<[1], [0], [0], [1], [0, 0, 1, 1], [], []>} : vector<8x256xbf16>, vector<256x128xbf16>, vector<8x128xf32> -> vector<8x128xf32>
    %105 = arith.truncf %104 : vector<8x128xf32> to vector<8x128xbf16>
    %c0_62 = arith.constant 0 : index
    %c1_63 = arith.constant 1 : index
    %c0_64 = arith.constant 0 : index
    %c0_65 = arith.constant 0 : index
    %106 = vector.load %arg5[%c0_62, %c1_63, %c0_64, %c0_65] : memref<2x3x128x384xbf16, #tpu.memory_space<vmem>>, vector<1x1x128x384xbf16>
    %107 = vector.shape_cast %106 : vector<1x1x128x384xbf16> to vector<128x384xbf16>
    %cst_66 = arith.constant dense<0.000000e+00> : vector<8x384xf32>
    %108 = tpu.matmul %105, %107, %cst_66 {dimension_numbers = #tpu.dot_dimension_numbers<[1], [0], [0], [1], [0, 0, 1, 1], [], []>} : vector<8x128xbf16>, vector<128x384xbf16>, vector<8x384xf32> -> vector<8x384xf32>
    %109 = arith.addf %58, %108 : vector<8x384xf32>
    %c8 = arith.constant 8 : index
    %c0_67 = arith.constant 0 : index
    %110 = vector.load %arg6[%c8, %c0_67] : memref<14x384xf32, #tpu.memory_space<vmem>>, vector<1x128xf32>
    %c9 = arith.constant 9 : index
    %c0_68 = arith.constant 0 : index
    %111 = vector.load %arg6[%c9, %c0_68] : memref<14x384xf32, #tpu.memory_space<vmem>>, vector<1x128xf32>
    %c10 = arith.constant 10 : index
    %c0_69 = arith.constant 0 : index
    %112 = vector.load %arg6[%c10, %c0_69] : memref<14x384xf32, #tpu.memory_space<vmem>>, vector<1x128xf32>
    %c11 = arith.constant 11 : index
    %c0_70 = arith.constant 0 : index
    %113 = vector.load %arg6[%c11, %c0_70] : memref<14x384xf32, #tpu.memory_space<vmem>>, vector<1x128xf32>
    %cst_71 = arith.constant dense<0.000000e+00> : vector<256x128xf32>
    %114 = tpu.matmul %1, %103, %cst_71 {dimension_numbers = #tpu.dot_dimension_numbers<[1], [0], [0], [1], [0, 0, 1, 1], [], []>} : vector<256x256xbf16>, vector<256x128xbf16>, vector<256x128xf32> -> vector<256x128xf32>
    %115 = arith.truncf %114 : vector<256x128xf32> to vector<256x128xbf16>
    %c0_72 = arith.constant 0 : index
    %c2_73 = arith.constant 2 : index
    %c0_74 = arith.constant 0 : index
    %c0_75 = arith.constant 0 : index
    %116 = vector.load %arg4[%c0_72, %c2_73, %c0_74, %c0_75] : memref<2x3x128x128xbf16, #tpu.memory_space<vmem>>, vector<1x1x128x128xbf16>
    %117 = vector.shape_cast %116 : vector<1x1x128x128xbf16> to vector<128x128xbf16>
    %cst_76 = arith.constant dense<0.000000e+00> : vector<256x128xf32>
    %118 = tpu.matmul %115, %117, %cst_76 {dimension_numbers = #tpu.dot_dimension_numbers<[1], [0], [0], [1], [0, 0, 1, 1], [], []>} : vector<256x128xbf16>, vector<128x128xbf16>, vector<256x128xf32> -> vector<256x128xf32>
    %119 = vector.broadcast %110 : vector<1x128xf32> to vector<256x128xf32>
    %120 = arith.addf %118, %119 : vector<256x128xf32>
    %cst_77 = arith.constant 0.000000e+00 : f32
    %121 = vector.broadcast %cst_77 : f32 to vector<256x128xf32>
    %122 = arith.maximumf %120, %121 : vector<256x128xf32>
    %123 = arith.truncf %122 : vector<256x128xf32> to vector<256x128xbf16>
    %c1_78 = arith.constant 1 : index
    %c2_79 = arith.constant 2 : index
    %c0_80 = arith.constant 0 : index
    %c0_81 = arith.constant 0 : index
    %124 = vector.load %arg4[%c1_78, %c2_79, %c0_80, %c0_81] : memref<2x3x128x128xbf16, #tpu.memory_space<vmem>>, vector<1x1x128x128xbf16>
    %125 = vector.shape_cast %124 : vector<1x1x128x128xbf16> to vector<128x128xbf16>
    %cst_82 = arith.constant dense<0.000000e+00> : vector<256x128xf32>
    %126 = tpu.matmul %123, %125, %cst_82 {dimension_numbers = #tpu.dot_dimension_numbers<[1], [0], [0], [1], [0, 0, 1, 1], [], []>} : vector<256x128xbf16>, vector<128x128xbf16>, vector<256x128xf32> -> vector<256x128xf32>
    %127 = vector.broadcast %111 : vector<1x128xf32> to vector<256x128xf32>
    %128 = arith.addf %126, %127 : vector<256x128xf32>
    %cst_83 = arith.constant 0.000000e+00 : f32
    %129 = vector.broadcast %cst_83 : f32 to vector<256x128xf32>
    %130 = arith.maximumf %128, %129 : vector<256x128xf32>
    %cst_84 = arith.constant dense<0.000000e+00> : vector<128xf32>
    %131 = vector.multi_reduction <add>, %130, %cst_84 [0] : vector<256x128xf32> to vector<128xf32>
    %132 = vector.shape_cast %131 : vector<128xf32> to vector<1x128xf32>
    %133 = arith.mulf %130, %130 : vector<256x128xf32>
    %cst_85 = arith.constant dense<0.000000e+00> : vector<128xf32>
    %134 = vector.multi_reduction <add>, %133, %cst_85 [0] : vector<256x128xf32> to vector<128xf32>
    %135 = vector.shape_cast %134 : vector<128xf32> to vector<1x128xf32>
    %cst_86 = arith.constant 3.906250e-03 : f32
    %136 = vector.broadcast %cst_86 : f32 to vector<1x128xf32>
    %137 = arith.mulf %132, %136 : vector<1x128xf32>
    %cst_87 = arith.constant 3.906250e-03 : f32
    %138 = vector.broadcast %cst_87 : f32 to vector<1x128xf32>
    %139 = arith.mulf %135, %138 : vector<1x128xf32>
    %140 = arith.mulf %137, %137 : vector<1x128xf32>
    %141 = arith.subf %139, %140 : vector<1x128xf32>
    %cst_88 = arith.constant 0.000000e+00 : f32
    %142 = vector.broadcast %cst_88 : f32 to vector<1x128xf32>
    %143 = arith.maximumf %141, %142 : vector<1x128xf32>
    %cst_89 = arith.constant 9.99999974E-6 : f32
    %144 = vector.broadcast %cst_89 : f32 to vector<1x128xf32>
    %145 = arith.addf %143, %144 : vector<1x128xf32>
    %146 = math.rsqrt %145 : vector<1x128xf32>
    %147 = arith.mulf %146, %112 : vector<1x128xf32>
    %148 = arith.mulf %137, %147 : vector<1x128xf32>
    %149 = arith.subf %113, %148 : vector<1x128xf32>
    %150 = vector.broadcast %147 : vector<1x128xf32> to vector<256x128xf32>
    %151 = arith.mulf %130, %150 : vector<256x128xf32>
    %152 = vector.broadcast %149 : vector<1x128xf32> to vector<256x128xf32>
    %153 = arith.addf %151, %152 : vector<256x128xf32>
    %154 = arith.truncf %153 : vector<256x128xf32> to vector<256x128xbf16>
    %cst_90 = arith.constant dense<0.000000e+00> : vector<8x128xf32>
    %155 = tpu.matmul %3, %154, %cst_90 {dimension_numbers = #tpu.dot_dimension_numbers<[1], [0], [0], [1], [0, 0, 1, 1], [], []>} : vector<8x256xbf16>, vector<256x128xbf16>, vector<8x128xf32> -> vector<8x128xf32>
    %156 = arith.truncf %155 : vector<8x128xf32> to vector<8x128xbf16>
    %c0_91 = arith.constant 0 : index
    %c2_92 = arith.constant 2 : index
    %c0_93 = arith.constant 0 : index
    %c0_94 = arith.constant 0 : index
    %157 = vector.load %arg5[%c0_91, %c2_92, %c0_93, %c0_94] : memref<2x3x128x384xbf16, #tpu.memory_space<vmem>>, vector<1x1x128x384xbf16>
    %158 = vector.shape_cast %157 : vector<1x1x128x384xbf16> to vector<128x384xbf16>
    %cst_95 = arith.constant dense<0.000000e+00> : vector<8x384xf32>
    %159 = tpu.matmul %156, %158, %cst_95 {dimension_numbers = #tpu.dot_dimension_numbers<[1], [0], [0], [1], [0, 0, 1, 1], [], []>} : vector<8x128xbf16>, vector<128x384xbf16>, vector<8x384xf32> -> vector<8x384xf32>
    %160 = arith.addf %109, %159 : vector<8x384xf32>
    %c12 = arith.constant 12 : index
    %c0_96 = arith.constant 0 : index
    %161 = vector.load %arg6[%c12, %c0_96] : memref<14x384xf32, #tpu.memory_space<vmem>>, vector<1x384xf32>
    %c13 = arith.constant 13 : index
    %c0_97 = arith.constant 0 : index
    %162 = vector.load %arg6[%c13, %c0_97] : memref<14x384xf32, #tpu.memory_space<vmem>>, vector<1x384xf32>
    %163 = vector.broadcast %161 : vector<1x384xf32> to vector<8x384xf32>
    %164 = arith.addf %160, %163 : vector<8x384xf32>
    %cst_98 = arith.constant 0.000000e+00 : f32
    %165 = vector.broadcast %cst_98 : f32 to vector<8x384xf32>
    %166 = arith.maximumf %164, %165 : vector<8x384xf32>
    %167 = arith.truncf %166 : vector<8x384xf32> to vector<8x384xbf16>
    %168 = vector.extract_strided_slice %167 {offsets = [0, 0], sizes = [8, 128], strides = [1, 1]} : vector<8x384xbf16> to vector<8x128xbf16>
    %c1_99 = arith.constant 1 : index
    %c0_100 = arith.constant 0 : index
    %c0_101 = arith.constant 0 : index
    %c0_102 = arith.constant 0 : index
    %169 = vector.load %arg5[%c1_99, %c0_100, %c0_101, %c0_102] : memref<2x3x128x384xbf16, #tpu.memory_space<vmem>>, vector<1x1x128x384xbf16>
    %170 = vector.shape_cast %169 : vector<1x1x128x384xbf16> to vector<128x384xbf16>
    %cst_103 = arith.constant dense<0.000000e+00> : vector<8x384xf32>
    %171 = tpu.matmul %168, %170, %cst_103 {dimension_numbers = #tpu.dot_dimension_numbers<[1], [0], [0], [1], [0, 0, 1, 1], [], []>} : vector<8x128xbf16>, vector<128x384xbf16>, vector<8x384xf32> -> vector<8x384xf32>
    %172 = vector.broadcast %162 : vector<1x384xf32> to vector<8x384xf32>
    %173 = arith.addf %172, %171 : vector<8x384xf32>
    %174 = vector.extract_strided_slice %167 {offsets = [0, 128], sizes = [8, 128], strides = [1, 1]} : vector<8x384xbf16> to vector<8x128xbf16>
    %c1_104 = arith.constant 1 : index
    %c1_105 = arith.constant 1 : index
    %c0_106 = arith.constant 0 : index
    %c0_107 = arith.constant 0 : index
    %175 = vector.load %arg5[%c1_104, %c1_105, %c0_106, %c0_107] : memref<2x3x128x384xbf16, #tpu.memory_space<vmem>>, vector<1x1x128x384xbf16>
    %176 = vector.shape_cast %175 : vector<1x1x128x384xbf16> to vector<128x384xbf16>
    %cst_108 = arith.constant dense<0.000000e+00> : vector<8x384xf32>
    %177 = tpu.matmul %174, %176, %cst_108 {dimension_numbers = #tpu.dot_dimension_numbers<[1], [0], [0], [1], [0, 0, 1, 1], [], []>} : vector<8x128xbf16>, vector<128x384xbf16>, vector<8x384xf32> -> vector<8x384xf32>
    %178 = arith.addf %173, %177 : vector<8x384xf32>
    %179 = vector.extract_strided_slice %167 {offsets = [0, 256], sizes = [8, 128], strides = [1, 1]} : vector<8x384xbf16> to vector<8x128xbf16>
    %c1_109 = arith.constant 1 : index
    %c2_110 = arith.constant 2 : index
    %c0_111 = arith.constant 0 : index
    %c0_112 = arith.constant 0 : index
    %180 = vector.load %arg5[%c1_109, %c2_110, %c0_111, %c0_112] : memref<2x3x128x384xbf16, #tpu.memory_space<vmem>>, vector<1x1x128x384xbf16>
    %181 = vector.shape_cast %180 : vector<1x1x128x384xbf16> to vector<128x384xbf16>
    %cst_113 = arith.constant dense<0.000000e+00> : vector<8x384xf32>
    %182 = tpu.matmul %179, %181, %cst_113 {dimension_numbers = #tpu.dot_dimension_numbers<[1], [0], [0], [1], [0, 0, 1, 1], [], []>} : vector<8x128xbf16>, vector<128x384xbf16>, vector<8x384xf32> -> vector<8x384xf32>
    %183 = arith.addf %178, %182 : vector<8x384xf32>
    %c0_114 = arith.constant 0 : index
    %c0_115 = arith.constant 0 : index
    %c0_116 = arith.constant 0 : index
    %184 = vector.load %arg7[%c0_114, %c0_115, %c0_116] : memref<1x8x384xf32, #tpu.memory_space<vmem>>, vector<1x8x384xf32>
    %185 = vector.shape_cast %184 : vector<1x8x384xf32> to vector<8x384xf32>
    %186 = vector.shape_cast %183 : vector<8x384xf32> to vector<1x8x384xf32>
    tpu.vector_store %arg7[%c0_114, %c0_115, %c0_116], %186 {strides = array<i32>} : memref<1x8x384xf32, #tpu.memory_space<vmem>>, vector<1x8x384xf32>,
    return
  }
  func.func @transform_0(%arg0: i32) -> (i32, i32, i32) {
    %c0_i32 = arith.constant 0 : i32
    %c0_i32_0 = arith.constant 0 : i32
    %c0_i32_1 = arith.constant 0 : i32
    return %arg0, %c0_i32, %c0_i32_0 : i32, i32, i32
  }
  func.func @transform_1(%arg0: i32) -> (i32, i32, i32) {
    %c0_i32 = arith.constant 0 : i32
    %c0_i32_0 = arith.constant 0 : i32
    %c0_i32_1 = arith.constant 0 : i32
    return %arg0, %c0_i32, %c0_i32_0 : i32, i32, i32
  }
  func.func @transform_2(%arg0: i32) -> (i32, i32, i32) {
    %c0_i32 = arith.constant 0 : i32
    %c0_i32_0 = arith.constant 0 : i32
    %c0_i32_1 = arith.constant 0 : i32
    return %arg0, %c0_i32, %c0_i32_0 : i32, i32, i32
  }
  func.func @transform_3(%arg0: i32) -> (i32, i32, i32, i32) {
    %c0_i32 = arith.constant 0 : i32
    %c0_i32_0 = arith.constant 0 : i32
    %c0_i32_1 = arith.constant 0 : i32
    %c0_i32_2 = arith.constant 0 : i32
    %c0_i32_3 = arith.constant 0 : i32
    return %c0_i32, %c0_i32_0, %c0_i32_1, %c0_i32_2 : i32, i32, i32, i32
  }
  func.func @transform_4(%arg0: i32) -> (i32, i32, i32, i32) {
    %c0_i32 = arith.constant 0 : i32
    %c0_i32_0 = arith.constant 0 : i32
    %c0_i32_1 = arith.constant 0 : i32
    %c0_i32_2 = arith.constant 0 : i32
    %c0_i32_3 = arith.constant 0 : i32
    return %c0_i32, %c0_i32_0, %c0_i32_1, %c0_i32_2 : i32, i32, i32, i32
  }
  func.func @transform_5(%arg0: i32) -> (i32, i32) {
    %c0_i32 = arith.constant 0 : i32
    %c0_i32_0 = arith.constant 0 : i32
    %c0_i32_1 = arith.constant 0 : i32
    return %c0_i32, %c0_i32_0 : i32, i32
  }
  func.func @transform_6(%arg0: i32) -> (i32, i32, i32) {
    %c0_i32 = arith.constant 0 : i32
    %c0_i32_0 = arith.constant 0 : i32
    %c0_i32_1 = arith.constant 0 : i32
    return %arg0, %c0_i32, %c0_i32_0 : i32, i32, i32
  }
}

</mosaic_0001>

<llo_original>
// kernel: tpu_custom_call.1
$region0: #{tpu_custom_call.1}
  #allocation0 [shape = 'u32[]', space=smem, size = 0x4, offset = 0x4, fixed_abs, tag = 'smem constant byte address 0x4 - core index']
  #allocation1 [shape = 'u32[144,128]{1,0:T(1,128)}', space=vmem, size = 0x12000, scoped, tag = 'internal scratch']
  %s0 = inlined_call_operand.hbm [shape: f32[4,256,128], index: 0, kind: input, shape index: {}]
  %s1 = inlined_call_operand.hbm [shape: bf16[4,256,256], index: 1, kind: input, shape index: {}]
  %s2 = inlined_call_operand.hbm [shape: bf16[4,8,256], index: 2, kind: input, shape index: {}]
  %s3 = inlined_call_operand.hbm [shape: bf16[2,3,128,128], index: 3, kind: input, shape index: {}]
  %s4 = inlined_call_operand.hbm [shape: bf16[2,3,128,384], index: 4, kind: input, shape index: {}]
  %s5 = inlined_call_operand.hbm [shape: f32[14,384], index: 5, kind: input, shape index: {}]
  %s6 = inlined_call_operand.hbm [shape: f32[4,8,384], index: 6, kind: output, shape index: {}]
  %s7 = sld [smem:[#allocation0]]
  $region81: #{tpu_custom_call.1} parent=0
    _
  %s9 = ssub.s32 1, %s7
  %s10 = scalar_select 0, %s9, %s7
  $region1: #{tpu_custom_call.1} parent=0
    #allocation2 [shape = 'u8[262144]{0}', space=vmem, size = 0x40000, scoped, tag = 'input window, operand 0']
    #allocation3 [shape = 's32[2]{0}', space=sflag, size = 0x8, scoped, tag = 'scoped memory for tpu_custom_call.1']
    #allocation4 [shape = 's32[2]{0}', space=sflag, size = 0x8, scoped, tag = 'scoped memory for tpu_custom_call.1']
    #allocation5 [shape = 'u8[262144]{0}', space=vmem, size = 0x40000, scoped, tag = 'input window, operand 1']
    #allocation6 [shape = 's32[2]{0}', space=sflag, size = 0x8, scoped, tag = 'scoped memory for tpu_custom_call.1']
    #allocation7 [shape = 'u8[8192]{0}', space=vmem, size = 0x2000, scoped, tag = 'input window, operand 2']
    #allocation8 [shape = 'u8[196608]{0}', space=vmem, size = 0x30000, scoped, tag = 'input window, operand 3, single buffered']
    #allocation9 [shape = 's32[1]{0}', space=sflag, size = 0x4, scoped, tag = 'scoped memory for tpu_custom_call.1']
    #allocation10 [shape = 'u8[589824]{0}', space=vmem, size = 0x90000, scoped, tag = 'input window, operand 4, single buffered']
    #allocation11 [shape = 'u8[24576]{0}', space=vmem, size = 0x6000, scoped, tag = 'input window, operand 5, single buffered']
    #allocation12 [shape = 's32[1]{0}', space=sflag, size = 0x4, scoped, tag = 'scoped memory for tpu_custom_call.1']
    #allocation13 [shape = 'u8[24576]{0}', space=vmem, size = 0x6000, scoped, tag = 'output window, operand 0']
    %11 = vsyncpa [#allocation3], 0
    %s12 = scalar_lea.sflag [#allocation3], 1
    %13 = vsyncpa %s12, 0
    %14 = vsyncpa [#allocation6], 0
    %s15 = scalar_lea.sflag [#allocation6], 1
    %16 = vsyncpa %s15, 0
    %17 = vsyncpa [#allocation9], 0
    %18 = vsyncpa [#allocation12], 0
    %19 = vsyncpa [#allocation4], 0
    %s20 = scalar_lea.sflag [#allocation4], 1
    %21 = vsyncpa %s20, 0
    loop: start=0, step=1, limit=6
    $region2: #{tpu_custom_call.1} parent=1 // loop_pre_header
      _
    $region3: #{tpu_custom_call.1} parent=1 // loop_header
      %s23 = sphi 0, %s27
      %p24 = scmp.ge.s32.totalorder %s23, 6
      %s33 = sphi 0, %s35
      %s36 = sphi 0, %s33
      %s37 = sphi 0, %s36
      %s53 = sphi 0, %s37
      %s59 = sphi 0, %s61
      %s62 = sphi 0, %s59
      %s63 = sphi 0, %s62
      %s79 = sphi 0, %s63
      %s85 = sphi 0, %s87
      %s88 = sphi 0, %s85
      %s89 = sphi 0, %s88
      %s105 = sphi 0, %s89
      %s109 = sphi 0, %s109
      %s111 = sphi 0, %s109
      %s112 = sphi 0, %s111
      %s126 = sphi 0, %s112
      %s130 = sphi 0, %s130
      %s132 = sphi 0, %s130
      %s133 = sphi 0, %s132
      %s147 = sphi 0, %s133
      %s151 = sphi 0, %s151
      %s153 = sphi 0, %s151
      %s154 = sphi 0, %s153
      %s168 = sphi 0, %s154
      %s174 = sphi 0, %s176
      %s177 = sphi 0, %s174
      %s178 = sphi 0, %s177
      %s194 = sphi 0, %s178
    $region4: #{tpu_custom_call.1} parent=1 // loop_header_branch
      %26 = sbr.rel (%p24) target = $region8
    $region5: #{tpu_custom_call.1} parent=1 // loop_body
      %s28 = ssub.s32 %s23, 1
      %s29 = ssub.s32 %s23, 2
      %s30 = sadd.s32 %s23, 1
      %s31 = ssub.s32 %s23, %s30
      %p32 = scmp.eq.s32.totalorder %s31, 0
      %s34 = sadd.s32 %s33, 1
      %s35 = scalar_select %p32, %s33, %s34
      %p38 = pneg %p32
      %p39 = scmp.eq.s32.totalorder %s23, 3
      %p40 = por %p38, %p39
      %p41 = scmp.ne.s32.totalorder %s33, %s36
      %p42 = scmp.eq.s32.totalorder %s23, 0
      %p43 = por %p41, %p42
      %p44 = scmp.ne.s32.totalorder %s33, %s36
      %p45 = scmp.eq.s32.totalorder %s28, 3
      %p46 = por %p44, %p45
      %p47 = scmp.ne.s32.totalorder %s36, %s37
      %p48 = scmp.eq.s32.totalorder %s28, 0
      %p49 = por %p47, %p48
      %p50 = scmp.ne.s32.totalorder %s36, %s37
      %p51 = scmp.eq.s32.totalorder %s29, 3
      %p52 = por %p50, %p51
      %p54 = scmp.ne.s32.totalorder %s37, %s53
      %p55 = scmp.eq.s32.totalorder %s29, 0
      %p56 = por %p54, %p55
      %s57 = ssub.s32 %s23, %s30
      %p58 = scmp.eq.s32.totalorder %s57, 0
      %s60 = sadd.s32 %s59, 1
      %s61 = scalar_select %p58, %s59, %s60
      %p64 = pneg %p58
      %p65 = scmp.eq.s32.totalorder %s23, 3
      %p66 = por %p64, %p65
      %p67 = scmp.ne.s32.totalorder %s59, %s62
      %p68 = scmp.eq.s32.totalorder %s23, 0
      %p69 = por %p67, %p68
      %p70 = scmp.ne.s32.totalorder %s59, %s62
      %p71 = scmp.eq.s32.totalorder %s28, 3
      %p72 = por %p70, %p71
      %p73 = scmp.ne.s32.totalorder %s62, %s63
      %p74 = scmp.eq.s32.totalorder %s28, 0
      %p75 = por %p73, %p74
      %p76 = scmp.ne.s32.totalorder %s62, %s63
      %p77 = scmp.eq.s32.totalorder %s29, 3
      %p78 = por %p76, %p77
      %p80 = scmp.ne.s32.totalorder %s63, %s79
      %p81 = scmp.eq.s32.totalorder %s29, 0
      %p82 = por %p80, %p81
      %s83 = ssub.s32 %s23, %s30
      %p84 = scmp.eq.s32.totalorder %s83, 0
      %s86 = sadd.s32 %s85, 1
      %s87 = scalar_select %p84, %s85, %s86
      %p90 = pneg %p84
      %p91 = scmp.eq.s32.totalorder %s23, 3
      %p92 = por %p90, %p91
      %p93 = scmp.ne.s32.totalorder %s85, %s88
      %p94 = scmp.eq.s32.totalorder %s23, 0
      %p95 = por %p93, %p94
      %p96 = scmp.ne.s32.totalorder %s85, %s88
      %p97 = scmp.eq.s32.totalorder %s28, 3
      %p98 = por %p96, %p97
      %p99 = scmp.ne.s32.totalorder %s88, %s89
      %p100 = scmp.eq.s32.totalorder %s28, 0
      %p101 = por %p99, %p100
      %p102 = scmp.ne.s32.totalorder %s88, %s89
      %p103 = scmp.eq.s32.totalorder %s29, 3
      %p104 = por %p102, %p103
      %p106 = scmp.ne.s32.totalorder %s89, %s105
      %p107 = scmp.eq.s32.totalorder %s29, 0
      %p108 = por %p106, %p107
      %s110 = sadd.s32 %s109, 1
      %p113 = scmp.eq.s32.totalorder %s23, 3
      %p114 = scmp.ne.s32.totalorder %s109, %s111
      %p115 = scmp.eq.s32.totalorder %s23, 0
      %p116 = por %p114, %p115
      %p117 = scmp.ne.s32.totalorder %s109, %s111
      %p118 = scmp.eq.s32.totalorder %s28, 3
      %p119 = por %p117, %p118
      %p120 = scmp.ne.s32.totalorder %s111, %s112
      %p121 = scmp.eq.s32.totalorder %s28, 0
      %p122 = por %p120, %p121
      %p123 = scmp.ne.s32.totalorder %s111, %s112
      %p124 = scmp.eq.s32.totalorder %s29, 3
      %p125 = por %p123, %p124
      %p127 = scmp.ne.s32.totalorder %s112, %s126
      %p128 = scmp.eq.s32.totalorder %s29, 0
      %p129 = por %p127, %p128
      %s131 = sadd.s32 %s130, 1
      %p134 = scmp.eq.s32.totalorder %s23, 3
      %p135 = scmp.ne.s32.totalorder %s130, %s132
      %p136 = scmp.eq.s32.totalorder %s23, 0
      %p137 = por %p135, %p136
      %p138 = scmp.ne.s32.totalorder %s130, %s132
      %p139 = scmp.eq.s32.totalorder %s28, 3
      %p140 = por %p138, %p139
      %p141 = scmp.ne.s32.totalorder %s132, %s133
      %p142 = scmp.eq.s32.totalorder %s28, 0
      %p143 = por %p141, %p142
      %p144 = scmp.ne.s32.totalorder %s132, %s133
      %p145 = scmp.eq.s32.totalorder %s29, 3
      %p146 = por %p144, %p145
      %p148 = scmp.ne.s32.totalorder %s133, %s147
      %p149 = scmp.eq.s32.totalorder %s29, 0
      %p150 = por %p148, %p149
      %s152 = sadd.s32 %s151, 1
      %p155 = scmp.eq.s32.totalorder %s23, 3
      %p156 = scmp.ne.s32.totalorder %s151, %s153
      %p157 = scmp.eq.s32.totalorder %s23, 0
      %p158 = por %p156, %p157
      %p159 = scmp.ne.s32.totalorder %s151, %s153
      %p160 = scmp.eq.s32.totalorder %s28, 3
      %p161 = por %p159, %p160
      %p162 = scmp.ne.s32.totalorder %s153, %s154
      %p163 = scmp.eq.s32.totalorder %s28, 0
      %p164 = por %p162, %p163
      %p165 = scmp.ne.s32.totalorder %s153, %s154
      %p166 = scmp.eq.s32.totalorder %s29, 3
      %p167 = por %p165, %p166
      %p169 = scmp.ne.s32.totalorder %s154, %s168
      %p170 = scmp.eq.s32.totalorder %s29, 0
      %p171 = por %p169, %p170
      %s172 = ssub.s32 %s23, %s30
      %p173 = scmp.eq.s32.totalorder %s172, 0
      %s175 = sadd.s32 %s174, 1
      %s176 = scalar_select %p173, %s174, %s175
      %p179 = pneg %p173
      %p180 = scmp.eq.s32.totalorder %s23, 3
      %p181 = por %p179, %p180
      %p182 = scmp.ne.s32.totalorder %s174, %s177
      %p183 = scmp.eq.s32.totalorder %s23, 0
      %p184 = por %p182, %p183
      %p185 = scmp.ne.s32.totalorder %s174, %s177
      %p186 = scmp.eq.s32.totalorder %s28, 3
      %p187 = por %p185, %p186
      %p188 = scmp.ne.s32.totalorder %s177, %s178
      %p189 = scmp.eq.s32.totalorder %s28, 0
      %p190 = por %p188, %p189
      %p191 = scmp.ne.s32.totalorder %s177, %s178
      %p192 = scmp.eq.s32.totalorder %s29, 3
      %p193 = por %p191, %p192
      %p195 = scmp.ne.s32.totalorder %s178, %s194
      %p196 = scmp.eq.s32.totalorder %s29, 0
      %p197 = por %p195, %p196
      %p198 = scmp.le.s32.totalorder 1, %s23
      %p199 = scmp.lt.s32.totalorder %s23, 5
      %p200 = pnand %p198, %p199
      %p201 = pneg %p200
      // Predicated region
      $region9: #{tpu_custom_call.1} parent=5 // pred_check
        _
      $region10: #{tpu_custom_call.1} parent=5 // pred_check_branch
        %203 = sbr.rel (%p200) target = $region12
      $region11: #{tpu_custom_call.1} parent=5 // pred_region
        %s204 = ssub.s32 %s23, 1
        // Predicated region
        $region13: #{tpu_custom_call.1} parent=11 // pred_check
          %p205 = pneg %p122
        $region14: #{tpu_custom_call.1} parent=11 // pred_check_branch
          %207 = sbr.rel (%p205) target = $region16
        $region15: #{tpu_custom_call.1} parent=11 // pred_region
          %s209 = ssub.s32 6144, 6144
          %210 = vsyncadd [#allocation9], %s209
          %s211 = sshll.u32 [#allocation8], 4
          %s212 = int_to_ptr.vmem [resolvable:$true] %s211
          %217 = dma.hbm_to_vmem [thread:$0]  %s3, 6144, %s212, [#allocation9], 64, 64, 4
        $region16: #{tpu_custom_call.1} parent=11 // pred_fallthru
          _
        // Predicated region
        $region17: #{tpu_custom_call.1} parent=11 // pred_check
          %p218 = pneg %p143
        $region18: #{tpu_custom_call.1} parent=11 // pred_check_branch
          %220 = sbr.rel (%p218) target = $region20
        $region19: #{tpu_custom_call.1} parent=11 // pred_region
          %s222 = ssub.s32 18432, 18432
          %223 = vsyncadd [#allocation9], %s222
          %s224 = sshll.u32 [#allocation10], 4
          %s225 = int_to_ptr.vmem [resolvable:$true] %s224
          %230 = dma.hbm_to_vmem [thread:$0]  %s4, 18432, %s225, [#allocation9], 192, 192, 12
        $region20: #{tpu_custom_call.1} parent=11 // pred_fallthru
          _
        // Predicated region
        $region21: #{tpu_custom_call.1} parent=11 // pred_check
          %p231 = pneg %p164
        $region22: #{tpu_custom_call.1} parent=11 // pred_check_branch
          %233 = sbr.rel (%p231) target = $region24
        $region23: #{tpu_custom_call.1} parent=11 // pred_region
          %s235 = ssub.s32 768, 768
          %236 = vsyncadd [#allocation12], %s235
          %s237 = sshll.u32 [#allocation11], 4
          %s238 = int_to_ptr.vmem [resolvable:$true] %s237
          %243 = dma.hbm_to_vmem [thread:$0]  %s5, 768, %s238, [#allocation12], 384, 384, 24
        $region24: #{tpu_custom_call.1} parent=11 // pred_fallthru
          _
      $region12: #{tpu_custom_call.1} parent=5 // pred_fallthru
        _
      %p244 = scmp.lt.s32.totalorder %s23, 4
      // Predicated region
      $region25: #{tpu_custom_call.1} parent=5 // pred_check
        %p245 = pneg %p244
      $region26: #{tpu_custom_call.1} parent=5 // pred_check_branch
        %247 = sbr.rel (%p245) target = $region28
      $region27: #{tpu_custom_call.1} parent=5 // pred_region
        // Predicated region
        $region29: #{tpu_custom_call.1} parent=27 // pred_check
          %p248 = pneg %p43
        $region30: #{tpu_custom_call.1} parent=27 // pred_check_branch
          %250 = sbr.rel (%p248) target = $region32
        $region31: #{tpu_custom_call.1} parent=27 // pred_region
          %s251 = sand.u32 %s33, 1
          %s252 = scalar_lea.sflag [#allocation3], %s251
          %s253 = sand.u32 %s33, 1
          %s254 = smul.addr %s253, 256
          %s255 = scalar_lea.vmem [#allocation2], %s254
          %s257 = ssub.s32 4096, 4096
          %258 = vsyncadd %s252, %s257
          %s259 = smul.addr %s23, 32
          %s260 = smul.addr %s259, 128
          %s261 = scalar_lea.hbm %s0, %s260
          %s262 = sshll.u32 %s255, 4
          %s263 = int_to_ptr.vmem [resolvable:$true] %s262
          %268 = dma.hbm_to_vmem [thread:$0]  %s261, 4096, %s263, %s252, 128, 128, 8
        $region32: #{tpu_custom_call.1} parent=27 // pred_fallthru
          _
        // Predicated region
        $region33: #{tpu_custom_call.1} parent=27 // pred_check
          %p269 = pneg %p69
        $region34: #{tpu_custom_call.1} parent=27 // pred_check_branch
          %271 = sbr.rel (%p269) target = $region36
        $region35: #{tpu_custom_call.1} parent=27 // pred_region
          %s272 = sand.u32 %s23, 1
          %s273 = scalar_lea.sflag [#allocation6], %s272
          %s274 = sand.u32 %s59, 1
          %s275 = smul.addr %s274, 256
          %s276 = scalar_lea.vmem [#allocation5], %s275
          %s278 = ssub.s32 4096, 4096
          %279 = vsyncadd %s273, %s278
          %s280 = smul.addr %s23, 64
          %s281 = smul.addr %s280, 64
          %s282 = scalar_lea.hbm %s1, %s281
          %s283 = sshll.u32 %s276, 4
          %s284 = int_to_ptr.vmem [resolvable:$true] %s283
          %289 = dma.hbm_to_vmem [thread:$0]  %s282, 4096, %s284, %s273, 128, 128, 8
        $region36: #{tpu_custom_call.1} parent=27 // pred_fallthru
          _
        // Predicated region
        $region37: #{tpu_custom_call.1} parent=27 // pred_check
          %p290 = pneg %p95
        $region38: #{tpu_custom_call.1} parent=27 // pred_check_branch
          %292 = sbr.rel (%p290) target = $region40
        $region39: #{tpu_custom_call.1} parent=27 // pred_region
          %s293 = sand.u32 %s23, 1
          %s294 = scalar_lea.sflag [#allocation6], %s293
          %s295 = sand.u32 %s85, 1
          %s296 = smul.addr %s295, 8
          %s297 = scalar_lea.vmem [#allocation7], %s296
          %s299 = ssub.s32 128, 128
          %300 = vsyncadd %s294, %s299
          %s301 = smul.addr %s23, 2
          %s302 = smul.addr %s301, 64
          %s303 = scalar_lea.hbm %s2, %s302
          %s305 = sshll.u32 %s297, 4
          %s306 = int_to_ptr.vmem [resolvable:$true] %s305
          %308 = dma.hbm_to_vmem [thread:$0]  %s303, 128, %s306, %s294
        $region40: #{tpu_custom_call.1} parent=27 // pred_fallthru
          _
      $region28: #{tpu_custom_call.1} parent=5 // pred_fallthru
        _
      %p309 = scmp.le.s32.totalorder 1, %s23
      %p310 = scmp.lt.s32.totalorder %s23, 5
      %p311 = pnand %p309, %p310
      %p312 = pneg %p311
      // Predicated region
      $region41: #{tpu_custom_call.1} parent=5 // pred_check
        _
      $region42: #{tpu_custom_call.1} parent=5 // pred_check_branch
        %314 = sbr.rel (%p311) target = $region44
      $region43: #{tpu_custom_call.1} parent=5 // pred_region
        %s315 = ssub.s32 %s23, 1
        %s316 = sand.u32 %s36, 1
        %s317 = scalar_lea.sflag [#allocation3], %s316
        %s318 = sand.u32 %s36, 1
        %s319 = smul.addr %s318, 256
        %s320 = scalar_lea.vmem [#allocation2], %s319
        // Predicated region
        $region45: #{tpu_custom_call.1} parent=43 // pred_check
          %p321 = pneg %p49
        $region46: #{tpu_custom_call.1} parent=43 // pred_check_branch
          %323 = sbr.rel (%p321) target = $region48
        $region47: #{tpu_custom_call.1} parent=43 // pred_region
          %324 = dma.done %s317, 4096
        $region48: #{tpu_custom_call.1} parent=43 // pred_fallthru
          _
        %s325 = sand.u32 %s28, 1
        %s326 = scalar_lea.sflag [#allocation6], %s325
        %s327 = sand.u32 %s62, 1
        %s328 = smul.addr %s327, 256
        %s329 = scalar_lea.vmem [#allocation5], %s328
        // Predicated region
        $region49: #{tpu_custom_call.1} parent=43 // pred_check
          %p330 = pneg %p75
        $region50: #{tpu_custom_call.1} parent=43 // pred_check_branch
          %332 = sbr.rel (%p330) target = $region52
        $region51: #{tpu_custom_call.1} parent=43 // pred_region
          %333 = dma.done %s326, 4096
        $region52: #{tpu_custom_call.1} parent=43 // pred_fallthru
          _
        %s334 = sand.u32 %s28, 1
        %s335 = scalar_lea.sflag [#allocation6], %s334
        %s336 = sand.u32 %s88, 1
        %s337 = smul.addr %s336, 8
        %s338 = scalar_lea.vmem [#allocation7], %s337
        // Predicated region
        $region53: #{tpu_custom_call.1} parent=43 // pred_check
          %p339 = pneg %p101
        $region54: #{tpu_custom_call.1} parent=43 // pred_check_branch
          %341 = sbr.rel (%p339) target = $region56
        $region55: #{tpu_custom_call.1} parent=43 // pred_region
          %342 = dma.done %s335, 128
        $region56: #{tpu_custom_call.1} parent=43 // pred_fallthru
          _
        // Predicated region
        $region57: #{tpu_custom_call.1} parent=43 // pred_check
          %p343 = pneg %p122
        $region58: #{tpu_custom_call.1} parent=43 // pred_check_branch
          %345 = sbr.rel (%p343) target = $region60
        $region59: #{tpu_custom_call.1} parent=43 // pred_region
          %346 = dma.done [#allocation9], 6144
        $region60: #{tpu_custom_call.1} parent=43 // pred_fallthru
          _
        // Predicated region
        $region61: #{tpu_custom_call.1} parent=43 // pred_check
          %p347 = pneg %p143
        $region62: #{tpu_custom_call.1} parent=43 // pred_check_branch
          %349 = sbr.rel (%p347) target = $region64
        $region63: #{tpu_custom_call.1} parent=43 // pred_region
          %350 = dma.done [#allocation9], 18432
        $region64: #{tpu_custom_call.1} parent=43 // pred_fallthru
          _
        // Predicated region
        $region65: #{tpu_custom_call.1} parent=43 // pred_check
          %p351 = pneg %p164
        $region66: #{tpu_custom_call.1} parent=43 // pred_check_branch
          %353 = sbr.rel (%p351) target = $region68
        $region67: #{tpu_custom_call.1} parent=43 // pred_region
          %354 = dma.done [#allocation12], 768
        $region68: #{tpu_custom_call.1} parent=43 // pred_fallthru
          _
        %s355 = sand.u32 %s36, 1
        %s356 = scalar_lea.sflag [#allocation3], %s355
        %s357 = sand.u32 %s36, 1
        %s358 = smul.addr %s357, 256
        %s359 = scalar_lea.vmem [#allocation2], %s358
        %p360 = pneg %p49
        %p361 = pneg %p46
        %s362 = sand.u32 %s28, 1
        %s363 = scalar_lea.sflag [#allocation6], %s362
        %s364 = sand.u32 %s62, 1
        %s365 = smul.addr %s364, 256
        %s366 = scalar_lea.vmem [#allocation5], %s365
        %p367 = pneg %p75
        %p368 = pneg %p72
        %s369 = sand.u32 %s28, 1
        %s370 = scalar_lea.sflag [#allocation6], %s369
        %s371 = sand.u32 %s88, 1
        %s372 = smul.addr %s371, 8
        %s373 = scalar_lea.vmem [#allocation7], %s372
        %p374 = pneg %p101
        %p375 = pneg %p98
        %p376 = pneg %p122
        %p377 = pneg %p119
        %p378 = pneg %p143
        %p379 = pneg %p140
        %p380 = pneg %p164
        %p381 = pneg %p161
        %p382 = pneg %p190
        %p383 = pneg %p187
        %s384 = sand.u32 %s177, 1
        %s385 = scalar_lea.sflag [#allocation4], %s384
        %s386 = sand.u32 %s177, 1
        %s387 = smul.addr %s386, 24
        %s388 = scalar_lea.vmem [#allocation13], %s387
        %v390 = vld [vmem:[%s329] sm:$0xff]
        %v391 = vld [vmem:[%s329 + $0x8] sm:$0xff]
        %v392 = vld [vmem:[%s329 + $0x10] sm:$0xff]
        %v393 = vld [vmem:[%s329 + $0x18] sm:$0xff]
        %v394 = vld [vmem:[%s329 + $0x20] sm:$0xff]
        %v395 = vld [vmem:[%s329 + $0x28] sm:$0xff]
        %v396 = vld [vmem:[%s329 + $0x30] sm:$0xff]
        %v397 = vld [vmem:[%s329 + $0x38] sm:$0xff]
        %v398 = vld [vmem:[%s329 + $0x40] sm:$0xff]
        %v399 = vld [vmem:[%s329 + $0x48] sm:$0xff]
        %v400 = vld [vmem:[%s329 + $0x50] sm:$0xff]
        %v401 = vld [vmem:[%s329 + $0x58] sm:$0xff]
        %v402 = vld [vmem:[%s329 + $0x60] sm:$0xff]
        %v403 = vld [vmem:[%s329 + $0x68] sm:$0xff]
        %v404 = vld [vmem:[%s329 + $0x70] sm:$0xff]
        %v405 = vld [vmem:[%s329 + $0x78] sm:$0xff]
        %v406 = vld [vmem:[%s329 + $0x80] sm:$0xff]
        %v407 = vld [vmem:[%s329 + $0x88] sm:$0xff]
        %v408 = vld [vmem:[%s329 + $0x90] sm:$0xff]
        %v409 = vld [vmem:[%s329 + $0x98] sm:$0xff]
        %v410 = vld [vmem:[%s329 + $0xa0] sm:$0xff]
        %v411 = vld [vmem:[%s329 + $0xa8] sm:$0xff]
        %v412 = vld [vmem:[%s329 + $0xb0] sm:$0xff]
        %v413 = vld [vmem:[%s329 + $0xb8] sm:$0xff]
        %v414 = vld [vmem:[%s329 + $0xc0] sm:$0xff]
        %v415 = vld [vmem:[%s329 + $0xc8] sm:$0xff]
        %v416 = vld [vmem:[%s329 + $0xd0] sm:$0xff]
        %v417 = vld [vmem:[%s329 + $0xd8] sm:$0xff]
        %v418 = vld [vmem:[%s329 + $0xe0] sm:$0xff]
        %v419 = vld [vmem:[%s329 + $0xe8] sm:$0xff]
        %v420 = vld [vmem:[%s329 + $0xf0] sm:$0xff]
        %v421 = vld [vmem:[%s329 + $0xf8] sm:$0xff]
        %v422 = vld [vmem:[%s338] sm:$0xff]
        %v423 = vld [vmem:[%s320] sm:$0xff]
        %v424 = vld [vmem:[%s320 + $0x8] sm:$0xff]
        %v425 = vld [vmem:[%s320 + $0x10] sm:$0xff]
        %v426 = vld [vmem:[%s320 + $0x18] sm:$0xff]
        %v427 = vld [vmem:[%s320 + $0x20] sm:$0xff]
        %v428 = vld [vmem:[%s320 + $0x28] sm:$0xff]
        %v429 = vld [vmem:[%s320 + $0x30] sm:$0xff]
        %v430 = vld [vmem:[%s320 + $0x38] sm:$0xff]
        %v431 = vld [vmem:[%s320 + $0x40] sm:$0xff]
        %v432 = vld [vmem:[%s320 + $0x48] sm:$0xff]
        %v433 = vld [vmem:[%s320 + $0x50] sm:$0xff]
        %v434 = vld [vmem:[%s320 + $0x58] sm:$0xff]
        %v435 = vld [vmem:[%s320 + $0x60] sm:$0xff]
        %v436 = vld [vmem:[%s320 + $0x68] sm:$0xff]
        %v437 = vld [vmem:[%s320 + $0x70] sm:$0xff]
        %v438 = vld [vmem:[%s320 + $0x78] sm:$0xff]
        %v439 = vld [vmem:[%s320 + $0x80] sm:$0xff]
        %v440 = vld [vmem:[%s320 + $0x88] sm:$0xff]
        %v441 = vld [vmem:[%s320 + $0x90] sm:$0xff]
        %v442 = vld [vmem:[%s320 + $0x98] sm:$0xff]
        %v443 = vld [vmem:[%s320 + $0xa0] sm:$0xff]
        %v444 = vld [vmem:[%s320 + $0xa8] sm:$0xff]
        %v445 = vld [vmem:[%s320 + $0xb0] sm:$0xff]
        %v446 = vld [vmem:[%s320 + $0xb8] sm:$0xff]
        %v447 = vld [vmem:[%s320 + $0xc0] sm:$0xff]
        %v448 = vld [vmem:[%s320 + $0xc8] sm:$0xff]
        %v449 = vld [vmem:[%s320 + $0xd0] sm:$0xff]
        %v450 = vld [vmem:[%s320 + $0xd8] sm:$0xff]
        %v451 = vld [vmem:[%s320 + $0xe0] sm:$0xff]
        %v452 = vld [vmem:[%s320 + $0xe8] sm:$0xff]
        %v453 = vld [vmem:[%s320 + $0xf0] sm:$0xff]
        %v454 = vld [vmem:[%s320 + $0xf8] sm:$0xff]
        %v455 = vpack.c.bf16 %v424, %v423
        %v456 = vpack.c.bf16 %v426, %v425
        %v457 = vpack.c.bf16 %v428, %v427
        %v458 = vpack.c.bf16 %v430, %v429
        %v459 = vpack.c.bf16 %v432, %v431
        %v460 = vpack.c.bf16 %v434, %v433
        %v461 = vpack.c.bf16 %v436, %v435
        %v462 = vpack.c.bf16 %v438, %v437
        %v463 = vpack.c.bf16 %v440, %v439
        %v464 = vpack.c.bf16 %v442, %v441
        %v465 = vpack.c.bf16 %v444, %v443
        %v466 = vpack.c.bf16 %v446, %v445
        %v467 = vpack.c.bf16 %v448, %v447
        %v468 = vpack.c.bf16 %v450, %v449
        %v469 = vpack.c.bf16 %v452, %v451
        %v470 = vpack.c.bf16 %v454, %v453
        %v471 = vld [vmem:[#allocation11] ss:$0 sm:$0xff]
        %v472 = vld [vmem:[#allocation11 + $0x1] ss:$0 sm:$0xff]
        %v473 = vld [vmem:[#allocation11 + $0x2] ss:$0 sm:$0xff]
        %v474 = vld [vmem:[#allocation11 + $0x3] ss:$0 sm:$0xff]
        %v507 = vunpack.c.l.b16 %v390
        %v508 = vunpack.c.h.b16 %v390
        %v509 = vunpack.c.l.b16 %v391
        %v510 = vunpack.c.h.b16 %v391
        %v511 = vunpack.c.l.b16 %v392
        %v512 = vunpack.c.h.b16 %v392
        %v513 = vunpack.c.l.b16 %v393
        %v514 = vunpack.c.h.b16 %v393
        %v515 = vunpack.c.l.b16 %v394
        %v516 = vunpack.c.h.b16 %v394
        %v517 = vunpack.c.l.b16 %v395
        %v518 = vunpack.c.h.b16 %v395
        %v519 = vunpack.c.l.b16 %v396
        %v520 = vunpack.c.h.b16 %v396
        %v521 = vunpack.c.l.b16 %v397
        %v522 = vunpack.c.h.b16 %v397
        %v523 = vunpack.c.l.b16 %v398
        %v524 = vunpack.c.h.b16 %v398
        %v525 = vunpack.c.l.b16 %v399
        %v526 = vunpack.c.h.b16 %v399
        %v527 = vunpack.c.l.b16 %v400
        %v528 = vunpack.c.h.b16 %v400
        %v529 = vunpack.c.l.b16 %v401
        %v530 = vunpack.c.h.b16 %v401
        %v531 = vunpack.c.l.b16 %v402
        %v532 = vunpack.c.h.b16 %v402
        %v533 = vunpack.c.l.b16 %v403
        %v534 = vunpack.c.h.b16 %v403
        %v535 = vunpack.c.l.b16 %v404
        %v536 = vunpack.c.h.b16 %v404
        %v537 = vunpack.c.l.b16 %v405
        %v538 = vunpack.c.h.b16 %v405
        %v539 = vunpack.c.l.b16 %v406
        %v540 = vunpack.c.h.b16 %v406
        %v541 = vunpack.c.l.b16 %v407
        %v542 = vunpack.c.h.b16 %v407
        %v543 = vunpack.c.l.b16 %v408
        %v544 = vunpack.c.h.b16 %v408
        %v545 = vunpack.c.l.b16 %v409
        %v546 = vunpack.c.h.b16 %v409
        %v547 = vunpack.c.l.b16 %v410
        %v548 = vunpack.c.h.b16 %v410
        %v549 = vunpack.c.l.b16 %v411
        %v550 = vunpack.c.h.b16 %v411
        %v551 = vunpack.c.l.b16 %v412
        %v552 = vunpack.c.h.b16 %v412
        %v553 = vunpack.c.l.b16 %v413
        %v554 = vunpack.c.h.b16 %v413
        %v555 = vunpack.c.l.b16 %v414
        %v556 = vunpack.c.h.b16 %v414
        %v557 = vunpack.c.l.b16 %v415
        %v558 = vunpack.c.h.b16 %v415
        %v559 = vunpack.c.l.b16 %v416
        %v560 = vunpack.c.h.b16 %v416
        %v561 = vunpack.c.l.b16 %v417
        %v562 = vunpack.c.h.b16 %v417
        %v563 = vunpack.c.l.b16 %v418
        %v564 = vunpack.c.h.b16 %v418
        %v565 = vunpack.c.l.b16 %v419
        %v566 = vunpack.c.h.b16 %v419
        %v567 = vunpack.c.l.b16 %v420
        %v568 = vunpack.c.h.b16 %v420
        %v569 = vunpack.c.l.b16 %v421
        %v570 = vunpack.c.h.b16 %v421
        %v571 = vpack.c.b16 %v509, %v507
        %v572 = vpack.c.b16 %v510, %v508
        %v573 = vpack.c.b16 %v513, %v511
        %v574 = vpack.c.b16 %v514, %v512
        %v575 = vpack.c.b16 %v517, %v515
        %v576 = vpack.c.b16 %v518, %v516
        %v577 = vpack.c.b16 %v521, %v519
        %v578 = vpack.c.b16 %v522, %v520
        %v579 = vpack.c.b16 %v525, %v523
        %v580 = vpack.c.b16 %v526, %v524
        %v581 = vpack.c.b16 %v529, %v527
        %v582 = vpack.c.b16 %v530, %v528
        %v583 = vpack.c.b16 %v533, %v531
        %v584 = vpack.c.b16 %v534, %v532
        %v585 = vpack.c.b16 %v537, %v535
        %v586 = vpack.c.b16 %v538, %v536
        %v587 = vpack.c.b16 %v541, %v539
        %v588 = vpack.c.b16 %v542, %v540
        %v589 = vpack.c.b16 %v545, %v543
        %v590 = vpack.c.b16 %v546, %v544
        %v591 = vpack.c.b16 %v549, %v547
        %v592 = vpack.c.b16 %v550, %v548
        %v593 = vpack.c.b16 %v553, %v551
        %v594 = vpack.c.b16 %v554, %v552
        %v595 = vpack.c.b16 %v557, %v555
        %v596 = vpack.c.b16 %v558, %v556
        %v597 = vpack.c.b16 %v561, %v559
        %v598 = vpack.c.b16 %v562, %v560
        %v599 = vpack.c.b16 %v565, %v563
        %v600 = vpack.c.b16 %v566, %v564
        %v601 = vpack.c.b16 %v569, %v567
        %v602 = vpack.c.b16 %v570, %v568
        %635 = vmatprep.subr.bf16.mxu0 0
        %636 = vmatpush1.bf16.msra.mxu0 %v455
        %637 = vmatprep.subr.bf16.mxu0 0
        %638 = vmatpush1.bf16.msra.mxu0 %v456
        %639 = vmatprep.subr.bf16.mxu0 0
        %640 = vmatpush1.bf16.msra.mxu0 %v457
        %641 = vmatprep.subr.bf16.mxu0 0
        %642 = vmatpush1.bf16.msra.mxu0 %v458
        %643 = vmatprep.subr.bf16.mxu0 0
        %644 = vmatpush1.bf16.msra.mxu0 %v459
        %645 = vmatprep.subr.bf16.mxu0 0
        %646 = vmatpush1.bf16.msra.mxu0 %v460
        %647 = vmatprep.subr.bf16.mxu0 0
        %648 = vmatpush1.bf16.msra.mxu0 %v461
        %649 = vmatprep.subr.bf16.mxu0 0
        %650 = vmatpush1.bf16.msra.mxu0 %v462
        %651 = vmatprep.subr.bf16.mxu0 0
        %652 = vmatpush1.bf16.msra.mxu0 %v463
        %653 = vmatprep.subr.bf16.mxu0 0
        %654 = vmatpush1.bf16.msra.mxu0 %v464
        %655 = vmatprep.subr.bf16.mxu0 0
        %656 = vmatpush1.bf16.msra.mxu0 %v465
        %657 = vmatprep.subr.bf16.mxu0 0
        %658 = vmatpush1.bf16.msra.mxu0 %v466
        %659 = vmatprep.subr.bf16.mxu0 0
        %660 = vmatpush1.bf16.msra.mxu0 %v467
        %661 = vmatprep.subr.bf16.mxu0 0
        %662 = vmatpush1.bf16.msra.mxu0 %v468
        %663 = vmatprep.subr.bf16.mxu0 0
        %664 = vmatpush1.bf16.msra.mxu0 %v469
        %665 = vmatprep.subr.bf16.mxu0 0
        %666 = vmatpush1.bf16.msra.mxu0 %v470
        %667 = vmatprep.mubr.bf16.mxu0 %v572
        %668 = vmatmul.mubr.bf16.gmra.mrb[0].mxu0 %v571
        %v669 = vpop.f32.mrb[0].mxu0
        %v670 = vadd.f32 0.0, %v669
        %v671 = vpop.f32.mrb[0].mxu0
        %v672 = vpop.f32.mrb[0].mxu0
        %v673 = vadd.f32 0.0, %v672
        %v674 = vpop.f32.mrb[0].mxu0
        %675 = vmatprep.mubr.bf16.mxu0 %v574
        %676 = vmatmul.mubr.bf16.gmra.mrb[0].mxu0 %v573
        %v677 = vpop.f32.mrb[0].mxu0
        %v678 = vadd.f32 0.0, %v677
        %v679 = vpop.f32.mrb[0].mxu0
        %v680 = vpop.f32.mrb[0].mxu0
        %v681 = vadd.f32 0.0, %v680
        %v682 = vpop.f32.mrb[0].mxu0
        %683 = vmatprep.mubr.bf16.mxu0 %v576
        %684 = vmatmul.mubr.bf16.gmra.mrb[0].mxu0 %v575
        %v685 = vpop.f32.mrb[0].mxu0
        %v686 = vadd.f32 0.0, %v685
        %v687 = vpop.f32.mrb[0].mxu0
        %v688 = vpop.f32.mrb[0].mxu0
        %v689 = vadd.f32 0.0, %v688
        %v690 = vpop.f32.mrb[0].mxu0
        %691 = vmatprep.mubr.bf16.mxu0 %v578
        %692 = vmatmul.mubr.bf16.gmra.mrb[0].mxu0 %v577
        %v693 = vpop.f32.mrb[0].mxu0
        %v694 = vadd.f32 0.0, %v693
        %v695 = vpop.f32.mrb[0].mxu0
        %v696 = vpop.f32.mrb[0].mxu0
        %v697 = vadd.f32 0.0, %v696
        %v698 = vpop.f32.mrb[0].mxu0
        %699 = vmatprep.mubr.bf16.mxu0 %v580
        %700 = vmatmul.mubr.bf16.gmra.mrb[0].mxu0 %v579
        %v701 = vpop.f32.mrb[0].mxu0
        %v702 = vadd.f32 0.0, %v701
        %v703 = vpop.f32.mrb[0].mxu0
        %v704 = vpop.f32.mrb[0].mxu0
        %v705 = vadd.f32 0.0, %v704
        %v706 = vpop.f32.mrb[0].mxu0
        %707 = vmatprep.mubr.bf16.mxu0 %v582
        %708 = vmatmul.mubr.bf16.gmra.mrb[0].mxu0 %v581
        %v709 = vpop.f32.mrb[0].mxu0
        %v710 = vadd.f32 0.0, %v709
        %v711 = vpop.f32.mrb[0].mxu0
        %v712 = vpop.f32.mrb[0].mxu0
        %v713 = vadd.f32 0.0, %v712
        %v714 = vpop.f32.mrb[0].mxu0
        %715 = vmatprep.mubr.bf16.mxu0 %v584
        %716 = vmatmul.mubr.bf16.gmra.mrb[0].mxu0 %v583
        %v717 = vpop.f32.mrb[0].mxu0
        %v718 = vadd.f32 0.0, %v717
        %v719 = vpop.f32.mrb[0].mxu0
        %v720 = vpop.f32.mrb[0].mxu0
        %v721 = vadd.f32 0.0, %v720
        %v722 = vpop.f32.mrb[0].mxu0
        %723 = vmatprep.mubr.bf16.mxu0 %v586
        %724 = vmatmul.mubr.bf16.gmra.mrb[0].mxu0 %v585
        %v725 = vpop.f32.mrb[0].mxu0
        %v726 = vadd.f32 0.0, %v725
        %v727 = vpop.f32.mrb[0].mxu0
        %v728 = vpop.f32.mrb[0].mxu0
        %v729 = vadd.f32 0.0, %v728
        %v730 = vpop.f32.mrb[0].mxu0
        %731 = vmatprep.mubr.bf16.mxu0 %v588
        %732 = vmatmul.mubr.bf16.gmra.mrb[0].mxu0 %v587
        %v733 = vpop.f32.mrb[0].mxu0
        %v734 = vadd.f32 0.0, %v733
        %v735 = vpop.f32.mrb[0].mxu0
        %v736 = vpop.f32.mrb[0].mxu0
        %v737 = vadd.f32 0.0, %v736
        %v738 = vpop.f32.mrb[0].mxu0
        %739 = vmatprep.mubr.bf16.mxu0 %v590
        %740 = vmatmul.mubr.bf16.gmra.mrb[0].mxu0 %v589
        %v741 = vpop.f32.mrb[0].mxu0
        %v742 = vadd.f32 0.0, %v741
        %v743 = vpop.f32.mrb[0].mxu0
        %v744 = vpop.f32.mrb[0].mxu0
        %v745 = vadd.f32 0.0, %v744
        %v746 = vpop.f32.mrb[0].mxu0
        %747 = vmatprep.mubr.bf16.mxu0 %v592
        %748 = vmatmul.mubr.bf16.gmra.mrb[0].mxu0 %v591
        %v749 = vpop.f32.mrb[0].mxu0
        %v750 = vadd.f32 0.0, %v749
        %v751 = vpop.f32.mrb[0].mxu0
        %v752 = vpop.f32.mrb[0].mxu0
        %v753 = vadd.f32 0.0, %v752
        %v754 = vpop.f32.mrb[0].mxu0
        %755 = vmatprep.mubr.bf16.mxu0 %v594
        %756 = vmatmul.mubr.bf16.gmra.mrb[0].mxu0 %v593
        %v757 = vpop.f32.mrb[0].mxu0
        %v758 = vadd.f32 0.0, %v757
        %v759 = vpop.f32.mrb[0].mxu0
        %v760 = vpop.f32.mrb[0].mxu0
        %v761 = vadd.f32 0.0, %v760
        %v762 = vpop.f32.mrb[0].mxu0
        %763 = vmatprep.mubr.bf16.mxu0 %v596
        %764 = vmatmul.mubr.bf16.gmra.mrb[0].mxu0 %v595
        %v765 = vpop.f32.mrb[0].mxu0
        %v766 = vadd.f32 0.0, %v765
        %v767 = vpop.f32.mrb[0].mxu0
        %v768 = vpop.f32.mrb[0].mxu0
        %v769 = vadd.f32 0.0, %v768
        %v770 = vpop.f32.mrb[0].mxu0
        %771 = vmatprep.mubr.bf16.mxu0 %v598
        %772 = vmatmul.mubr.bf16.gmra.mrb[0].mxu0 %v597
        %v773 = vpop.f32.mrb[0].mxu0
        %v774 = vadd.f32 0.0, %v773
        %v775 = vpop.f32.mrb[0].mxu0
        %v776 = vpop.f32.mrb[0].mxu0
        %v777 = vadd.f32 0.0, %v776
        %v778 = vpop.f32.mrb[0].mxu0
        %779 = vmatprep.mubr.bf16.mxu0 %v600
        %780 = vmatmul.mubr.bf16.gmra.mrb[0].mxu0 %v599
        %v781 = vpop.f32.mrb[0].mxu0
        %v782 = vadd.f32 0.0, %v781
        %v783 = vpop.f32.mrb[0].mxu0
        %v784 = vpop.f32.mrb[0].mxu0
        %v785 = vadd.f32 0.0, %v784
        %v786 = vpop.f32.mrb[0].mxu0
        %787 = vmatprep.mubr.bf16.mxu0 %v602
        %788 = vmatmul.mubr.bf16.gmra.mrb[0].mxu0 %v601
        %v789 = vpop.f32.mrb[0].mxu0
        %v790 = vadd.f32 0.0, %v789
        %v791 = vpop.f32.mrb[0].mxu0
        %v792 = vpop.f32.mrb[0].mxu0
        %v793 = vadd.f32 0.0, %v792
        %v794 = vpop.f32.mrb[0].mxu0
        %795 = vdwg.mxu0
        %v796 = vpack.c.bf16 %v673, %v670
        %v797 = vpack.c.bf16 %v681, %v678
        %v798 = vpack.c.bf16 %v689, %v686
        %v799 = vpack.c.bf16 %v697, %v694
        %v800 = vpack.c.bf16 %v705, %v702
        %v801 = vpack.c.bf16 %v713, %v710
        %v802 = vpack.c.bf16 %v721, %v718
        %v803 = vpack.c.bf16 %v729, %v726
        %v804 = vpack.c.bf16 %v737, %v734
        %v805 = vpack.c.bf16 %v745, %v742
        %v806 = vpack.c.bf16 %v753, %v750
        %v807 = vpack.c.bf16 %v761, %v758
        %v808 = vpack.c.bf16 %v769, %v766
        %v809 = vpack.c.bf16 %v777, %v774
        %v810 = vpack.c.bf16 %v785, %v782
        %v811 = vpack.c.bf16 %v793, %v790
        %v812 = vld [vmem:[#allocation8] sm:$0xf]
        %v813 = vld [vmem:[#allocation8 + $0x4] sm:$0xf]
        %v814 = vld [vmem:[#allocation8 + $0x8] sm:$0xf]
        %v815 = vld [vmem:[#allocation8 + $0xc] sm:$0xf]
        %v816 = vld [vmem:[#allocation8 + $0x10] sm:$0xf]
        %v817 = vld [vmem:[#allocation8 + $0x14] sm:$0xf]
        %v818 = vld [vmem:[#allocation8 + $0x18] sm:$0xf]
        %v819 = vld [vmem:[#allocation8 + $0x1c] sm:$0xf]
        %v820 = vld [vmem:[#allocation8 + $0x20] sm:$0xf]
        %v821 = vld [vmem:[#allocation8 + $0x24] sm:$0xf]
        %v822 = vld [vmem:[#allocation8 + $0x28] sm:$0xf]
        %v823 = vld [vmem:[#allocation8 + $0x2c] sm:$0xf]
        %v824 = vld [vmem:[#allocation8 + $0x30] sm:$0xf]
        %v825 = vld [vmem:[#allocation8 + $0x34] sm:$0xf]
        %v826 = vld [vmem:[#allocation8 + $0x38] sm:$0xf]
        %v827 = vld [vmem:[#allocation8 + $0x3c] sm:$0xf]
        %v844 = vunpack.c.l.b16 %v812
        %v845 = vunpack.c.l.b16 %v813
        %v846 = vunpack.c.l.b16 %v814
        %v847 = vunpack.c.l.b16 %v815
        %v848 = vunpack.c.l.b16 %v816
        %v849 = vunpack.c.l.b16 %v817
        %v850 = vunpack.c.l.b16 %v818
        %v851 = vunpack.c.l.b16 %v819
        %v852 = vunpack.c.l.b16 %v820
        %v853 = vunpack.c.l.b16 %v821
        %v854 = vunpack.c.l.b16 %v822
        %v855 = vunpack.c.l.b16 %v823
        %v856 = vunpack.c.l.b16 %v824
        %v857 = vunpack.c.l.b16 %v825
        %v858 = vunpack.c.l.b16 %v826
        %v859 = vunpack.c.l.b16 %v827
        %v860 = vpack.c.b16 %v845, %v844
        %v861 = vpack.c.b16 %v847, %v846
        %v862 = vpack.c.b16 %v849, %v848
        %v863 = vpack.c.b16 %v851, %v850
        %v864 = vpack.c.b16 %v853, %v852
        %v865 = vpack.c.b16 %v855, %v854
        %v866 = vpack.c.b16 %v857, %v856
        %v867 = vpack.c.b16 %v859, %v858
        %876 = vmatprep.subr.bf16.mxu0 0
        %877 = vmatpush1.bf16.msra.mxu0 %v860
        %878 = vmatprep.subr.bf16.mxu0 0
        %879 = vmatpush1.bf16.msra.mxu0 %v861
        %880 = vmatprep.subr.bf16.mxu0 0
        %881 = vmatpush1.bf16.msra.mxu0 %v862
        %882 = vmatprep.subr.bf16.mxu0 0
        %883 = vmatpush1.bf16.msra.mxu0 %v863
        %884 = vmatprep.subr.bf16.mxu0 0
        %885 = vmatpush1.bf16.msra.mxu0 %v864
        %886 = vmatprep.subr.bf16.mxu0 0
        %887 = vmatpush1.bf16.msra.mxu0 %v865
        %888 = vmatprep.subr.bf16.mxu0 0
        %889 = vmatpush1.bf16.msra.mxu0 %v866
        %890 = vmatprep.subr.bf16.mxu0 0
        %891 = vmatpush1.bf16.msra.mxu0 %v867
        %892 = vmatprep.subr.bf16.mxu0 0
        %893 = vmatpush1.bf16.msra.mxu0 0
        %894 = vmatprep.subr.bf16.mxu0 0
        %895 = vmatpush1.bf16.msra.mxu0 0
        %896 = vmatprep.subr.bf16.mxu0 0
        %897 = vmatpush1.bf16.msra.mxu0 0
        %898 = vmatprep.subr.bf16.mxu0 0
        %899 = vmatpush1.bf16.msra.mxu0 0
        %900 = vmatprep.subr.bf16.mxu0 0
        %901 = vmatpush1.bf16.msra.mxu0 0
        %902 = vmatprep.subr.bf16.mxu0 0
        %903 = vmatpush1.bf16.msra.mxu0 0
        %904 = vmatprep.subr.bf16.mxu0 0
        %905 = vmatpush1.bf16.msra.mxu0 0
        %906 = vmatprep.subr.bf16.mxu0 0
        %907 = vmatpush1.bf16.msra.mxu0 0
        %908 = vmatprep.mubr.bf16.mxu0 0
        %909 = vmatmul.mubr.bf16.gmra.mrb[0].mxu0 %v796
        %v910 = vpop.f32.mrb[0].mxu0
        %v911 = vadd.f32 %v471, %v910
        %v912 = vpop.f32.mrb[0].mxu0
        %v913 = vpop.f32.mrb[0].mxu0
        %v914 = vadd.f32 %v471, %v913
        %v915 = vpop.f32.mrb[0].mxu0
        %916 = vmatprep.mubr.bf16.mxu0 0
        %917 = vmatmul.mubr.bf16.gmra.mrb[0].mxu0 %v797
        %v918 = vpop.f32.mrb[0].mxu0
        %v919 = vadd.f32 %v471, %v918
        %v920 = vpop.f32.mrb[0].mxu0
        %v921 = vpop.f32.mrb[0].mxu0
        %v922 = vadd.f32 %v471, %v921
        %v923 = vpop.f32.mrb[0].mxu0
        %924 = vmatprep.mubr.bf16.mxu0 0
        %925 = vmatmul.mubr.bf16.gmra.mrb[0].mxu0 %v798
        %v926 = vpop.f32.mrb[0].mxu0
        %v927 = vadd.f32 %v471, %v926
        %v928 = vpop.f32.mrb[0].mxu0
        %v929 = vpop.f32.mrb[0].mxu0
        %v930 = vadd.f32 %v471, %v929
        %v931 = vpop.f32.mrb[0].mxu0
        %932 = vmatprep.mubr.bf16.mxu0 0
        %933 = vmatmul.mubr.bf16.gmra.mrb[0].mxu0 %v799
        %v934 = vpop.f32.mrb[0].mxu0
        %v935 = vadd.f32 %v471, %v934
        %v936 = vpop.f32.mrb[0].mxu0
        %v937 = vpop.f32.mrb[0].mxu0
        %v938 = vadd.f32 %v471, %v937
        %v939 = vpop.f32.mrb[0].mxu0
        %940 = vmatprep.mubr.bf16.mxu0 0
        %941 = vmatmul.mubr.bf16.gmra.mrb[0].mxu0 %v800
        %v942 = vpop.f32.mrb[0].mxu0
        %v943 = vadd.f32 %v471, %v942
        %v944 = vpop.f32.mrb[0].mxu0
        %v945 = vpop.f32.mrb[0].mxu0
        %v946 = vadd.f32 %v471, %v945
        %v947 = vpop.f32.mrb[0].mxu0
        %948 = vmatprep.mubr.bf16.mxu0 0
        %949 = vmatmul.mubr.bf16.gmra.mrb[0].mxu0 %v801
        %v950 = vpop.f32.mrb[0].mxu0
        %v951 = vadd.f32 %v471, %v950
        %v952 = vpop.f32.mrb[0].mxu0
        %v953 = vpop.f32.mrb[0].mxu0
        %v954 = vadd.f32 %v471, %v953
        %v955 = vpop.f32.mrb[0].mxu0
        %956 = vmatprep.mubr.bf16.mxu0 0
        %957 = vmatmul.mubr.bf16.gmra.mrb[0].mxu0 %v802
        %v958 = vpop.f32.mrb[0].mxu0
        %v959 = vadd.f32 %v471, %v958
        %v960 = vpop.f32.mrb[0].mxu0
        %v961 = vpop.f32.mrb[0].mxu0
        %v962 = vadd.f32 %v471, %v961
        %v963 = vpop.f32.mrb[0].mxu0
        %964 = vmatprep.mubr.bf16.mxu0 0
        %965 = vmatmul.mubr.bf16.gmra.mrb[0].mxu0 %v803
        %v966 = vpop.f32.mrb[0].mxu0
        %v967 = vadd.f32 %v471, %v966
        %v968 = vpop.f32.mrb[0].mxu0
        %v969 = vpop.f32.mrb[0].mxu0
        %v970 = vadd.f32 %v471, %v969
        %v971 = vpop.f32.mrb[0].mxu0
        %972 = vmatprep.mubr.bf16.mxu0 0
        %973 = vmatmul.mubr.bf16.gmra.mrb[0].mxu0 %v804
        %v974 = vpop.f32.mrb[0].mxu0
        %v975 = vadd.f32 %v471, %v974
        %v976 = vpop.f32.mrb[0].mxu0
        %v977 = vpop.f32.mrb[0].mxu0
        %v978 = vadd.f32 %v471, %v977
        %v979 = vpop.f32.mrb[0].mxu0
        %980 = vmatprep.mubr.bf16.mxu0 0
        %981 = vmatmul.mubr.bf16.gmra.mrb[0].mxu0 %v805
        %v982 = vpop.f32.mrb[0].mxu0
        %v983 = vadd.f32 %v471, %v982
        %v984 = vpop.f32.mrb[0].mxu0
        %v985 = vpop.f32.mrb[0].mxu0
        %v986 = vadd.f32 %v471, %v985
        %v987 = vpop.f32.mrb[0].mxu0
        %988 = vmatprep.mubr.bf16.mxu0 0
        %989 = vmatmul.mubr.bf16.gmra.mrb[0].mxu0 %v806
        %v990 = vpop.f32.mrb[0].mxu0
        %v991 = vadd.f32 %v471, %v990
        %v992 = vpop.f32.mrb[0].mxu0
        %v993 = vpop.f32.mrb[0].mxu0
        %v994 = vadd.f32 %v471, %v993
        %v995 = vpop.f32.mrb[0].mxu0
        %996 = vmatprep.mubr.bf16.mxu0 0
        %997 = vmatmul.mubr.bf16.gmra.mrb[0].mxu0 %v807
        %v998 = vpop.f32.mrb[0].mxu0
        %v999 = vadd.f32 %v471, %v998
        %v1000 = vpop.f32.mrb[0].mxu0
        %v1001 = vpop.f32.mrb[0].mxu0
        %v1002 = vadd.f32 %v471, %v1001
        %v1003 = vpop.f32.mrb[0].mxu0
        %1004 = vmatprep.mubr.bf16.mxu0 0
        %1005 = vmatmul.mubr.bf16.gmra.mrb[0].mxu0 %v808
        %v1006 = vpop.f32.mrb[0].mxu0
        %v1007 = vadd.f32 %v471, %v1006
        %v1008 = vpop.f32.mrb[0].mxu0
        %v1009 = vpop.f32.mrb[0].mxu0
        %v1010 = vadd.f32 %v471, %v1009
        %v1011 = vpop.f32.mrb[0].mxu0
        %1012 = vmatprep.mubr.bf16.mxu0 0
        %1013 = vmatmul.mubr.bf16.gmra.mrb[0].mxu0 %v809
        %v1014 = vpop.f32.mrb[0].mxu0
        %v1015 = vadd.f32 %v471, %v1014
        %v1016 = vpop.f32.mrb[0].mxu0
        %v1017 = vpop.f32.mrb[0].mxu0
        %v1018 = vadd.f32 %v471, %v1017
        %v1019 = vpop.f32.mrb[0].mxu0
        %1020 = vmatprep.mubr.bf16.mxu0 0
        %1021 = vmatmul.mubr.bf16.gmra.mrb[0].mxu0 %v810
        %v1022 = vpop.f32.mrb[0].mxu0
        %v1023 = vadd.f32 %v471, %v1022
        %v1024 = vpop.f32.mrb[0].mxu0
        %v1025 = vpop.f32.mrb[0].mxu0
        %v1026 = vadd.f32 %v471, %v1025
        %v1027 = vpop.f32.mrb[0].mxu0
        %1028 = vmatprep.mubr.bf16.mxu0 0
        %1029 = vmatmul.mubr.bf16.gmra.mrb[0].mxu0 %v811
        %v1030 = vpop.f32.mrb[0].mxu0
        %v1031 = vadd.f32 %v471, %v1030
        %v1032 = vpop.f32.mrb[0].mxu0
        %v1033 = vpop.f32.mrb[0].mxu0
        %v1034 = vadd.f32 %v471, %v1033
        %v1035 = vpop.f32.mrb[0].mxu0
        %1036 = vdwg.mxu0
        %v1037 = vmax.f32 %v911, 0.0
        %v1038 = vmax.f32 %v914, 0.0
        %v1039 = vmax.f32 %v919, 0.0
        %v1040 = vmax.f32 %v922, 0.0
        %v1041 = vmax.f32 %v927, 0.0
        %v1042 = vmax.f32 %v930, 0.0
        %v1043 = vmax.f32 %v935, 0.0
        %v1044 = vmax.f32 %v938, 0.0
        %v1045 = vmax.f32 %v943, 0.0
        %v1046 = vmax.f32 %v946, 0.0
        %v1047 = vmax.f32 %v951, 0.0
        %v1048 = vmax.f32 %v954, 0.0
        %v1049 = vmax.f32 %v959, 0.0
        %v1050 = vmax.f32 %v962, 0.0
        %v1051 = vmax.f32 %v967, 0.0
        %v1052 = vmax.f32 %v970, 0.0
        %v1053 = vmax.f32 %v975, 0.0
        %v1054 = vmax.f32 %v978, 0.0
        %v1055 = vmax.f32 %v983, 0.0
        %v1056 = vmax.f32 %v986, 0.0
        %v1057 = vmax.f32 %v991, 0.0
        %v1058 = vmax.f32 %v994, 0.0
        %v1059 = vmax.f32 %v999, 0.0
        %v1060 = vmax.f32 %v1002, 0.0
        %v1061 = vmax.f32 %v1007, 0.0
        %v1062 = vmax.f32 %v1010, 0.0
        %v1063 = vmax.f32 %v1015, 0.0
        %v1064 = vmax.f32 %v1018, 0.0
        %v1065 = vmax.f32 %v1023, 0.0
        %v1066 = vmax.f32 %v1026, 0.0
        %v1067 = vmax.f32 %v1031, 0.0
        %v1068 = vmax.f32 %v1034, 0.0
        %v1069 = vpack.c.bf16 %v1038, %v1037
        %v1070 = vpack.c.bf16 %v1040, %v1039
        %v1071 = vpack.c.bf16 %v1042, %v1041
        %v1072 = vpack.c.bf16 %v1044, %v1043
        %v1073 = vpack.c.bf16 %v1046, %v1045
        %v1074 = vpack.c.bf16 %v1048, %v1047
        %v1075 = vpack.c.bf16 %v1050, %v1049
        %v1076 = vpack.c.bf16 %v1052, %v1051
        %v1077 = vpack.c.bf16 %v1054, %v1053
        %v1078 = vpack.c.bf16 %v1056, %v1055
        %v1079 = vpack.c.bf16 %v1058, %v1057
        %v1080 = vpack.c.bf16 %v1060, %v1059
        %v1081 = vpack.c.bf16 %v1062, %v1061
        %v1082 = vpack.c.bf16 %v1064, %v1063
        %v1083 = vpack.c.bf16 %v1066, %v1065
        %v1084 = vpack.c.bf16 %v1068, %v1067
        %s1085 = scalar_lea.vmem [#allocation8], 192
        %v1086 = vld [vmem:[%s1085] sm:$0xf]
        %v1087 = vld [vmem:[%s1085 + $0x4] sm:$0xf]
        %v1088 = vld [vmem:[%s1085 + $0x8] sm:$0xf]
        %v1089 = vld [vmem:[%s1085 + $0xc] sm:$0xf]
        %v1090 = vld [vmem:[%s1085 + $0x10] sm:$0xf]
        %v1091 = vld [vmem:[%s1085 + $0x14] sm:$0xf]
        %v1092 = vld [vmem:[%s1085 + $0x18] sm:$0xf]
        %v1093 = vld [vmem:[%s1085 + $0x1c] sm:$0xf]
        %v1094 = vld [vmem:[%s1085 + $0x20] sm:$0xf]
        %v1095 = vld [vmem:[%s1085 + $0x24] sm:$0xf]
        %v1096 = vld [vmem:[%s1085 + $0x28] sm:$0xf]
        %v1097 = vld [vmem:[%s1085 + $0x2c] sm:$0xf]
        %v1098 = vld [vmem:[%s1085 + $0x30] sm:$0xf]
        %v1099 = vld [vmem:[%s1085 + $0x34] sm:$0xf]
        %v1100 = vld [vmem:[%s1085 + $0x38] sm:$0xf]
        %v1101 = vld [vmem:[%s1085 + $0x3c] sm:$0xf]
        %v1118 = vunpack.c.l.b16 %v1086
        %v1119 = vunpack.c.l.b16 %v1087
        %v1120 = vunpack.c.l.b16 %v1088
        %v1121 = vunpack.c.l.b16 %v1089
        %v1122 = vunpack.c.l.b16 %v1090
        %v1123 = vunpack.c.l.b16 %v1091
        %v1124 = vunpack.c.l.b16 %v1092
        %v1125 = vunpack.c.l.b16 %v1093
        %v1126 = vunpack.c.l.b16 %v1094
        %v1127 = vunpack.c.l.b16 %v1095
        %v1128 = vunpack.c.l.b16 %v1096
        %v1129 = vunpack.c.l.b16 %v1097
        %v1130 = vunpack.c.l.b16 %v1098
        %v1131 = vunpack.c.l.b16 %v1099
        %v1132 = vunpack.c.l.b16 %v1100
        %v1133 = vunpack.c.l.b16 %v1101
        %v1134 = vpack.c.b16 %v1119, %v1118
        %v1135 = vpack.c.b16 %v1121, %v1120
        %v1136 = vpack.c.b16 %v1123, %v1122
        %v1137 = vpack.c.b16 %v1125, %v1124
        %v1138 = vpack.c.b16 %v1127, %v1126
        %v1139 = vpack.c.b16 %v1129, %v1128
        %v1140 = vpack.c.b16 %v1131, %v1130
        %v1141 = vpack.c.b16 %v1133, %v1132
        %1150 = vmatprep.subr.bf16.mxu0 0
        %1151 = vmatpush1.bf16.msra.mxu0 %v1134
        %1152 = vmatprep.subr.bf16.mxu0 0
        %1153 = vmatpush1.bf16.msra.mxu0 %v1135
        %1154 = vmatprep.subr.bf16.mxu0 0
        %1155 = vmatpush1.bf16.msra.mxu0 %v1136
        %1156 = vmatprep.subr.bf16.mxu0 0
        %1157 = vmatpush1.bf16.msra.mxu0 %v1137
        %1158 = vmatprep.subr.bf16.mxu0 0
        %1159 = vmatpush1.bf16.msra.mxu0 %v1138
        %1160 = vmatprep.subr.bf16.mxu0 0
        %1161 = vmatpush1.bf16.msra.mxu0 %v1139
        %1162 = vmatprep.subr.bf16.mxu0 0
        %1163 = vmatpush1.bf16.msra.mxu0 %v1140
        %1164 = vmatprep.subr.bf16.mxu0 0
        %1165 = vmatpush1.bf16.msra.mxu0 %v1141
        %1166 = vmatprep.subr.bf16.mxu0 0
        %1167 = vmatpush1.bf16.msra.mxu0 0
        %1168 = vmatprep.subr.bf16.mxu0 0
        %1169 = vmatpush1.bf16.msra.mxu0 0
        %1170 = vmatprep.subr.bf16.mxu0 0
        %1171 = vmatpush1.bf16.msra.mxu0 0
        %1172 = vmatprep.subr.bf16.mxu0 0
        %1173 = vmatpush1.bf16.msra.mxu0 0
        %1174 = vmatprep.subr.bf16.mxu0 0
        %1175 = vmatpush1.bf16.msra.mxu0 0
        %1176 = vmatprep.subr.bf16.mxu0 0
        %1177 = vmatpush1.bf16.msra.mxu0 0
        %1178 = vmatprep.subr.bf16.mxu0 0
        %1179 = vmatpush1.bf16.msra.mxu0 0
        %1180 = vmatprep.subr.bf16.mxu0 0
        %1181 = vmatpush1.bf16.msra.mxu0 0
        %1182 = vmatprep.mubr.bf16.mxu0 0
        %1183 = vmatmul.mubr.bf16.gmra.mrb[0].mxu0 %v1069
        %v1184 = vpop.f32.mrb[0].mxu0
        %v1185 = vadd.f32 %v472, %v1184
        %v1186 = vpop.f32.mrb[0].mxu0
        %v1187 = vpop.f32.mrb[0].mxu0
        %v1188 = vadd.f32 %v472, %v1187
        %v1189 = vpop.f32.mrb[0].mxu0
        %1190 = vmatprep.mubr.bf16.mxu0 0
        %1191 = vmatmul.mubr.bf16.gmra.mrb[0].mxu0 %v1070
        %v1192 = vpop.f32.mrb[0].mxu0
        %v1193 = vadd.f32 %v472, %v1192
        %v1194 = vpop.f32.mrb[0].mxu0
        %v1195 = vpop.f32.mrb[0].mxu0
        %v1196 = vadd.f32 %v472, %v1195
        %v1197 = vpop.f32.mrb[0].mxu0
        %1198 = vmatprep.mubr.bf16.mxu0 0
        %1199 = vmatmul.mubr.bf16.gmra.mrb[0].mxu0 %v1071
        %v1200 = vpop.f32.mrb[0].mxu0
        %v1201 = vadd.f32 %v472, %v1200
        %v1202 = vpop.f32.mrb[0].mxu0
        %v1203 = vpop.f32.mrb[0].mxu0
        %v1204 = vadd.f32 %v472, %v1203
        %v1205 = vpop.f32.mrb[0].mxu0
        %1206 = vmatprep.mubr.bf16.mxu0 0
        %1207 = vmatmul.mubr.bf16.gmra.mrb[0].mxu0 %v1072
        %v1208 = vpop.f32.mrb[0].mxu0
        %v1209 = vadd.f32 %v472, %v1208
        %v1210 = vpop.f32.mrb[0].mxu0
        %v1211 = vpop.f32.mrb[0].mxu0
        %v1212 = vadd.f32 %v472, %v1211
        %v1213 = vpop.f32.mrb[0].mxu0
        %1214 = vmatprep.mubr.bf16.mxu0 0
        %1215 = vmatmul.mubr.bf16.gmra.mrb[0].mxu0 %v1073
        %v1216 = vpop.f32.mrb[0].mxu0
        %v1217 = vadd.f32 %v472, %v1216
        %v1218 = vpop.f32.mrb[0].mxu0
        %v1219 = vpop.f32.mrb[0].mxu0
        %v1220 = vadd.f32 %v472, %v1219
        %v1221 = vpop.f32.mrb[0].mxu0
        %1222 = vmatprep.mubr.bf16.mxu0 0
        %1223 = vmatmul.mubr.bf16.gmra.mrb[0].mxu0 %v1074
        %v1224 = vpop.f32.mrb[0].mxu0
        %v1225 = vadd.f32 %v472, %v1224
        %v1226 = vpop.f32.mrb[0].mxu0
        %v1227 = vpop.f32.mrb[0].mxu0
        %v1228 = vadd.f32 %v472, %v1227
        %v1229 = vpop.f32.mrb[0].mxu0
        %1230 = vmatprep.mubr.bf16.mxu0 0
        %1231 = vmatmul.mubr.bf16.gmra.mrb[0].mxu0 %v1075
        %v1232 = vpop.f32.mrb[0].mxu0
        %v1233 = vadd.f32 %v472, %v1232
        %v1234 = vpop.f32.mrb[0].mxu0
        %v1235 = vpop.f32.mrb[0].mxu0
        %v1236 = vadd.f32 %v472, %v1235
        %v1237 = vpop.f32.mrb[0].mxu0
        %1238 = vmatprep.mubr.bf16.mxu0 0
        %1239 = vmatmul.mubr.bf16.gmra.mrb[0].mxu0 %v1076
        %v1240 = vpop.f32.mrb[0].mxu0
        %v1241 = vadd.f32 %v472, %v1240
        %v1242 = vpop.f32.mrb[0].mxu0
        %v1243 = vpop.f32.mrb[0].mxu0
        %v1244 = vadd.f32 %v472, %v1243
        %v1245 = vpop.f32.mrb[0].mxu0
        %1246 = vmatprep.mubr.bf16.mxu0 0
        %1247 = vmatmul.mubr.bf16.gmra.mrb[0].mxu0 %v1077
        %v1248 = vpop.f32.mrb[0].mxu0
        %v1249 = vadd.f32 %v472, %v1248
        %v1250 = vpop.f32.mrb[0].mxu0
        %v1251 = vpop.f32.mrb[0].mxu0
        %v1252 = vadd.f32 %v472, %v1251
        %v1253 = vpop.f32.mrb[0].mxu0
        %1254 = vmatprep.mubr.bf16.mxu0 0
        %1255 = vmatmul.mubr.bf16.gmra.mrb[0].mxu0 %v1078
        %v1256 = vpop.f32.mrb[0].mxu0
        %v1257 = vadd.f32 %v472, %v1256
        %v1258 = vpop.f32.mrb[0].mxu0
        %v1259 = vpop.f32.mrb[0].mxu0
        %v1260 = vadd.f32 %v472, %v1259
        %v1261 = vpop.f32.mrb[0].mxu0
        %1262 = vmatprep.mubr.bf16.mxu0 0
        %1263 = vmatmul.mubr.bf16.gmra.mrb[0].mxu0 %v1079
        %v1264 = vpop.f32.mrb[0].mxu0
        %v1265 = vadd.f32 %v472, %v1264
        %v1266 = vpop.f32.mrb[0].mxu0
        %v1267 = vpop.f32.mrb[0].mxu0
        %v1268 = vadd.f32 %v472, %v1267
        %v1269 = vpop.f32.mrb[0].mxu0
        %1270 = vmatprep.mubr.bf16.mxu0 0
        %1271 = vmatmul.mubr.bf16.gmra.mrb[0].mxu0 %v1080
        %v1272 = vpop.f32.mrb[0].mxu0
        %v1273 = vadd.f32 %v472, %v1272
        %v1274 = vpop.f32.mrb[0].mxu0
        %v1275 = vpop.f32.mrb[0].mxu0
        %v1276 = vadd.f32 %v472, %v1275
        %v1277 = vpop.f32.mrb[0].mxu0
        %1278 = vmatprep.mubr.bf16.mxu0 0
        %1279 = vmatmul.mubr.bf16.gmra.mrb[0].mxu0 %v1081
        %v1280 = vpop.f32.mrb[0].mxu0
        %v1281 = vadd.f32 %v472, %v1280
        %v1282 = vpop.f32.mrb[0].mxu0
        %v1283 = vpop.f32.mrb[0].mxu0
        %v1284 = vadd.f32 %v472, %v1283
        %v1285 = vpop.f32.mrb[0].mxu0
        %1286 = vmatprep.mubr.bf16.mxu0 0
        %1287 = vmatmul.mubr.bf16.gmra.mrb[0].mxu0 %v1082
        %v1288 = vpop.f32.mrb[0].mxu0
        %v1289 = vadd.f32 %v472, %v1288
        %v1290 = vpop.f32.mrb[0].mxu0
        %v1291 = vpop.f32.mrb[0].mxu0
        %v1292 = vadd.f32 %v472, %v1291
        %v1293 = vpop.f32.mrb[0].mxu0
        %1294 = vmatprep.mubr.bf16.mxu0 0
        %1295 = vmatmul.mubr.bf16.gmra.mrb[0].mxu0 %v1083
        %v1296 = vpop.f32.mrb[0].mxu0
        %v1297 = vadd.f32 %v472, %v1296
        %v1298 = vpop.f32.mrb[0].mxu0
        %v1299 = vpop.f32.mrb[0].mxu0
        %v1300 = vadd.f32 %v472, %v1299
        %v1301 = vpop.f32.mrb[0].mxu0
        %1302 = vmatprep.mubr.bf16.mxu0 0
        %1303 = vmatmul.mubr.bf16.gmra.mrb[0].mxu0 %v1084
        %v1304 = vpop.f32.mrb[0].mxu0
        %v1305 = vadd.f32 %v472, %v1304
        %v1306 = vpop.f32.mrb[0].mxu0
        %v1307 = vpop.f32.mrb[0].mxu0
        %v1308 = vadd.f32 %v472, %v1307
        %v1309 = vpop.f32.mrb[0].mxu0
        %1310 = vdwg.mxu0
        %v1311 = vmax.f32 %v1185, 0.0
        %v1312 = vmax.f32 %v1188, 0.0
        %v1313 = vmax.f32 %v1193, 0.0
        %v1314 = vmax.f32 %v1196, 0.0
        %v1315 = vmax.f32 %v1201, 0.0
        %v1316 = vmax.f32 %v1204, 0.0
        %v1317 = vmax.f32 %v1209, 0.0
        %v1318 = vmax.f32 %v1212, 0.0
        %v1319 = vmax.f32 %v1217, 0.0
        %v1320 = vmax.f32 %v1220, 0.0
        %v1321 = vmax.f32 %v1225, 0.0
        %v1322 = vmax.f32 %v1228, 0.0
        %v1323 = vmax.f32 %v1233, 0.0
        %v1324 = vmax.f32 %v1236, 0.0
        %v1325 = vmax.f32 %v1241, 0.0
        %v1326 = vmax.f32 %v1244, 0.0
        %v1327 = vmax.f32 %v1249, 0.0
        %v1328 = vmax.f32 %v1252, 0.0
        %v1329 = vmax.f32 %v1257, 0.0
        %v1330 = vmax.f32 %v1260, 0.0
        %v1331 = vmax.f32 %v1265, 0.0
        %v1332 = vmax.f32 %v1268, 0.0
        %v1333 = vmax.f32 %v1273, 0.0
        %v1334 = vmax.f32 %v1276, 0.0
        %v1335 = vmax.f32 %v1281, 0.0
        %v1336 = vmax.f32 %v1284, 0.0
        %v1337 = vmax.f32 %v1289, 0.0
        %v1338 = vmax.f32 %v1292, 0.0
        %v1339 = vmax.f32 %v1297, 0.0
        %v1340 = vmax.f32 %v1300, 0.0
        %v1341 = vmax.f32 %v1305, 0.0
        %v1342 = vmax.f32 %v1308, 0.0
        %v1343 = vadd.f32 %v1311, %v1312
        %v1344 = vadd.f32 %v1343, %v1313
        %v1345 = vadd.f32 %v1344, %v1314
        %v1346 = vadd.f32 %v1345, %v1315
        %v1347 = vadd.f32 %v1346, %v1316
        %v1348 = vadd.f32 %v1347, %v1317
        %v1349 = vadd.f32 %v1348, %v1318
        %v1350 = vadd.f32 %v1349, %v1319
        %v1351 = vadd.f32 %v1350, %v1320
        %v1352 = vadd.f32 %v1351, %v1321
        %v1353 = vadd.f32 %v1352, %v1322
        %v1354 = vadd.f32 %v1353, %v1323
        %v1355 = vadd.f32 %v1354, %v1324
        %v1356 = vadd.f32 %v1355, %v1325
        %v1357 = vadd.f32 %v1356, %v1326
        %v1358 = vadd.f32 %v1357, %v1327
        %v1359 = vadd.f32 %v1358, %v1328
        %v1360 = vadd.f32 %v1359, %v1329
        %v1361 = vadd.f32 %v1360, %v1330
        %v1362 = vadd.f32 %v1361, %v1331
        %v1363 = vadd.f32 %v1362, %v1332
        %v1364 = vadd.f32 %v1363, %v1333
        %v1365 = vadd.f32 %v1364, %v1334
        %v1366 = vadd.f32 %v1365, %v1335
        %v1367 = vadd.f32 %v1366, %v1336
        %v1368 = vadd.f32 %v1367, %v1337
        %v1369 = vadd.f32 %v1368, %v1338
        %v1370 = vadd.f32 %v1369, %v1339
        %v1371 = vadd.f32 %v1370, %v1340
        %v1372 = vadd.f32 %v1371, %v1341
        %v1373 = vadd.f32 %v1372, %v1342
        %v1374 = vrot.slane %v1373, 4
        %v1375 = vadd.f32 %v1373, %v1374
        %v1376 = vrot.slane %v1375, 2
        %v1377 = vadd.f32 %v1375, %v1376
        %v1378 = vrot.slane %v1377, 1
        %v1379 = vadd.f32 %v1377, %v1378
        %v1380 = vmul.f32 %v1311, %v1311
        %v1381 = vmul.f32 %v1312, %v1312
        %v1382 = vmul.f32 %v1313, %v1313
        %v1383 = vmul.f32 %v1314, %v1314
        %v1384 = vmul.f32 %v1315, %v1315
        %v1385 = vmul.f32 %v1316, %v1316
        %v1386 = vmul.f32 %v1317, %v1317
        %v1387 = vmul.f32 %v1318, %v1318
        %v1388 = vmul.f32 %v1319, %v1319
        %v1389 = vmul.f32 %v1320, %v1320
        %v1390 = vmul.f32 %v1321, %v1321
        %v1391 = vmul.f32 %v1322, %v1322
        %v1392 = vmul.f32 %v1323, %v1323
        %v1393 = vmul.f32 %v1324, %v1324
        %v1394 = vmul.f32 %v1325, %v1325
        %v1395 = vmul.f32 %v1326, %v1326
        %v1396 = vmul.f32 %v1327, %v1327
        %v1397 = vmul.f32 %v1328, %v1328
        %v1398 = vmul.f32 %v1329, %v1329
        %v1399 = vmul.f32 %v1330, %v1330
        %v1400 = vmul.f32 %v1331, %v1331
        %v1401 = vmul.f32 %v1332, %v1332
        %v1402 = vmul.f32 %v1333, %v1333
        %v1403 = vmul.f32 %v1334, %v1334
        %v1404 = vmul.f32 %v1335, %v1335
        %v1405 = vmul.f32 %v1336, %v1336
        %v1406 = vmul.f32 %v1337, %v1337
        %v1407 = vmul.f32 %v1338, %v1338
        %v1408 = vmul.f32 %v1339, %v1339
        %v1409 = vmul.f32 %v1340, %v1340
        %v1410 = vmul.f32 %v1341, %v1341
        %v1411 = vmul.f32 %v1342, %v1342
        %v1412 = vadd.f32 %v1380, %v1381
        %v1413 = vadd.f32 %v1412, %v1382
        %v1414 = vadd.f32 %v1413, %v1383
        %v1415 = vadd.f32 %v1414, %v1384
        %v1416 = vadd.f32 %v1415, %v1385
        %v1417 = vadd.f32 %v1416, %v1386
        %v1418 = vadd.f32 %v1417, %v1387
        %v1419 = vadd.f32 %v1418, %v1388
        %v1420 = vadd.f32 %v1419, %v1389
        %v1421 = vadd.f32 %v1420, %v1390
        %v1422 = vadd.f32 %v1421, %v1391
        %v1423 = vadd.f32 %v1422, %v1392
        %v1424 = vadd.f32 %v1423, %v1393
        %v1425 = vadd.f32 %v1424, %v1394
        %v1426 = vadd.f32 %v1425, %v1395
        %v1427 = vadd.f32 %v1426, %v1396
        %v1428 = vadd.f32 %v1427, %v1397
        %v1429 = vadd.f32 %v1428, %v1398
        %v1430 = vadd.f32 %v1429, %v1399
        %v1431 = vadd.f32 %v1430, %v1400
        %v1432 = vadd.f32 %v1431, %v1401
        %v1433 = vadd.f32 %v1432, %v1402
        %v1434 = vadd.f32 %v1433, %v1403
        %v1435 = vadd.f32 %v1434, %v1404
        %v1436 = vadd.f32 %v1435, %v1405
        %v1437 = vadd.f32 %v1436, %v1406
        %v1438 = vadd.f32 %v1437, %v1407
        %v1439 = vadd.f32 %v1438, %v1408
        %v1440 = vadd.f32 %v1439, %v1409
        %v1441 = vadd.f32 %v1440, %v1410
        %v1442 = vadd.f32 %v1441, %v1411
        %v1443 = vrot.slane %v1442, 4
        %v1444 = vadd.f32 %v1442, %v1443
        %v1445 = vrot.slane %v1444, 2
        %v1446 = vadd.f32 %v1444, %v1445
        %v1447 = vrot.slane %v1446, 1
        %v1448 = vadd.f32 %v1446, %v1447
        %v1449 = vmul.f32 %v1379, 0.00390625
        %v1450 = vmul.f32 %v1448, 0.00390625
        %v1451 = vmul.f32 %v1449, %v1449
        %v1452 = vsub.f32 %v1450, %v1451
        %v1453 = vmax.f32 %v1452, 0.0
        %v1454 = vadd.f32 %v1453, 1e-05
        %v1455 = vrsqrt.pop %v1454
        %v1456 = vmul.f32 %v1455, %v473
        %v1457 = vmul.f32 %v1449, %v1456
        %v1458 = vsub.f32 %v474, %v1457
        %v1459 = vmul.f32 %v1311, %v1456
        %v1460 = vmul.f32 %v1312, %v1456
        %v1461 = vmul.f32 %v1313, %v1456
        %v1462 = vmul.f32 %v1314, %v1456
        %v1463 = vmul.f32 %v1315, %v1456
        %v1464 = vmul.f32 %v1316, %v1456
        %v1465 = vmul.f32 %v1317, %v1456
        %v1466 = vmul.f32 %v1318, %v1456
        %v1467 = vmul.f32 %v1319, %v1456
        %v1468 = vmul.f32 %v1320, %v1456
        %v1469 = vmul.f32 %v1321, %v1456
        %v1470 = vmul.f32 %v1322, %v1456
        %v1471 = vmul.f32 %v1323, %v1456
        %v1472 = vmul.f32 %v1324, %v1456
        %v1473 = vmul.f32 %v1325, %v1456
        %v1474 = vmul.f32 %v1326, %v1456
        %v1475 = vmul.f32 %v1327, %v1456
        %v1476 = vmul.f32 %v1328, %v1456
        %v1477 = vmul.f32 %v1329, %v1456
        %v1478 = vmul.f32 %v1330, %v1456
        %v1479 = vmul.f32 %v1331, %v1456
        %v1480 = vmul.f32 %v1332, %v1456
        %v1481 = vmul.f32 %v1333, %v1456
        %v1482 = vmul.f32 %v1334, %v1456
        %v1483 = vmul.f32 %v1335, %v1456
        %v1484 = vmul.f32 %v1336, %v1456
        %v1485 = vmul.f32 %v1337, %v1456
        %v1486 = vmul.f32 %v1338, %v1456
        %v1487 = vmul.f32 %v1339, %v1456
        %v1488 = vmul.f32 %v1340, %v1456
        %v1489 = vmul.f32 %v1341, %v1456
        %v1490 = vmul.f32 %v1342, %v1456
        %v1491 = vadd.f32 %v1459, %v1458
        %v1492 = vadd.f32 %v1460, %v1458
        %v1493 = vadd.f32 %v1461, %v1458
        %v1494 = vadd.f32 %v1462, %v1458
        %v1495 = vadd.f32 %v1463, %v1458
        %v1496 = vadd.f32 %v1464, %v1458
        %v1497 = vadd.f32 %v1465, %v1458
        %v1498 = vadd.f32 %v1466, %v1458
        %v1499 = vadd.f32 %v1467, %v1458
        %v1500 = vadd.f32 %v1468, %v1458
        %v1501 = vadd.f32 %v1469, %v1458
        %v1502 = vadd.f32 %v1470, %v1458
        %v1503 = vadd.f32 %v1471, %v1458
        %v1504 = vadd.f32 %v1472, %v1458
        %v1505 = vadd.f32 %v1473, %v1458
        %v1506 = vadd.f32 %v1474, %v1458
        %v1507 = vadd.f32 %v1475, %v1458
        %v1508 = vadd.f32 %v1476, %v1458
        %v1509 = vadd.f32 %v1477, %v1458
        %v1510 = vadd.f32 %v1478, %v1458
        %v1511 = vadd.f32 %v1479, %v1458
        %v1512 = vadd.f32 %v1480, %v1458
        %v1513 = vadd.f32 %v1481, %v1458
        %v1514 = vadd.f32 %v1482, %v1458
        %v1515 = vadd.f32 %v1483, %v1458
        %v1516 = vadd.f32 %v1484, %v1458
        %v1517 = vadd.f32 %v1485, %v1458
        %v1518 = vadd.f32 %v1486, %v1458
        %v1519 = vadd.f32 %v1487, %v1458
        %v1520 = vadd.f32 %v1488, %v1458
        %v1521 = vadd.f32 %v1489, %v1458
        %v1522 = vadd.f32 %v1490, %v1458
        %v1523 = vpack.c.bf16 %v1492, %v1491
        %v1524 = vpack.c.bf16 %v1494, %v1493
        %v1525 = vpack.c.bf16 %v1496, %v1495
        %v1526 = vpack.c.bf16 %v1498, %v1497
        %v1527 = vpack.c.bf16 %v1500, %v1499
        %v1528 = vpack.c.bf16 %v1502, %v1501
        %v1529 = vpack.c.bf16 %v1504, %v1503
        %v1530 = vpack.c.bf16 %v1506, %v1505
        %v1531 = vpack.c.bf16 %v1508, %v1507
        %v1532 = vpack.c.bf16 %v1510, %v1509
        %v1533 = vpack.c.bf16 %v1512, %v1511
        %v1534 = vpack.c.bf16 %v1514, %v1513
        %v1535 = vpack.c.bf16 %v1516, %v1515
        %v1536 = vpack.c.bf16 %v1518, %v1517
        %v1537 = vpack.c.bf16 %v1520, %v1519
        %v1538 = vpack.c.bf16 %v1522, %v1521
        %v1540 = vunpack.c.l.b16 %v422
        %v1541 = vunpack.c.h.b16 %v422
        %v1542 = vpack.c.b16 %v1540, %v1540
        %v1543 = vpack.c.b16 %v1541, %v1541
        %1546 = vmatprep.subr.bf16.mxu0 0
        %1547 = vmatpush1.bf16.msra.mxu0 %v1523
        %1548 = vmatprep.subr.bf16.mxu0 0
        %1549 = vmatpush1.bf16.msra.mxu0 %v1524
        %1550 = vmatprep.subr.bf16.mxu0 0
        %1551 = vmatpush1.bf16.msra.mxu0 %v1525
        %1552 = vmatprep.subr.bf16.mxu0 0
        %1553 = vmatpush1.bf16.msra.mxu0 %v1526
        %1554 = vmatprep.subr.bf16.mxu0 0
        %1555 = vmatpush1.bf16.msra.mxu0 %v1527
        %1556 = vmatprep.subr.bf16.mxu0 0
        %1557 = vmatpush1.bf16.msra.mxu0 %v1528
        %1558 = vmatprep.subr.bf16.mxu0 0
        %1559 = vmatpush1.bf16.msra.mxu0 %v1529
        %1560 = vmatprep.subr.bf16.mxu0 0
        %1561 = vmatpush1.bf16.msra.mxu0 %v1530
        %1562 = vmatprep.subr.bf16.mxu0 0
        %1563 = vmatpush1.bf16.msra.mxu0 %v1531
        %1564 = vmatprep.subr.bf16.mxu0 0
        %1565 = vmatpush1.bf16.msra.mxu0 %v1532
        %1566 = vmatprep.subr.bf16.mxu0 0
        %1567 = vmatpush1.bf16.msra.mxu0 %v1533
        %1568 = vmatprep.subr.bf16.mxu0 0
        %1569 = vmatpush1.bf16.msra.mxu0 %v1534
        %1570 = vmatprep.subr.bf16.mxu0 0
        %1571 = vmatpush1.bf16.msra.mxu0 %v1535
        %1572 = vmatprep.subr.bf16.mxu0 0
        %1573 = vmatpush1.bf16.msra.mxu0 %v1536
        %1574 = vmatprep.subr.bf16.mxu0 0
        %1575 = vmatpush1.bf16.msra.mxu0 %v1537
        %1576 = vmatprep.subr.bf16.mxu0 0
        %1577 = vmatpush1.bf16.msra.mxu0 %v1538
        %1578 = vmatprep.mubr.bf16.mxu0 %v1543
        %1579 = vmatmul.mubr.bf16.gmra.mrb[0].mxu0 %v1542
        %v1580 = vpop.f32.mrb[0].mxu0
        %v1581 = vadd.f32 0.0, %v1580
        %v1582 = vpop.f32.mrb[0].mxu0
        %v1583 = vpop.f32.mrb[0].mxu0
        %v1584 = vpop.f32.mrb[0].mxu0
        %1585 = vdwg.mxu0
        %v1586 = vpack.c.bf16 %v1581, %v1581
        %v1587 = vld [vmem:[#allocation10] sm:$0xff]
        %v1588 = vld [vmem:[#allocation10 + $0x8] sm:$0xf]
        %v1589 = vld [vmem:[#allocation10 + $0xc] sm:$0xff]
        %v1590 = vld [vmem:[#allocation10 + $0x14] sm:$0xf]
        %v1591 = vld [vmem:[#allocation10 + $0x18] sm:$0xff]
        %v1592 = vld [vmem:[#allocation10 + $0x20] sm:$0xf]
        %v1593 = vld [vmem:[#allocation10 + $0x24] sm:$0xff]
        %v1594 = vld [vmem:[#allocation10 + $0x2c] sm:$0xf]
        %v1595 = vld [vmem:[#allocation10 + $0x30] sm:$0xff]
        %v1596 = vld [vmem:[#allocation10 + $0x38] sm:$0xf]
        %v1597 = vld [vmem:[#allocation10 + $0x3c] sm:$0xff]
        %v1598 = vld [vmem:[#allocation10 + $0x44] sm:$0xf]
        %v1599 = vld [vmem:[#allocation10 + $0x48] sm:$0xff]
        %v1600 = vld [vmem:[#allocation10 + $0x50] sm:$0xf]
        %v1601 = vld [vmem:[#allocation10 + $0x54] sm:$0xff]
        %v1602 = vld [vmem:[#allocation10 + $0x5c] sm:$0xf]
        %v1603 = vld [vmem:[#allocation10 + $0x60] sm:$0xff]
        %v1604 = vld [vmem:[#allocation10 + $0x68] sm:$0xf]
        %v1605 = vld [vmem:[#allocation10 + $0x6c] sm:$0xff]
        %v1606 = vld [vmem:[#allocation10 + $0x74] sm:$0xf]
        %v1607 = vld [vmem:[#allocation10 + $0x78] sm:$0xff]
        %v1608 = vld [vmem:[#allocation10 + $0x80] sm:$0xf]
        %v1609 = vld [vmem:[#allocation10 + $0x84] sm:$0xff]
        %v1610 = vld [vmem:[#allocation10 + $0x8c] sm:$0xf]
        %v1611 = vld [vmem:[#allocation10 + $0x90] sm:$0xff]
        %v1612 = vld [vmem:[#allocation10 + $0x98] sm:$0xf]
        %v1613 = vld [vmem:[#allocation10 + $0x9c] sm:$0xff]
        %v1614 = vld [vmem:[#allocation10 + $0xa4] sm:$0xf]
        %v1615 = vld [vmem:[#allocation10 + $0xa8] sm:$0xff]
        %v1616 = vld [vmem:[#allocation10 + $0xb0] sm:$0xf]
        %v1617 = vld [vmem:[#allocation10 + $0xb4] sm:$0xff]
        %v1618 = vld [vmem:[#allocation10 + $0xbc] sm:$0xf]
        %v1619 = vld [vmem:[#allocation11 + $0x4] ss:$0 sm:$0xff]
        %v1620 = vld [vmem:[#allocation11 + $0x5] ss:$0 sm:$0xff]
        %v1621 = vld [vmem:[#allocation11 + $0x6] ss:$0 sm:$0xff]
        %v1622 = vld [vmem:[#allocation11 + $0x7] ss:$0 sm:$0xff]
        %1623 = vmatprep.subr.bf16.mxu0 0
        %1624 = vmatpush1.bf16.msra.mxu0 %v1523
        %1625 = vmatprep.subr.bf16.mxu0 0
        %1626 = vmatpush1.bf16.msra.mxu0 %v1524
        %1627 = vmatprep.subr.bf16.mxu0 0
        %1628 = vmatpush1.bf16.msra.mxu0 %v1525
        %1629 = vmatprep.subr.bf16.mxu0 0
        %1630 = vmatpush1.bf16.msra.mxu0 %v1526
        %1631 = vmatprep.subr.bf16.mxu0 0
        %1632 = vmatpush1.bf16.msra.mxu0 %v1527
        %1633 = vmatprep.subr.bf16.mxu0 0
        %1634 = vmatpush1.bf16.msra.mxu0 %v1528
        %1635 = vmatprep.subr.bf16.mxu0 0
        %1636 = vmatpush1.bf16.msra.mxu0 %v1529
        %1637 = vmatprep.subr.bf16.mxu0 0
        %1638 = vmatpush1.bf16.msra.mxu0 %v1530
        %1639 = vmatprep.subr.bf16.mxu0 0
        %1640 = vmatpush1.bf16.msra.mxu0 %v1531
        %1641 = vmatprep.subr.bf16.mxu0 0
        %1642 = vmatpush1.bf16.msra.mxu0 %v1532
        %1643 = vmatprep.subr.bf16.mxu0 0
        %1644 = vmatpush1.bf16.msra.mxu0 %v1533
        %1645 = vmatprep.subr.bf16.mxu0 0
        %1646 = vmatpush1.bf16.msra.mxu0 %v1534
        %1647 = vmatprep.subr.bf16.mxu0 0
        %1648 = vmatpush1.bf16.msra.mxu0 %v1535
        %1649 = vmatprep.subr.bf16.mxu0 0
        %1650 = vmatpush1.bf16.msra.mxu0 %v1536
        %1651 = vmatprep.subr.bf16.mxu0 0
        %1652 = vmatpush1.bf16.msra.mxu0 %v1537
        %1653 = vmatprep.subr.bf16.mxu0 0
        %1654 = vmatpush1.bf16.msra.mxu0 %v1538
        %1655 = vmatprep.mubr.bf16.mxu0 %v572
        %1656 = vmatmul.mubr.bf16.gmra.mrb[0].mxu0 %v571
        %v1657 = vpop.f32.mrb[0].mxu0
        %v1658 = vadd.f32 0.0, %v1657
        %v1659 = vpop.f32.mrb[0].mxu0
        %v1660 = vpop.f32.mrb[0].mxu0
        %v1661 = vadd.f32 0.0, %v1660
        %v1662 = vpop.f32.mrb[0].mxu0
        %1663 = vmatprep.mubr.bf16.mxu0 %v574
        %1664 = vmatmul.mubr.bf16.gmra.mrb[0].mxu0 %v573
        %v1665 = vpop.f32.mrb[0].mxu0
        %v1666 = vadd.f32 0.0, %v1665
        %v1667 = vpop.f32.mrb[0].mxu0
        %v1668 = vpop.f32.mrb[0].mxu0
        %v1669 = vadd.f32 0.0, %v1668
        %v1670 = vpop.f32.mrb[0].mxu0
        %1671 = vmatprep.mubr.bf16.mxu0 %v576
        %1672 = vmatmul.mubr.bf16.gmra.mrb[0].mxu0 %v575
        %v1673 = vpop.f32.mrb[0].mxu0
        %v1674 = vadd.f32 0.0, %v1673
        %v1675 = vpop.f32.mrb[0].mxu0
        %v1676 = vpop.f32.mrb[0].mxu0
        %v1677 = vadd.f32 0.0, %v1676
        %v1678 = vpop.f32.mrb[0].mxu0
        %1679 = vmatprep.mubr.bf16.mxu0 %v578
        %1680 = vmatmul.mubr.bf16.gmra.mrb[0].mxu0 %v577
        %v1681 = vpop.f32.mrb[0].mxu0
        %v1682 = vadd.f32 0.0, %v1681
        %v1683 = vpop.f32.mrb[0].mxu0
        %v1684 = vpop.f32.mrb[0].mxu0
        %v1685 = vadd.f32 0.0, %v1684
        %v1686 = vpop.f32.mrb[0].mxu0
        %1687 = vmatprep.mubr.bf16.mxu0 %v580
        %1688 = vmatmul.mubr.bf16.gmra.mrb[0].mxu0 %v579
        %v1689 = vpop.f32.mrb[0].mxu0
        %v1690 = vadd.f32 0.0, %v1689
        %v1691 = vpop.f32.mrb[0].mxu0
        %v1692 = vpop.f32.mrb[0].mxu0
        %v1693 = vadd.f32 0.0, %v1692
        %v1694 = vpop.f32.mrb[0].mxu0
        %1695 = vmatprep.mubr.bf16.mxu0 %v582
        %1696 = vmatmul.mubr.bf16.gmra.mrb[0].mxu0 %v581
        %v1697 = vpop.f32.mrb[0].mxu0
        %v1698 = vadd.f32 0.0, %v1697
        %v1699 = vpop.f32.mrb[0].mxu0
        %v1700 = vpop.f32.mrb[0].mxu0
        %v1701 = vadd.f32 0.0, %v1700
        %v1702 = vpop.f32.mrb[0].mxu0
        %1703 = vmatprep.mubr.bf16.mxu0 %v584
        %1704 = vmatmul.mubr.bf16.gmra.mrb[0].mxu0 %v583
        %v1705 = vpop.f32.mrb[0].mxu0
        %v1706 = vadd.f32 0.0, %v1705
        %v1707 = vpop.f32.mrb[0].mxu0
        %v1708 = vpop.f32.mrb[0].mxu0
        %v1709 = vadd.f32 0.0, %v1708
        %v1710 = vpop.f32.mrb[0].mxu0
        %1711 = vmatprep.mubr.bf16.mxu0 %v586
        %1712 = vmatmul.mubr.bf16.gmra.mrb[0].mxu0 %v585
        %v1713 = vpop.f32.mrb[0].mxu0
        %v1714 = vadd.f32 0.0, %v1713
        %v1715 = vpop.f32.mrb[0].mxu0
        %v1716 = vpop.f32.mrb[0].mxu0
        %v1717 = vadd.f32 0.0, %v1716
        %v1718 = vpop.f32.mrb[0].mxu0
        %1719 = vmatprep.mubr.bf16.mxu0 %v588
        %1720 = vmatmul.mubr.bf16.gmra.mrb[0].mxu0 %v587
        %v1721 = vpop.f32.mrb[0].mxu0
        %v1722 = vadd.f32 0.0, %v1721
        %v1723 = vpop.f32.mrb[0].mxu0
        %v1724 = vpop.f32.mrb[0].mxu0
        %v1725 = vadd.f32 0.0, %v1724
        %v1726 = vpop.f32.mrb[0].mxu0
        %1727 = vmatprep.mubr.bf16.mxu0 %v590
        %1728 = vmatmul.mubr.bf16.gmra.mrb[0].mxu0 %v589
        %v1729 = vpop.f32.mrb[0].mxu0
        %v1730 = vadd.f32 0.0, %v1729
        %v1731 = vpop.f32.mrb[0].mxu0
        %v1732 = vpop.f32.mrb[0].mxu0
        %v1733 = vadd.f32 0.0, %v1732
        %v1734 = vpop.f32.mrb[0].mxu0
        %1735 = vmatprep.mubr.bf16.mxu0 %v592
        %1736 = vmatmul.mubr.bf16.gmra.mrb[0].mxu0 %v591
        %v1737 = vpop.f32.mrb[0].mxu0
        %v1738 = vadd.f32 0.0, %v1737
        %v1739 = vpop.f32.mrb[0].mxu0
        %v1740 = vpop.f32.mrb[0].mxu0
        %v1741 = vadd.f32 0.0, %v1740
        %v1742 = vpop.f32.mrb[0].mxu0
        %1743 = vmatprep.mubr.bf16.mxu0 %v594
        %1744 = vmatmul.mubr.bf16.gmra.mrb[0].mxu0 %v593
        %v1745 = vpop.f32.mrb[0].mxu0
        %v1746 = vadd.f32 0.0, %v1745
        %v1747 = vpop.f32.mrb[0].mxu0
        %v1748 = vpop.f32.mrb[0].mxu0
        %v1749 = vadd.f32 0.0, %v1748
        %v1750 = vpop.f32.mrb[0].mxu0
        %1751 = vmatprep.mubr.bf16.mxu0 %v596
        %1752 = vmatmul.mubr.bf16.gmra.mrb[0].mxu0 %v595
        %v1753 = vpop.f32.mrb[0].mxu0
        %v1754 = vadd.f32 0.0, %v1753
        %v1755 = vpop.f32.mrb[0].mxu0
        %v1756 = vpop.f32.mrb[0].mxu0
        %v1757 = vadd.f32 0.0, %v1756
        %v1758 = vpop.f32.mrb[0].mxu0
        %1759 = vmatprep.mubr.bf16.mxu0 %v598
        %1760 = vmatmul.mubr.bf16.gmra.mrb[0].mxu0 %v597
        %v1761 = vpop.f32.mrb[0].mxu0
        %v1762 = vadd.f32 0.0, %v1761
        %v1763 = vpop.f32.mrb[0].mxu0
        %v1764 = vpop.f32.mrb[0].mxu0
        %v1765 = vadd.f32 0.0, %v1764
        %v1766 = vpop.f32.mrb[0].mxu0
        %1767 = vmatprep.mubr.bf16.mxu0 %v600
        %1768 = vmatmul.mubr.bf16.gmra.mrb[0].mxu0 %v599
        %v1769 = vpop.f32.mrb[0].mxu0
        %v1770 = vadd.f32 0.0, %v1769
        %v1771 = vpop.f32.mrb[0].mxu0
        %v1772 = vpop.f32.mrb[0].mxu0
        %v1773 = vadd.f32 0.0, %v1772
        %v1774 = vpop.f32.mrb[0].mxu0
        %1775 = vmatprep.mubr.bf16.mxu0 %v602
        %1776 = vmatmul.mubr.bf16.gmra.mrb[0].mxu0 %v601
        %v1777 = vpop.f32.mrb[0].mxu0
        %v1778 = vadd.f32 0.0, %v1777
        %v1779 = vpop.f32.mrb[0].mxu0
        %v1780 = vpop.f32.mrb[0].mxu0
        %v1781 = vadd.f32 0.0, %v1780
        %v1782 = vpop.f32.mrb[0].mxu0
        %1783 = vdwg.mxu0
        %v1784 = vpack.c.bf16 %v1661, %v1658
        %v1785 = vpack.c.bf16 %v1669, %v1666
        %v1786 = vpack.c.bf16 %v1677, %v1674
        %v1787 = vpack.c.bf16 %v1685, %v1682
        %v1788 = vpack.c.bf16 %v1693, %v1690
        %v1789 = vpack.c.bf16 %v1701, %v1698
        %v1790 = vpack.c.bf16 %v1709, %v1706
        %v1791 = vpack.c.bf16 %v1717, %v1714
        %v1792 = vpack.c.bf16 %v1725, %v1722
        %v1793 = vpack.c.bf16 %v1733, %v1730
        %v1794 = vpack.c.bf16 %v1741, %v1738
        %v1795 = vpack.c.bf16 %v1749, %v1746
        %v1796 = vpack.c.bf16 %v1757, %v1754
        %v1797 = vpack.c.bf16 %v1765, %v1762
        %v1798 = vpack.c.bf16 %v1773, %v1770
        %v1799 = vpack.c.bf16 %v1781, %v1778
        %s1800 = scalar_lea.vmem [#allocation8], 64
        %v1801 = vld [vmem:[%s1800] sm:$0xf]
        %v1802 = vld [vmem:[%s1800 + $0x4] sm:$0xf]
        %v1803 = vld [vmem:[%s1800 + $0x8] sm:$0xf]
        %v1804 = vld [vmem:[%s1800 + $0xc] sm:$0xf]
        %v1805 = vld [vmem:[%s1800 + $0x10] sm:$0xf]
        %v1806 = vld [vmem:[%s1800 + $0x14] sm:$0xf]
        %v1807 = vld [vmem:[%s1800 + $0x18] sm:$0xf]
        %v1808 = vld [vmem:[%s1800 + $0x1c] sm:$0xf]
        %v1809 = vld [vmem:[%s1800 + $0x20] sm:$0xf]
        %v1810 = vld [vmem:[%s1800 + $0x24] sm:$0xf]
        %v1811 = vld [vmem:[%s1800 + $0x28] sm:$0xf]
        %v1812 = vld [vmem:[%s1800 + $0x2c] sm:$0xf]
        %v1813 = vld [vmem:[%s1800 + $0x30] sm:$0xf]
        %v1814 = vld [vmem:[%s1800 + $0x34] sm:$0xf]
        %v1815 = vld [vmem:[%s1800 + $0x38] sm:$0xf]
        %v1816 = vld [vmem:[%s1800 + $0x3c] sm:$0xf]
        %v1833 = vunpack.c.l.b16 %v1801
        %v1834 = vunpack.c.l.b16 %v1802
        %v1835 = vunpack.c.l.b16 %v1803
        %v1836 = vunpack.c.l.b16 %v1804
        %v1837 = vunpack.c.l.b16 %v1805
        %v1838 = vunpack.c.l.b16 %v1806
        %v1839 = vunpack.c.l.b16 %v1807
        %v1840 = vunpack.c.l.b16 %v1808
        %v1841 = vunpack.c.l.b16 %v1809
        %v1842 = vunpack.c.l.b16 %v1810
        %v1843 = vunpack.c.l.b16 %v1811
        %v1844 = vunpack.c.l.b16 %v1812
        %v1845 = vunpack.c.l.b16 %v1813
        %v1846 = vunpack.c.l.b16 %v1814
        %v1847 = vunpack.c.l.b16 %v1815
        %v1848 = vunpack.c.l.b16 %v1816
        %v1849 = vpack.c.b16 %v1834, %v1833
        %v1850 = vpack.c.b16 %v1836, %v1835
        %v1851 = vpack.c.b16 %v1838, %v1837
        %v1852 = vpack.c.b16 %v1840, %v1839
        %v1853 = vpack.c.b16 %v1842, %v1841
        %v1854 = vpack.c.b16 %v1844, %v1843
        %v1855 = vpack.c.b16 %v1846, %v1845
        %v1856 = vpack.c.b16 %v1848, %v1847
        %1865 = vmatprep.subr.bf16.mxu0 0
        %1866 = vmatpush1.bf16.msra.mxu0 %v1849
        %1867 = vmatprep.subr.bf16.mxu0 0
        %1868 = vmatpush1.bf16.msra.mxu0 %v1850
        %1869 = vmatprep.subr.bf16.mxu0 0
        %1870 = vmatpush1.bf16.msra.mxu0 %v1851
        %1871 = vmatprep.subr.bf16.mxu0 0
        %1872 = vmatpush1.bf16.msra.mxu0 %v1852
        %1873 = vmatprep.subr.bf16.mxu0 0
        %1874 = vmatpush1.bf16.msra.mxu0 %v1853
        %1875 = vmatprep.subr.bf16.mxu0 0
        %1876 = vmatpush1.bf16.msra.mxu0 %v1854
        %1877 = vmatprep.subr.bf16.mxu0 0
        %1878 = vmatpush1.bf16.msra.mxu0 %v1855
        %1879 = vmatprep.subr.bf16.mxu0 0
        %1880 = vmatpush1.bf16.msra.mxu0 %v1856
        %1881 = vmatprep.subr.bf16.mxu0 0
        %1882 = vmatpush1.bf16.msra.mxu0 0
        %1883 = vmatprep.subr.bf16.mxu0 0
        %1884 = vmatpush1.bf16.msra.mxu0 0
        %1885 = vmatprep.subr.bf16.mxu0 0
        %1886 = vmatpush1.bf16.msra.mxu0 0
        %1887 = vmatprep.subr.bf16.mxu0 0
        %1888 = vmatpush1.bf16.msra.mxu0 0
        %1889 = vmatprep.subr.bf16.mxu0 0
        %1890 = vmatpush1.bf16.msra.mxu0 0
        %1891 = vmatprep.subr.bf16.mxu0 0
        %1892 = vmatpush1.bf16.msra.mxu0 0
        %1893 = vmatprep.subr.bf16.mxu0 0
        %1894 = vmatpush1.bf16.msra.mxu0 0
        %1895 = vmatprep.subr.bf16.mxu0 0
        %1896 = vmatpush1.bf16.msra.mxu0 0
        %1897 = vmatprep.mubr.bf16.mxu0 0
        %1898 = vmatmul.mubr.bf16.gmra.mrb[0].mxu0 %v1784
        %v1899 = vpop.f32.mrb[0].mxu0
        %v1900 = vadd.f32 %v1619, %v1899
        %v1901 = vpop.f32.mrb[0].mxu0
        %v1902 = vpop.f32.mrb[0].mxu0
        %v1903 = vadd.f32 %v1619, %v1902
        %v1904 = vpop.f32.mrb[0].mxu0
        %1905 = vmatprep.mubr.bf16.mxu0 0
        %1906 = vmatmul.mubr.bf16.gmra.mrb[0].mxu0 %v1785
        %v1907 = vpop.f32.mrb[0].mxu0
        %v1908 = vadd.f32 %v1619, %v1907
        %v1909 = vpop.f32.mrb[0].mxu0
        %v1910 = vpop.f32.mrb[0].mxu0
        %v1911 = vadd.f32 %v1619, %v1910
        %v1912 = vpop.f32.mrb[0].mxu0
        %1913 = vmatprep.mubr.bf16.mxu0 0
        %1914 = vmatmul.mubr.bf16.gmra.mrb[0].mxu0 %v1786
        %v1915 = vpop.f32.mrb[0].mxu0
        %v1916 = vadd.f32 %v1619, %v1915
        %v1917 = vpop.f32.mrb[0].mxu0
        %v1918 = vpop.f32.mrb[0].mxu0
        %v1919 = vadd.f32 %v1619, %v1918
        %v1920 = vpop.f32.mrb[0].mxu0
        %1921 = vmatprep.mubr.bf16.mxu0 0
        %1922 = vmatmul.mubr.bf16.gmra.mrb[0].mxu0 %v1787
        %v1923 = vpop.f32.mrb[0].mxu0
        %v1924 = vadd.f32 %v1619, %v1923
        %v1925 = vpop.f32.mrb[0].mxu0
        %v1926 = vpop.f32.mrb[0].mxu0
        %v1927 = vadd.f32 %v1619, %v1926
        %v1928 = vpop.f32.mrb[0].mxu0
        %1929 = vmatprep.mubr.bf16.mxu0 0
        %1930 = vmatmul.mubr.bf16.gmra.mrb[0].mxu0 %v1788
        %v1931 = vpop.f32.mrb[0].mxu0
        %v1932 = vadd.f32 %v1619, %v1931
        %v1933 = vpop.f32.mrb[0].mxu0
        %v1934 = vpop.f32.mrb[0].mxu0
        %v1935 = vadd.f32 %v1619, %v1934
        %v1936 = vpop.f32.mrb[0].mxu0
        %1937 = vmatprep.mubr.bf16.mxu0 0
        %1938 = vmatmul.mubr.bf16.gmra.mrb[0].mxu0 %v1789
        %v1939 = vpop.f32.mrb[0].mxu0
        %v1940 = vadd.f32 %v1619, %v1939
        %v1941 = vpop.f32.mrb[0].mxu0
        %v1942 = vpop.f32.mrb[0].mxu0
        %v1943 = vadd.f32 %v1619, %v1942
        %v1944 = vpop.f32.mrb[0].mxu0
        %1945 = vmatprep.mubr.bf16.mxu0 0
        %1946 = vmatmul.mubr.bf16.gmra.mrb[0].mxu0 %v1790
        %v1947 = vpop.f32.mrb[0].mxu0
        %v1948 = vadd.f32 %v1619, %v1947
        %v1949 = vpop.f32.mrb[0].mxu0
        %v1950 = vpop.f32.mrb[0].mxu0
        %v1951 = vadd.f32 %v1619, %v1950
        %v1952 = vpop.f32.mrb[0].mxu0
        %1953 = vmatprep.mubr.bf16.mxu0 0
        %1954 = vmatmul.mubr.bf16.gmra.mrb[0].mxu0 %v1791
        %v1955 = vpop.f32.mrb[0].mxu0
        %v1956 = vadd.f32 %v1619, %v1955
        %v1957 = vpop.f32.mrb[0].mxu0
        %v1958 = vpop.f32.mrb[0].mxu0
        %v1959 = vadd.f32 %v1619, %v1958
        %v1960 = vpop.f32.mrb[0].mxu0
        %1961 = vmatprep.mubr.bf16.mxu0 0
        %1962 = vmatmul.mubr.bf16.gmra.mrb[0].mxu0 %v1792
        %v1963 = vpop.f32.mrb[0].mxu0
        %v1964 = vadd.f32 %v1619, %v1963
        %v1965 = vpop.f32.mrb[0].mxu0
        %v1966 = vpop.f32.mrb[0].mxu0
        %v1967 = vadd.f32 %v1619, %v1966
        %v1968 = vpop.f32.mrb[0].mxu0
        %1969 = vmatprep.mubr.bf16.mxu0 0
        %1970 = vmatmul.mubr.bf16.gmra.mrb[0].mxu0 %v1793
        %v1971 = vpop.f32.mrb[0].mxu0
        %v1972 = vadd.f32 %v1619, %v1971
        %v1973 = vpop.f32.mrb[0].mxu0
        %v1974 = vpop.f32.mrb[0].mxu0
        %v1975 = vadd.f32 %v1619, %v1974
        %v1976 = vpop.f32.mrb[0].mxu0
        %1977 = vmatprep.mubr.bf16.mxu0 0
        %1978 = vmatmul.mubr.bf16.gmra.mrb[0].mxu0 %v1794
        %v1979 = vpop.f32.mrb[0].mxu0
        %v1980 = vadd.f32 %v1619, %v1979
        %v1981 = vpop.f32.mrb[0].mxu0
        %v1982 = vpop.f32.mrb[0].mxu0
        %v1983 = vadd.f32 %v1619, %v1982
        %v1984 = vpop.f32.mrb[0].mxu0
        %1985 = vmatprep.mubr.bf16.mxu0 0
        %1986 = vmatmul.mubr.bf16.gmra.mrb[0].mxu0 %v1795
        %v1987 = vpop.f32.mrb[0].mxu0
        %v1988 = vadd.f32 %v1619, %v1987
        %v1989 = vpop.f32.mrb[0].mxu0
        %v1990 = vpop.f32.mrb[0].mxu0
        %v1991 = vadd.f32 %v1619, %v1990
        %v1992 = vpop.f32.mrb[0].mxu0
        %1993 = vmatprep.mubr.bf16.mxu0 0
        %1994 = vmatmul.mubr.bf16.gmra.mrb[0].mxu0 %v1796
        %v1995 = vpop.f32.mrb[0].mxu0
        %v1996 = vadd.f32 %v1619, %v1995
        %v1997 = vpop.f32.mrb[0].mxu0
        %v1998 = vpop.f32.mrb[0].mxu0
        %v1999 = vadd.f32 %v1619, %v1998
        %v2000 = vpop.f32.mrb[0].mxu0
        %2001 = vmatprep.mubr.bf16.mxu0 0
        %2002 = vmatmul.mubr.bf16.gmra.mrb[0].mxu0 %v1797
        %v2003 = vpop.f32.mrb[0].mxu0
        %v2004 = vadd.f32 %v1619, %v2003
        %v2005 = vpop.f32.mrb[0].mxu0
        %v2006 = vpop.f32.mrb[0].mxu0
        %v2007 = vadd.f32 %v1619, %v2006
        %v2008 = vpop.f32.mrb[0].mxu0
        %2009 = vmatprep.mubr.bf16.mxu0 0
        %2010 = vmatmul.mubr.bf16.gmra.mrb[0].mxu0 %v1798
        %v2011 = vpop.f32.mrb[0].mxu0
        %v2012 = vadd.f32 %v1619, %v2011
        %v2013 = vpop.f32.mrb[0].mxu0
        %v2014 = vpop.f32.mrb[0].mxu0
        %v2015 = vadd.f32 %v1619, %v2014
        %v2016 = vpop.f32.mrb[0].mxu0
        %2017 = vmatprep.mubr.bf16.mxu0 0
        %2018 = vmatmul.mubr.bf16.gmra.mrb[0].mxu0 %v1799
        %v2019 = vpop.f32.mrb[0].mxu0
        %v2020 = vadd.f32 %v1619, %v2019
        %v2021 = vpop.f32.mrb[0].mxu0
        %v2022 = vpop.f32.mrb[0].mxu0
        %v2023 = vadd.f32 %v1619, %v2022
        %v2024 = vpop.f32.mrb[0].mxu0
        %2025 = vdwg.mxu0
        %v2026 = vmax.f32 %v1900, 0.0
        %v2027 = vmax.f32 %v1903, 0.0
        %v2028 = vmax.f32 %v1908, 0.0
        %v2029 = vmax.f32 %v1911, 0.0
        %v2030 = vmax.f32 %v1916, 0.0
        %v2031 = vmax.f32 %v1919, 0.0
        %v2032 = vmax.f32 %v1924, 0.0
        %v2033 = vmax.f32 %v1927, 0.0
        %v2034 = vmax.f32 %v1932, 0.0
        %v2035 = vmax.f32 %v1935, 0.0
        %v2036 = vmax.f32 %v1940, 0.0
        %v2037 = vmax.f32 %v1943, 0.0
        %v2038 = vmax.f32 %v1948, 0.0
        %v2039 = vmax.f32 %v1951, 0.0
        %v2040 = vmax.f32 %v1956, 0.0
        %v2041 = vmax.f32 %v1959, 0.0
        %v2042 = vmax.f32 %v1964, 0.0
        %v2043 = vmax.f32 %v1967, 0.0
        %v2044 = vmax.f32 %v1972, 0.0
        %v2045 = vmax.f32 %v1975, 0.0
        %v2046 = vmax.f32 %v1980, 0.0
        %v2047 = vmax.f32 %v1983, 0.0
        %v2048 = vmax.f32 %v1988, 0.0
        %v2049 = vmax.f32 %v1991, 0.0
        %v2050 = vmax.f32 %v1996, 0.0
        %v2051 = vmax.f32 %v1999, 0.0
        %v2052 = vmax.f32 %v2004, 0.0
        %v2053 = vmax.f32 %v2007, 0.0
        %v2054 = vmax.f32 %v2012, 0.0
        %v2055 = vmax.f32 %v2015, 0.0
        %v2056 = vmax.f32 %v2020, 0.0
        %v2057 = vmax.f32 %v2023, 0.0
        %v2058 = vpack.c.bf16 %v2027, %v2026
        %v2059 = vpack.c.bf16 %v2029, %v2028
        %v2060 = vpack.c.bf16 %v2031, %v2030
        %v2061 = vpack.c.bf16 %v2033, %v2032
        %v2062 = vpack.c.bf16 %v2035, %v2034
        %v2063 = vpack.c.bf16 %v2037, %v2036
        %v2064 = vpack.c.bf16 %v2039, %v2038
        %v2065 = vpack.c.bf16 %v2041, %v2040
        %v2066 = vpack.c.bf16 %v2043, %v2042
        %v2067 = vpack.c.bf16 %v2045, %v2044
        %v2068 = vpack.c.bf16 %v2047, %v2046
        %v2069 = vpack.c.bf16 %v2049, %v2048
        %v2070 = vpack.c.bf16 %v2051, %v2050
        %v2071 = vpack.c.bf16 %v2053, %v2052
        %v2072 = vpack.c.bf16 %v2055, %v2054
        %v2073 = vpack.c.bf16 %v2057, %v2056
        %s2074 = scalar_lea.vmem [#allocation8], 256
        %v2075 = vld [vmem:[%s2074] sm:$0xf]
        %v2076 = vld [vmem:[%s2074 + $0x4] sm:$0xf]
        %v2077 = vld [vmem:[%s2074 + $0x8] sm:$0xf]
        %v2078 = vld [vmem:[%s2074 + $0xc] sm:$0xf]
        %v2079 = vld [vmem:[%s2074 + $0x10] sm:$0xf]
        %v2080 = vld [vmem:[%s2074 + $0x14] sm:$0xf]
        %v2081 = vld [vmem:[%s2074 + $0x18] sm:$0xf]
        %v2082 = vld [vmem:[%s2074 + $0x1c] sm:$0xf]
        %v2083 = vld [vmem:[%s2074 + $0x20] sm:$0xf]
        %v2084 = vld [vmem:[%s2074 + $0x24] sm:$0xf]
        %v2085 = vld [vmem:[%s2074 + $0x28] sm:$0xf]
        %v2086 = vld [vmem:[%s2074 + $0x2c] sm:$0xf]
        %v2087 = vld [vmem:[%s2074 + $0x30] sm:$0xf]
        %v2088 = vld [vmem:[%s2074 + $0x34] sm:$0xf]
        %v2089 = vld [vmem:[%s2074 + $0x38] sm:$0xf]
        %v2090 = vld [vmem:[%s2074 + $0x3c] sm:$0xf]
        %v2107 = vunpack.c.l.b16 %v2075
        %v2108 = vunpack.c.l.b16 %v2076
        %v2109 = vunpack.c.l.b16 %v2077
        %v2110 = vunpack.c.l.b16 %v2078
        %v2111 = vunpack.c.l.b16 %v2079
        %v2112 = vunpack.c.l.b16 %v2080
        %v2113 = vunpack.c.l.b16 %v2081
        %v2114 = vunpack.c.l.b16 %v2082
        %v2115 = vunpack.c.l.b16 %v2083
        %v2116 = vunpack.c.l.b16 %v2084
        %v2117 = vunpack.c.l.b16 %v2085
        %v2118 = vunpack.c.l.b16 %v2086
        %v2119 = vunpack.c.l.b16 %v2087
        %v2120 = vunpack.c.l.b16 %v2088
        %v2121 = vunpack.c.l.b16 %v2089
        %v2122 = vunpack.c.l.b16 %v2090
        %v2123 = vpack.c.b16 %v2108, %v2107
        %v2124 = vpack.c.b16 %v2110, %v2109
        %v2125 = vpack.c.b16 %v2112, %v2111
        %v2126 = vpack.c.b16 %v2114, %v2113
        %v2127 = vpack.c.b16 %v2116, %v2115
        %v2128 = vpack.c.b16 %v2118, %v2117
        %v2129 = vpack.c.b16 %v2120, %v2119
        %v2130 = vpack.c.b16 %v2122, %v2121
        %2139 = vmatprep.subr.bf16.mxu0 0
        %2140 = vmatpush1.bf16.msra.mxu0 %v2123
        %2141 = vmatprep.subr.bf16.mxu0 0
        %2142 = vmatpush1.bf16.msra.mxu0 %v2124
        %2143 = vmatprep.subr.bf16.mxu0 0
        %2144 = vmatpush1.bf16.msra.mxu0 %v2125
        %2145 = vmatprep.subr.bf16.mxu0 0
        %2146 = vmatpush1.bf16.msra.mxu0 %v2126
        %2147 = vmatprep.subr.bf16.mxu0 0
        %2148 = vmatpush1.bf16.msra.mxu0 %v2127
        %2149 = vmatprep.subr.bf16.mxu0 0
        %2150 = vmatpush1.bf16.msra.mxu0 %v2128
        %2151 = vmatprep.subr.bf16.mxu0 0
        %2152 = vmatpush1.bf16.msra.mxu0 %v2129
        %2153 = vmatprep.subr.bf16.mxu0 0
        %2154 = vmatpush1.bf16.msra.mxu0 %v2130
        %2155 = vmatprep.subr.bf16.mxu0 0
        %2156 = vmatpush1.bf16.msra.mxu0 0
        %2157 = vmatprep.subr.bf16.mxu0 0
        %2158 = vmatpush1.bf16.msra.mxu0 0
        %2159 = vmatprep.subr.bf16.mxu0 0
        %2160 = vmatpush1.bf16.msra.mxu0 0
        %2161 = vmatprep.subr.bf16.mxu0 0
        %2162 = vmatpush1.bf16.msra.mxu0 0
        %2163 = vmatprep.subr.bf16.mxu0 0
        %2164 = vmatpush1.bf16.msra.mxu0 0
        %2165 = vmatprep.subr.bf16.mxu0 0
        %2166 = vmatpush1.bf16.msra.mxu0 0
        %2167 = vmatprep.subr.bf16.mxu0 0
        %2168 = vmatpush1.bf16.msra.mxu0 0
        %2169 = vmatprep.subr.bf16.mxu0 0
        %2170 = vmatpush1.bf16.msra.mxu0 0
        %2171 = vmatprep.mubr.bf16.mxu0 0
        %2172 = vmatmul.mubr.bf16.gmra.mrb[0].mxu0 %v2058
        %v2173 = vpop.f32.mrb[0].mxu0
        %v2174 = vadd.f32 %v1620, %v2173
        %v2175 = vpop.f32.mrb[0].mxu0
        %v2176 = vpop.f32.mrb[0].mxu0
        %v2177 = vadd.f32 %v1620, %v2176
        %v2178 = vpop.f32.mrb[0].mxu0
        %2179 = vmatprep.mubr.bf16.mxu0 0
        %2180 = vmatmul.mubr.bf16.gmra.mrb[0].mxu0 %v2059
        %v2181 = vpop.f32.mrb[0].mxu0
        %v2182 = vadd.f32 %v1620, %v2181
        %v2183 = vpop.f32.mrb[0].mxu0
        %v2184 = vpop.f32.mrb[0].mxu0
        %v2185 = vadd.f32 %v1620, %v2184
        %v2186 = vpop.f32.mrb[0].mxu0
        %2187 = vmatprep.mubr.bf16.mxu0 0
        %2188 = vmatmul.mubr.bf16.gmra.mrb[0].mxu0 %v2060
        %v2189 = vpop.f32.mrb[0].mxu0
        %v2190 = vadd.f32 %v1620, %v2189
        %v2191 = vpop.f32.mrb[0].mxu0
        %v2192 = vpop.f32.mrb[0].mxu0
        %v2193 = vadd.f32 %v1620, %v2192
        %v2194 = vpop.f32.mrb[0].mxu0
        %2195 = vmatprep.mubr.bf16.mxu0 0
        %2196 = vmatmul.mubr.bf16.gmra.mrb[0].mxu0 %v2061
        %v2197 = vpop.f32.mrb[0].mxu0
        %v2198 = vadd.f32 %v1620, %v2197
        %v2199 = vpop.f32.mrb[0].mxu0
        %v2200 = vpop.f32.mrb[0].mxu0
        %v2201 = vadd.f32 %v1620, %v2200
        %v2202 = vpop.f32.mrb[0].mxu0
        %2203 = vmatprep.mubr.bf16.mxu0 0
        %2204 = vmatmul.mubr.bf16.gmra.mrb[0].mxu0 %v2062
        %v2205 = vpop.f32.mrb[0].mxu0
        %v2206 = vadd.f32 %v1620, %v2205
        %v2207 = vpop.f32.mrb[0].mxu0
        %v2208 = vpop.f32.mrb[0].mxu0
        %v2209 = vadd.f32 %v1620, %v2208
        %v2210 = vpop.f32.mrb[0].mxu0
        %2211 = vmatprep.mubr.bf16.mxu0 0
        %2212 = vmatmul.mubr.bf16.gmra.mrb[0].mxu0 %v2063
        %v2213 = vpop.f32.mrb[0].mxu0
        %v2214 = vadd.f32 %v1620, %v2213
        %v2215 = vpop.f32.mrb[0].mxu0
        %v2216 = vpop.f32.mrb[0].mxu0
        %v2217 = vadd.f32 %v1620, %v2216
        %v2218 = vpop.f32.mrb[0].mxu0
        %2219 = vmatprep.mubr.bf16.mxu0 0
        %2220 = vmatmul.mubr.bf16.gmra.mrb[0].mxu0 %v2064
        %v2221 = vpop.f32.mrb[0].mxu0
        %v2222 = vadd.f32 %v1620, %v2221
        %v2223 = vpop.f32.mrb[0].mxu0
        %v2224 = vpop.f32.mrb[0].mxu0
        %v2225 = vadd.f32 %v1620, %v2224
        %v2226 = vpop.f32.mrb[0].mxu0
        %2227 = vmatprep.mubr.bf16.mxu0 0
        %2228 = vmatmul.mubr.bf16.gmra.mrb[0].mxu0 %v2065
        %v2229 = vpop.f32.mrb[0].mxu0
        %v2230 = vadd.f32 %v1620, %v2229
        %v2231 = vpop.f32.mrb[0].mxu0
        %v2232 = vpop.f32.mrb[0].mxu0
        %v2233 = vadd.f32 %v1620, %v2232
        %v2234 = vpop.f32.mrb[0].mxu0
        %2235 = vmatprep.mubr.bf16.mxu0 0
        %2236 = vmatmul.mubr.bf16.gmra.mrb[0].mxu0 %v2066
        %v2237 = vpop.f32.mrb[0].mxu0
        %v2238 = vadd.f32 %v1620, %v2237
        %v2239 = vpop.f32.mrb[0].mxu0
        %v2240 = vpop.f32.mrb[0].mxu0
        %v2241 = vadd.f32 %v1620, %v2240
        %v2242 = vpop.f32.mrb[0].mxu0
        %2243 = vmatprep.mubr.bf16.mxu0 0
        %2244 = vmatmul.mubr.bf16.gmra.mrb[0].mxu0 %v2067
        %v2245 = vpop.f32.mrb[0].mxu0
        %v2246 = vadd.f32 %v1620, %v2245
        %v2247 = vpop.f32.mrb[0].mxu0
        %v2248 = vpop.f32.mrb[0].mxu0
        %v2249 = vadd.f32 %v1620, %v2248
        %v2250 = vpop.f32.mrb[0].mxu0
        %2251 = vmatprep.mubr.bf16.mxu0 0
        %2252 = vmatmul.mubr.bf16.gmra.mrb[0].mxu0 %v2068
        %v2253 = vpop.f32.mrb[0].mxu0
        %v2254 = vadd.f32 %v1620, %v2253
        %v2255 = vpop.f32.mrb[0].mxu0
        %v2256 = vpop.f32.mrb[0].mxu0
        %v2257 = vadd.f32 %v1620, %v2256
        %v2258 = vpop.f32.mrb[0].mxu0
        %2259 = vmatprep.mubr.bf16.mxu0 0
        %2260 = vmatmul.mubr.bf16.gmra.mrb[0].mxu0 %v2069
        %v2261 = vpop.f32.mrb[0].mxu0
        %v2262 = vadd.f32 %v1620, %v2261
        %v2263 = vpop.f32.mrb[0].mxu0
        %v2264 = vpop.f32.mrb[0].mxu0
        %v2265 = vadd.f32 %v1620, %v2264
        %v2266 = vpop.f32.mrb[0].mxu0
        %2267 = vmatprep.mubr.bf16.mxu0 0
        %2268 = vmatmul.mubr.bf16.gmra.mrb[0].mxu0 %v2070
        %v2269 = vpop.f32.mrb[0].mxu0
        %v2270 = vadd.f32 %v1620, %v2269
        %v2271 = vpop.f32.mrb[0].mxu0
        %v2272 = vpop.f32.mrb[0].mxu0
        %v2273 = vadd.f32 %v1620, %v2272
        %v2274 = vpop.f32.mrb[0].mxu0
        %2275 = vmatprep.mubr.bf16.mxu0 0
        %2276 = vmatmul.mubr.bf16.gmra.mrb[0].mxu0 %v2071
        %v2277 = vpop.f32.mrb[0].mxu0
        %v2278 = vadd.f32 %v1620, %v2277
        %v2279 = vpop.f32.mrb[0].mxu0
        %v2280 = vpop.f32.mrb[0].mxu0
        %v2281 = vadd.f32 %v1620, %v2280
        %v2282 = vpop.f32.mrb[0].mxu0
        %2283 = vmatprep.mubr.bf16.mxu0 0
        %2284 = vmatmul.mubr.bf16.gmra.mrb[0].mxu0 %v2072
        %v2285 = vpop.f32.mrb[0].mxu0
        %v2286 = vadd.f32 %v1620, %v2285
        %v2287 = vpop.f32.mrb[0].mxu0
        %v2288 = vpop.f32.mrb[0].mxu0
        %v2289 = vadd.f32 %v1620, %v2288
        %v2290 = vpop.f32.mrb[0].mxu0
        %2291 = vmatprep.mubr.bf16.mxu0 0
        %2292 = vmatmul.mubr.bf16.gmra.mrb[0].mxu0 %v2073
        %v2293 = vpop.f32.mrb[0].mxu0
        %v2294 = vadd.f32 %v1620, %v2293
        %v2295 = vpop.f32.mrb[0].mxu0
        %v2296 = vpop.f32.mrb[0].mxu0
        %v2297 = vadd.f32 %v1620, %v2296
        %v2298 = vpop.f32.mrb[0].mxu0
        %2299 = vdwg.mxu0
        %v2300 = vmax.f32 %v2174, 0.0
        %v2301 = vmax.f32 %v2177, 0.0
        %v2302 = vmax.f32 %v2182, 0.0
        %v2303 = vmax.f32 %v2185, 0.0
        %v2304 = vmax.f32 %v2190, 0.0
        %v2305 = vmax.f32 %v2193, 0.0
        %v2306 = vmax.f32 %v2198, 0.0
        %v2307 = vmax.f32 %v2201, 0.0
        %v2308 = vmax.f32 %v2206, 0.0
        %v2309 = vmax.f32 %v2209, 0.0
        %v2310 = vmax.f32 %v2214, 0.0
        %v2311 = vmax.f32 %v2217, 0.0
        %v2312 = vmax.f32 %v2222, 0.0
        %v2313 = vmax.f32 %v2225, 0.0
        %v2314 = vmax.f32 %v2230, 0.0
        %v2315 = vmax.f32 %v2233, 0.0
        %v2316 = vmax.f32 %v2238, 0.0
        %v2317 = vmax.f32 %v2241, 0.0
        %v2318 = vmax.f32 %v2246, 0.0
        %v2319 = vmax.f32 %v2249, 0.0
        %v2320 = vmax.f32 %v2254, 0.0
        %v2321 = vmax.f32 %v2257, 0.0
        %v2322 = vmax.f32 %v2262, 0.0
        %v2323 = vmax.f32 %v2265, 0.0
        %v2324 = vmax.f32 %v2270, 0.0
        %v2325 = vmax.f32 %v2273, 0.0
        %v2326 = vmax.f32 %v2278, 0.0
        %v2327 = vmax.f32 %v2281, 0.0
        %v2328 = vmax.f32 %v2286, 0.0
        %v2329 = vmax.f32 %v2289, 0.0
        %v2330 = vmax.f32 %v2294, 0.0
        %v2331 = vmax.f32 %v2297, 0.0
        %v2332 = vadd.f32 %v2300, %v2301
        %v2333 = vadd.f32 %v2332, %v2302
        %v2334 = vadd.f32 %v2333, %v2303
        %v2335 = vadd.f32 %v2334, %v2304
        %v2336 = vadd.f32 %v2335, %v2305
        %v2337 = vadd.f32 %v2336, %v2306
        %v2338 = vadd.f32 %v2337, %v2307
        %v2339 = vadd.f32 %v2338, %v2308
        %v2340 = vadd.f32 %v2339, %v2309
        %v2341 = vadd.f32 %v2340, %v2310
        %v2342 = vadd.f32 %v2341, %v2311
        %v2343 = vadd.f32 %v2342, %v2312
        %v2344 = vadd.f32 %v2343, %v2313
        %v2345 = vadd.f32 %v2344, %v2314
        %v2346 = vadd.f32 %v2345, %v2315
        %v2347 = vadd.f32 %v2346, %v2316
        %v2348 = vadd.f32 %v2347, %v2317
        %v2349 = vadd.f32 %v2348, %v2318
        %v2350 = vadd.f32 %v2349, %v2319
        %v2351 = vadd.f32 %v2350, %v2320
        %v2352 = vadd.f32 %v2351, %v2321
        %v2353 = vadd.f32 %v2352, %v2322
        %v2354 = vadd.f32 %v2353, %v2323
        %v2355 = vadd.f32 %v2354, %v2324
        %v2356 = vadd.f32 %v2355, %v2325
        %v2357 = vadd.f32 %v2356, %v2326
        %v2358 = vadd.f32 %v2357, %v2327
        %v2359 = vadd.f32 %v2358, %v2328
        %v2360 = vadd.f32 %v2359, %v2329
        %v2361 = vadd.f32 %v2360, %v2330
        %v2362 = vadd.f32 %v2361, %v2331
        %v2363 = vrot.slane %v2362, 4
        %v2364 = vadd.f32 %v2362, %v2363
        %v2365 = vrot.slane %v2364, 2
        %v2366 = vadd.f32 %v2364, %v2365
        %v2367 = vrot.slane %v2366, 1
        %v2368 = vadd.f32 %v2366, %v2367
        %v2369 = vmul.f32 %v2300, %v2300
        %v2370 = vmul.f32 %v2301, %v2301
        %v2371 = vmul.f32 %v2302, %v2302
        %v2372 = vmul.f32 %v2303, %v2303
        %v2373 = vmul.f32 %v2304, %v2304
        %v2374 = vmul.f32 %v2305, %v2305
        %v2375 = vmul.f32 %v2306, %v2306
        %v2376 = vmul.f32 %v2307, %v2307
        %v2377 = vmul.f32 %v2308, %v2308
        %v2378 = vmul.f32 %v2309, %v2309
        %v2379 = vmul.f32 %v2310, %v2310
        %v2380 = vmul.f32 %v2311, %v2311
        %v2381 = vmul.f32 %v2312, %v2312
        %v2382 = vmul.f32 %v2313, %v2313
        %v2383 = vmul.f32 %v2314, %v2314
        %v2384 = vmul.f32 %v2315, %v2315
        %v2385 = vmul.f32 %v2316, %v2316
        %v2386 = vmul.f32 %v2317, %v2317
        %v2387 = vmul.f32 %v2318, %v2318
        %v2388 = vmul.f32 %v2319, %v2319
        %v2389 = vmul.f32 %v2320, %v2320
        %v2390 = vmul.f32 %v2321, %v2321
        %v2391 = vmul.f32 %v2322, %v2322
        %v2392 = vmul.f32 %v2323, %v2323
        %v2393 = vmul.f32 %v2324, %v2324
        %v2394 = vmul.f32 %v2325, %v2325
        %v2395 = vmul.f32 %v2326, %v2326
        %v2396 = vmul.f32 %v2327, %v2327
        %v2397 = vmul.f32 %v2328, %v2328
        %v2398 = vmul.f32 %v2329, %v2329
        %v2399 = vmul.f32 %v2330, %v2330
        %v2400 = vmul.f32 %v2331, %v2331
        %v2401 = vadd.f32 %v2369, %v2370
        %v2402 = vadd.f32 %v2401, %v2371
        %v2403 = vadd.f32 %v2402, %v2372
        %v2404 = vadd.f32 %v2403, %v2373
        %v2405 = vadd.f32 %v2404, %v2374
        %v2406 = vadd.f32 %v2405, %v2375
        %v2407 = vadd.f32 %v2406, %v2376
        %v2408 = vadd.f32 %v2407, %v2377
        %v2409 = vadd.f32 %v2408, %v2378
        %v2410 = vadd.f32 %v2409, %v2379
        %v2411 = vadd.f32 %v2410, %v2380
        %v2412 = vadd.f32 %v2411, %v2381
        %v2413 = vadd.f32 %v2412, %v2382
        %v2414 = vadd.f32 %v2413, %v2383
        %v2415 = vadd.f32 %v2414, %v2384
        %v2416 = vadd.f32 %v2415, %v2385
        %v2417 = vadd.f32 %v2416, %v2386
        %v2418 = vadd.f32 %v2417, %v2387
        %v2419 = vadd.f32 %v2418, %v2388
        %v2420 = vadd.f32 %v2419, %v2389
        %v2421 = vadd.f32 %v2420, %v2390
        %v2422 = vadd.f32 %v2421, %v2391
        %v2423 = vadd.f32 %v2422, %v2392
        %v2424 = vadd.f32 %v2423, %v2393
        %v2425 = vadd.f32 %v2424, %v2394
        %v2426 = vadd.f32 %v2425, %v2395
        %v2427 = vadd.f32 %v2426, %v2396
        %v2428 = vadd.f32 %v2427, %v2397
        %v2429 = vadd.f32 %v2428, %v2398
        %v2430 = vadd.f32 %v2429, %v2399
        %v2431 = vadd.f32 %v2430, %v2400
        %v2432 = vrot.slane %v2431, 4
        %v2433 = vadd.f32 %v2431, %v2432
        %v2434 = vrot.slane %v2433, 2
        %v2435 = vadd.f32 %v2433, %v2434
        %v2436 = vrot.slane %v2435, 1
        %v2437 = vadd.f32 %v2435, %v2436
        %v2438 = vmul.f32 %v2368, 0.00390625
        %v2439 = vmul.f32 %v2437, 0.00390625
        %v2440 = vmul.f32 %v2438, %v2438
        %v2441 = vsub.f32 %v2439, %v2440
        %v2442 = vmax.f32 %v2441, 0.0
        %v2443 = vadd.f32 %v2442, 1e-05
        %v2444 = vrsqrt.pop %v2443
        %v2445 = vmul.f32 %v2444, %v1621
        %v2446 = vmul.f32 %v2438, %v2445
        %v2447 = vsub.f32 %v1622, %v2446
        %v2448 = vmul.f32 %v2300, %v2445
        %v2449 = vmul.f32 %v2301, %v2445
        %v2450 = vmul.f32 %v2302, %v2445
        %v2451 = vmul.f32 %v2303, %v2445
        %v2452 = vmul.f32 %v2304, %v2445
        %v2453 = vmul.f32 %v2305, %v2445
        %v2454 = vmul.f32 %v2306, %v2445
        %v2455 = vmul.f32 %v2307, %v2445
        %v2456 = vmul.f32 %v2308, %v2445
        %v2457 = vmul.f32 %v2309, %v2445
        %v2458 = vmul.f32 %v2310, %v2445
        %v2459 = vmul.f32 %v2311, %v2445
        %v2460 = vmul.f32 %v2312, %v2445
        %v2461 = vmul.f32 %v2313, %v2445
        %v2462 = vmul.f32 %v2314, %v2445
        %v2463 = vmul.f32 %v2315, %v2445
        %v2464 = vmul.f32 %v2316, %v2445
        %v2465 = vmul.f32 %v2317, %v2445
        %v2466 = vmul.f32 %v2318, %v2445
        %v2467 = vmul.f32 %v2319, %v2445
        %v2468 = vmul.f32 %v2320, %v2445
        %v2469 = vmul.f32 %v2321, %v2445
        %v2470 = vmul.f32 %v2322, %v2445
        %v2471 = vmul.f32 %v2323, %v2445
        %v2472 = vmul.f32 %v2324, %v2445
        %v2473 = vmul.f32 %v2325, %v2445
        %v2474 = vmul.f32 %v2326, %v2445
        %v2475 = vmul.f32 %v2327, %v2445
        %v2476 = vmul.f32 %v2328, %v2445
        %v2477 = vmul.f32 %v2329, %v2445
        %v2478 = vmul.f32 %v2330, %v2445
        %v2479 = vmul.f32 %v2331, %v2445
        %v2480 = vadd.f32 %v2448, %v2447
        %v2481 = vadd.f32 %v2449, %v2447
        %v2482 = vadd.f32 %v2450, %v2447
        %v2483 = vadd.f32 %v2451, %v2447
        %v2484 = vadd.f32 %v2452, %v2447
        %v2485 = vadd.f32 %v2453, %v2447
        %v2486 = vadd.f32 %v2454, %v2447
        %v2487 = vadd.f32 %v2455, %v2447
        %v2488 = vadd.f32 %v2456, %v2447
        %v2489 = vadd.f32 %v2457, %v2447
        %v2490 = vadd.f32 %v2458, %v2447
        %v2491 = vadd.f32 %v2459, %v2447
        %v2492 = vadd.f32 %v2460, %v2447
        %v2493 = vadd.f32 %v2461, %v2447
        %v2494 = vadd.f32 %v2462, %v2447
        %v2495 = vadd.f32 %v2463, %v2447
        %v2496 = vadd.f32 %v2464, %v2447
        %v2497 = vadd.f32 %v2465, %v2447
        %v2498 = vadd.f32 %v2466, %v2447
        %v2499 = vadd.f32 %v2467, %v2447
        %v2500 = vadd.f32 %v2468, %v2447
        %v2501 = vadd.f32 %v2469, %v2447
        %v2502 = vadd.f32 %v2470, %v2447
        %v2503 = vadd.f32 %v2471, %v2447
        %v2504 = vadd.f32 %v2472, %v2447
        %v2505 = vadd.f32 %v2473, %v2447
        %v2506 = vadd.f32 %v2474, %v2447
        %v2507 = vadd.f32 %v2475, %v2447
        %v2508 = vadd.f32 %v2476, %v2447
        %v2509 = vadd.f32 %v2477, %v2447
        %v2510 = vadd.f32 %v2478, %v2447
        %v2511 = vadd.f32 %v2479, %v2447
        %v2512 = vpack.c.bf16 %v2481, %v2480
        %v2513 = vpack.c.bf16 %v2483, %v2482
        %v2514 = vpack.c.bf16 %v2485, %v2484
        %v2515 = vpack.c.bf16 %v2487, %v2486
        %v2516 = vpack.c.bf16 %v2489, %v2488
        %v2517 = vpack.c.bf16 %v2491, %v2490
        %v2518 = vpack.c.bf16 %v2493, %v2492
        %v2519 = vpack.c.bf16 %v2495, %v2494
        %v2520 = vpack.c.bf16 %v2497, %v2496
        %v2521 = vpack.c.bf16 %v2499, %v2498
        %v2522 = vpack.c.bf16 %v2501, %v2500
        %v2523 = vpack.c.bf16 %v2503, %v2502
        %v2524 = vpack.c.bf16 %v2505, %v2504
        %v2525 = vpack.c.bf16 %v2507, %v2506
        %v2526 = vpack.c.bf16 %v2509, %v2508
        %v2527 = vpack.c.bf16 %v2511, %v2510
        %2528 = vmatprep.subr.bf16.mxu0 0
        %2529 = vmatpush1.bf16.msra.mxu0 %v2512
        %2530 = vmatprep.subr.bf16.mxu0 0
        %2531 = vmatpush1.bf16.msra.mxu0 %v2513
        %2532 = vmatprep.subr.bf16.mxu0 0
        %2533 = vmatpush1.bf16.msra.mxu0 %v2514
        %2534 = vmatprep.subr.bf16.mxu0 0
        %2535 = vmatpush1.bf16.msra.mxu0 %v2515
        %2536 = vmatprep.subr.bf16.mxu0 0
        %2537 = vmatpush1.bf16.msra.mxu0 %v2516
        %2538 = vmatprep.subr.bf16.mxu0 0
        %2539 = vmatpush1.bf16.msra.mxu0 %v2517
        %2540 = vmatprep.subr.bf16.mxu0 0
        %2541 = vmatpush1.bf16.msra.mxu0 %v2518
        %2542 = vmatprep.subr.bf16.mxu0 0
        %2543 = vmatpush1.bf16.msra.mxu0 %v2519
        %2544 = vmatprep.subr.bf16.mxu0 0
        %2545 = vmatpush1.bf16.msra.mxu0 %v2520
        %2546 = vmatprep.subr.bf16.mxu0 0
        %2547 = vmatpush1.bf16.msra.mxu0 %v2521
        %2548 = vmatprep.subr.bf16.mxu0 0
        %2549 = vmatpush1.bf16.msra.mxu0 %v2522
        %2550 = vmatprep.subr.bf16.mxu0 0
        %2551 = vmatpush1.bf16.msra.mxu0 %v2523
        %2552 = vmatprep.subr.bf16.mxu0 0
        %2553 = vmatpush1.bf16.msra.mxu0 %v2524
        %2554 = vmatprep.subr.bf16.mxu0 0
        %2555 = vmatpush1.bf16.msra.mxu0 %v2525
        %2556 = vmatprep.subr.bf16.mxu0 0
        %2557 = vmatpush1.bf16.msra.mxu0 %v2526
        %2558 = vmatprep.subr.bf16.mxu0 0
        %2559 = vmatpush1.bf16.msra.mxu0 %v2527
        %2560 = vmatprep.mubr.bf16.mxu0 %v1543
        %2561 = vmatmul.mubr.bf16.gmra.mrb[0].mxu0 %v1542
        %v2562 = vpop.f32.mrb[0].mxu0
        %v2563 = vadd.f32 0.0, %v2562
        %v2564 = vpop.f32.mrb[0].mxu0
        %v2565 = vpop.f32.mrb[0].mxu0
        %v2566 = vpop.f32.mrb[0].mxu0
        %2567 = vdwg.mxu0
        %v2568 = vpack.c.bf16 %v2563, %v2563
        %s2569 = scalar_lea.vmem [#allocation10], 192
        %v2570 = vld [vmem:[%s2569] sm:$0xff]
        %v2571 = vld [vmem:[%s2569 + $0x8] sm:$0xf]
        %v2572 = vld [vmem:[%s2569 + $0xc] sm:$0xff]
        %v2573 = vld [vmem:[%s2569 + $0x14] sm:$0xf]
        %v2574 = vld [vmem:[%s2569 + $0x18] sm:$0xff]
        %v2575 = vld [vmem:[%s2569 + $0x20] sm:$0xf]
        %v2576 = vld [vmem:[%s2569 + $0x24] sm:$0xff]
        %v2577 = vld [vmem:[%s2569 + $0x2c] sm:$0xf]
        %v2578 = vld [vmem:[%s2569 + $0x30] sm:$0xff]
        %v2579 = vld [vmem:[%s2569 + $0x38] sm:$0xf]
        %v2580 = vld [vmem:[%s2569 + $0x3c] sm:$0xff]
        %v2581 = vld [vmem:[%s2569 + $0x44] sm:$0xf]
        %v2582 = vld [vmem:[%s2569 + $0x48] sm:$0xff]
        %v2583 = vld [vmem:[%s2569 + $0x50] sm:$0xf]
        %v2584 = vld [vmem:[%s2569 + $0x54] sm:$0xff]
        %v2585 = vld [vmem:[%s2569 + $0x5c] sm:$0xf]
        %v2586 = vld [vmem:[%s2569 + $0x60] sm:$0xff]
        %v2587 = vld [vmem:[%s2569 + $0x68] sm:$0xf]
        %v2588 = vld [vmem:[%s2569 + $0x6c] sm:$0xff]
        %v2589 = vld [vmem:[%s2569 + $0x74] sm:$0xf]
        %v2590 = vld [vmem:[%s2569 + $0x78] sm:$0xff]
        %v2591 = vld [vmem:[%s2569 + $0x80] sm:$0xf]
        %v2592 = vld [vmem:[%s2569 + $0x84] sm:$0xff]
        %v2593 = vld [vmem:[%s2569 + $0x8c] sm:$0xf]
        %v2594 = vld [vmem:[%s2569 + $0x90] sm:$0xff]
        %v2595 = vld [vmem:[%s2569 + $0x98] sm:$0xf]
        %v2596 = vld [vmem:[%s2569 + $0x9c] sm:$0xff]
        %v2597 = vld [vmem:[%s2569 + $0xa4] sm:$0xf]
        %v2598 = vld [vmem:[%s2569 + $0xa8] sm:$0xff]
        %v2599 = vld [vmem:[%s2569 + $0xb0] sm:$0xf]
        %v2600 = vld [vmem:[%s2569 + $0xb4] sm:$0xff]
        %v2601 = vld [vmem:[%s2569 + $0xbc] sm:$0xf]
        %v2634 = vunpack.c.l.b16 %v2570
        %v2635 = vunpack.c.h.b16 %v2570
        %v2636 = vunpack.c.l.b16 %v2571
        %v2637 = vunpack.c.l.b16 %v2572
        %v2638 = vunpack.c.h.b16 %v2572
        %v2639 = vunpack.c.l.b16 %v2573
        %v2640 = vunpack.c.l.b16 %v2574
        %v2641 = vunpack.c.h.b16 %v2574
        %v2642 = vunpack.c.l.b16 %v2575
        %v2643 = vunpack.c.l.b16 %v2576
        %v2644 = vunpack.c.h.b16 %v2576
        %v2645 = vunpack.c.l.b16 %v2577
        %v2646 = vunpack.c.l.b16 %v2578
        %v2647 = vunpack.c.h.b16 %v2578
        %v2648 = vunpack.c.l.b16 %v2579
        %v2649 = vunpack.c.l.b16 %v2580
        %v2650 = vunpack.c.h.b16 %v2580
        %v2651 = vunpack.c.l.b16 %v2581
        %v2652 = vunpack.c.l.b16 %v2582
        %v2653 = vunpack.c.h.b16 %v2582
        %v2654 = vunpack.c.l.b16 %v2583
        %v2655 = vunpack.c.l.b16 %v2584
        %v2656 = vunpack.c.h.b16 %v2584
        %v2657 = vunpack.c.l.b16 %v2585
        %v2658 = vunpack.c.l.b16 %v2586
        %v2659 = vunpack.c.h.b16 %v2586
        %v2660 = vunpack.c.l.b16 %v2587
        %v2661 = vunpack.c.l.b16 %v2588
        %v2662 = vunpack.c.h.b16 %v2588
        %v2663 = vunpack.c.l.b16 %v2589
        %v2664 = vunpack.c.l.b16 %v2590
        %v2665 = vunpack.c.h.b16 %v2590
        %v2666 = vunpack.c.l.b16 %v2591
        %v2667 = vunpack.c.l.b16 %v2592
        %v2668 = vunpack.c.h.b16 %v2592
        %v2669 = vunpack.c.l.b16 %v2593
        %v2670 = vunpack.c.l.b16 %v2594
        %v2671 = vunpack.c.h.b16 %v2594
        %v2672 = vunpack.c.l.b16 %v2595
        %v2673 = vunpack.c.l.b16 %v2596
        %v2674 = vunpack.c.h.b16 %v2596
        %v2675 = vunpack.c.l.b16 %v2597
        %v2676 = vunpack.c.l.b16 %v2598
        %v2677 = vunpack.c.h.b16 %v2598
        %v2678 = vunpack.c.l.b16 %v2599
        %v2679 = vunpack.c.l.b16 %v2600
        %v2680 = vunpack.c.h.b16 %v2600
        %v2681 = vunpack.c.l.b16 %v2601
        %v2682 = vpack.c.b16 %v2637, %v2634
        %v2683 = vpack.c.b16 %v2638, %v2635
        %v2684 = vpack.c.b16 %v2639, %v2636
        %v2685 = vpack.c.b16 %v2643, %v2640
        %v2686 = vpack.c.b16 %v2644, %v2641
        %v2687 = vpack.c.b16 %v2645, %v2642
        %v2688 = vpack.c.b16 %v2649, %v2646
        %v2689 = vpack.c.b16 %v2650, %v2647
        %v2690 = vpack.c.b16 %v2651, %v2648
        %v2691 = vpack.c.b16 %v2655, %v2652
        %v2692 = vpack.c.b16 %v2656, %v2653
        %v2693 = vpack.c.b16 %v2657, %v2654
        %v2694 = vpack.c.b16 %v2661, %v2658
        %v2695 = vpack.c.b16 %v2662, %v2659
        %v2696 = vpack.c.b16 %v2663, %v2660
        %v2697 = vpack.c.b16 %v2667, %v2664
        %v2698 = vpack.c.b16 %v2668, %v2665
        %v2699 = vpack.c.b16 %v2669, %v2666
        %v2700 = vpack.c.b16 %v2673, %v2670
        %v2701 = vpack.c.b16 %v2674, %v2671
        %v2702 = vpack.c.b16 %v2675, %v2672
        %v2703 = vpack.c.b16 %v2679, %v2676
        %v2704 = vpack.c.b16 %v2680, %v2677
        %v2705 = vpack.c.b16 %v2681, %v2678
        %2730 = vmatprep.subr.bf16.mxu0 %v2683
        %2731 = vmatpush1.bf16.msra.mxu0 %v2682
        %2732 = vmatprep.subr.bf16.mxu0 %v2686
        %2733 = vmatpush1.bf16.msra.mxu0 %v2685
        %2734 = vmatprep.subr.bf16.mxu0 %v2689
        %2735 = vmatpush1.bf16.msra.mxu0 %v2688
        %2736 = vmatprep.subr.bf16.mxu0 %v2692
        %2737 = vmatpush1.bf16.msra.mxu0 %v2691
        %2738 = vmatprep.subr.bf16.mxu0 %v2695
        %2739 = vmatpush1.bf16.msra.mxu0 %v2694
        %2740 = vmatprep.subr.bf16.mxu0 %v2698
        %2741 = vmatpush1.bf16.msra.mxu0 %v2697
        %2742 = vmatprep.subr.bf16.mxu0 %v2701
        %2743 = vmatpush1.bf16.msra.mxu0 %v2700
        %2744 = vmatprep.subr.bf16.mxu0 %v2704
        %2745 = vmatpush1.bf16.msra.mxu0 %v2703
        %2746 = vmatprep.subr.bf16.mxu0 0
        %2747 = vmatpush1.bf16.msra.mxu0 0
        %2748 = vmatprep.subr.bf16.mxu0 0
        %2749 = vmatpush1.bf16.msra.mxu0 0
        %2750 = vmatprep.subr.bf16.mxu0 0
        %2751 = vmatpush1.bf16.msra.mxu0 0
        %2752 = vmatprep.subr.bf16.mxu0 0
        %2753 = vmatpush1.bf16.msra.mxu0 0
        %2754 = vmatprep.subr.bf16.mxu0 0
        %2755 = vmatpush1.bf16.msra.mxu0 0
        %2756 = vmatprep.subr.bf16.mxu0 0
        %2757 = vmatpush1.bf16.msra.mxu0 0
        %2758 = vmatprep.subr.bf16.mxu0 0
        %2759 = vmatpush1.bf16.msra.mxu0 0
        %2760 = vmatprep.subr.bf16.mxu0 0
        %2761 = vmatpush1.bf16.msra.mxu0 0
        %2762 = vmatprep.mubr.bf16.mxu0 0
        %2763 = vmatmul.mubr.bf16.gmra.mrb[0].mxu0 %v2568
        %v2764 = vpop.f32.mrb[0].mxu0
        %v2765 = vadd.f32 0.0, %v2764
        %v2766 = vpop.f32.mrb[0].mxu0
        %v2767 = vadd.f32 0.0, %v2766
        %v2768 = vpop.f32.mrb[0].mxu0
        %v2769 = vpop.f32.mrb[0].mxu0
        %2770 = vdwg.mxu0
        %2771 = vmatprep.subr.bf16.mxu0 0
        %2772 = vmatpush1.bf16.msra.mxu0 %v2684
        %2773 = vmatprep.subr.bf16.mxu0 0
        %2774 = vmatpush1.bf16.msra.mxu0 %v2687
        %2775 = vmatprep.subr.bf16.mxu0 0
        %2776 = vmatpush1.bf16.msra.mxu0 %v2690
        %2777 = vmatprep.subr.bf16.mxu0 0
        %2778 = vmatpush1.bf16.msra.mxu0 %v2693
        %2779 = vmatprep.subr.bf16.mxu0 0
        %2780 = vmatpush1.bf16.msra.mxu0 %v2696
        %2781 = vmatprep.subr.bf16.mxu0 0
        %2782 = vmatpush1.bf16.msra.mxu0 %v2699
        %2783 = vmatprep.subr.bf16.mxu0 0
        %2784 = vmatpush1.bf16.msra.mxu0 %v2702
        %2785 = vmatprep.subr.bf16.mxu0 0
        %2786 = vmatpush1.bf16.msra.mxu0 %v2705
        %2787 = vmatprep.subr.bf16.mxu0 0
        %2788 = vmatpush1.bf16.msra.mxu0 0
        %2789 = vmatprep.subr.bf16.mxu0 0
        %2790 = vmatpush1.bf16.msra.mxu0 0
        %2791 = vmatprep.subr.bf16.mxu0 0
        %2792 = vmatpush1.bf16.msra.mxu0 0
        %2793 = vmatprep.subr.bf16.mxu0 0
        %2794 = vmatpush1.bf16.msra.mxu0 0
        %2795 = vmatprep.subr.bf16.mxu0 0
        %2796 = vmatpush1.bf16.msra.mxu0 0
        %2797 = vmatprep.subr.bf16.mxu0 0
        %2798 = vmatpush1.bf16.msra.mxu0 0
        %2799 = vmatprep.subr.bf16.mxu0 0
        %2800 = vmatpush1.bf16.msra.mxu0 0
        %2801 = vmatprep.subr.bf16.mxu0 0
        %2802 = vmatpush1.bf16.msra.mxu0 0
        %2803 = vmatprep.mubr.bf16.mxu0 0
        %2804 = vmatmul.mubr.bf16.gmra.mrb[0].mxu0 %v2568
        %v2805 = vpop.f32.mrb[0].mxu0
        %v2806 = vadd.f32 0.0, %v2805
        %v2807 = vpop.f32.mrb[0].mxu0
        %v2808 = vpop.f32.mrb[0].mxu0
        %v2809 = vpop.f32.mrb[0].mxu0
        %2810 = vdwg.mxu0
        %v2843 = vunpack.c.l.b16 %v1587
        %v2844 = vunpack.c.h.b16 %v1587
        %v2845 = vunpack.c.l.b16 %v1588
        %v2846 = vunpack.c.l.b16 %v1589
        %v2847 = vunpack.c.h.b16 %v1589
        %v2848 = vunpack.c.l.b16 %v1590
        %v2849 = vunpack.c.l.b16 %v1591
        %v2850 = vunpack.c.h.b16 %v1591
        %v2851 = vunpack.c.l.b16 %v1592
        %v2852 = vunpack.c.l.b16 %v1593
        %v2853 = vunpack.c.h.b16 %v1593
        %v2854 = vunpack.c.l.b16 %v1594
        %v2855 = vunpack.c.l.b16 %v1595
        %v2856 = vunpack.c.h.b16 %v1595
        %v2857 = vunpack.c.l.b16 %v1596
        %v2858 = vunpack.c.l.b16 %v1597
        %v2859 = vunpack.c.h.b16 %v1597
        %v2860 = vunpack.c.l.b16 %v1598
        %v2861 = vunpack.c.l.b16 %v1599
        %v2862 = vunpack.c.h.b16 %v1599
        %v2863 = vunpack.c.l.b16 %v1600
        %v2864 = vunpack.c.l.b16 %v1601
        %v2865 = vunpack.c.h.b16 %v1601
        %v2866 = vunpack.c.l.b16 %v1602
        %v2867 = vunpack.c.l.b16 %v1603
        %v2868 = vunpack.c.h.b16 %v1603
        %v2869 = vunpack.c.l.b16 %v1604
        %v2870 = vunpack.c.l.b16 %v1605
        %v2871 = vunpack.c.h.b16 %v1605
        %v2872 = vunpack.c.l.b16 %v1606
        %v2873 = vunpack.c.l.b16 %v1607
        %v2874 = vunpack.c.h.b16 %v1607
        %v2875 = vunpack.c.l.b16 %v1608
        %v2876 = vunpack.c.l.b16 %v1609
        %v2877 = vunpack.c.h.b16 %v1609
        %v2878 = vunpack.c.l.b16 %v1610
        %v2879 = vunpack.c.l.b16 %v1611
        %v2880 = vunpack.c.h.b16 %v1611
        %v2881 = vunpack.c.l.b16 %v1612
        %v2882 = vunpack.c.l.b16 %v1613
        %v2883 = vunpack.c.h.b16 %v1613
        %v2884 = vunpack.c.l.b16 %v1614
        %v2885 = vunpack.c.l.b16 %v1615
        %v2886 = vunpack.c.h.b16 %v1615
        %v2887 = vunpack.c.l.b16 %v1616
        %v2888 = vunpack.c.l.b16 %v1617
        %v2889 = vunpack.c.h.b16 %v1617
        %v2890 = vunpack.c.l.b16 %v1618
        %v2891 = vpack.c.b16 %v2846, %v2843
        %v2892 = vpack.c.b16 %v2847, %v2844
        %v2893 = vpack.c.b16 %v2848, %v2845
        %v2894 = vpack.c.b16 %v2852, %v2849
        %v2895 = vpack.c.b16 %v2853, %v2850
        %v2896 = vpack.c.b16 %v2854, %v2851
        %v2897 = vpack.c.b16 %v2858, %v2855
        %v2898 = vpack.c.b16 %v2859, %v2856
        %v2899 = vpack.c.b16 %v2860, %v2857
        %v2900 = vpack.c.b16 %v2864, %v2861
        %v2901 = vpack.c.b16 %v2865, %v2862
        %v2902 = vpack.c.b16 %v2866, %v2863
        %v2903 = vpack.c.b16 %v2870, %v2867
        %v2904 = vpack.c.b16 %v2871, %v2868
        %v2905 = vpack.c.b16 %v2872, %v2869
        %v2906 = vpack.c.b16 %v2876, %v2873
        %v2907 = vpack.c.b16 %v2877, %v2874
        %v2908 = vpack.c.b16 %v2878, %v2875
        %v2909 = vpack.c.b16 %v2882, %v2879
        %v2910 = vpack.c.b16 %v2883, %v2880
        %v2911 = vpack.c.b16 %v2884, %v2881
        %v2912 = vpack.c.b16 %v2888, %v2885
        %v2913 = vpack.c.b16 %v2889, %v2886
        %v2914 = vpack.c.b16 %v2890, %v2887
        %2939 = vmatprep.subr.bf16.mxu0 %v2892
        %2940 = vmatpush1.bf16.msra.mxu0 %v2891
        %2941 = vmatprep.subr.bf16.mxu0 %v2895
        %2942 = vmatpush1.bf16.msra.mxu0 %v2894
        %2943 = vmatprep.subr.bf16.mxu0 %v2898
        %2944 = vmatpush1.bf16.msra.mxu0 %v2897
        %2945 = vmatprep.subr.bf16.mxu0 %v2901
        %2946 = vmatpush1.bf16.msra.mxu0 %v2900
        %2947 = vmatprep.subr.bf16.mxu0 %v2904
        %2948 = vmatpush1.bf16.msra.mxu0 %v2903
        %2949 = vmatprep.subr.bf16.mxu0 %v2907
        %2950 = vmatpush1.bf16.msra.mxu0 %v2906
        %2951 = vmatprep.subr.bf16.mxu0 %v2910
        %2952 = vmatpush1.bf16.msra.mxu0 %v2909
        %2953 = vmatprep.subr.bf16.mxu0 %v2913
        %2954 = vmatpush1.bf16.msra.mxu0 %v2912
        %2955 = vmatprep.subr.bf16.mxu0 0
        %2956 = vmatpush1.bf16.msra.mxu0 0
        %2957 = vmatprep.subr.bf16.mxu0 0
        %2958 = vmatpush1.bf16.msra.mxu0 0
        %2959 = vmatprep.subr.bf16.mxu0 0
        %2960 = vmatpush1.bf16.msra.mxu0 0
        %2961 = vmatprep.subr.bf16.mxu0 0
        %2962 = vmatpush1.bf16.msra.mxu0 0
        %2963 = vmatprep.subr.bf16.mxu0 0
        %2964 = vmatpush1.bf16.msra.mxu0 0
        %2965 = vmatprep.subr.bf16.mxu0 0
        %2966 = vmatpush1.bf16.msra.mxu0 0
        %2967 = vmatprep.subr.bf16.mxu0 0
        %2968 = vmatpush1.bf16.msra.mxu0 0
        %2969 = vmatprep.subr.bf16.mxu0 0
        %2970 = vmatpush1.bf16.msra.mxu0 0
        %2971 = vmatprep.mubr.bf16.mxu0 0
        %2972 = vmatmul.mubr.bf16.gmra.mrb[0].mxu0 %v1586
        %v2973 = vpop.f32.mrb[0].mxu0
        %v2974 = vadd.f32 %v2765, %v2973
        %v2975 = vpop.f32.mrb[0].mxu0
        %v2976 = vadd.f32 %v2767, %v2975
        %v2977 = vpop.f32.mrb[0].mxu0
        %v2978 = vpop.f32.mrb[0].mxu0
        %2979 = vdwg.mxu0
        %2980 = vmatprep.subr.bf16.mxu0 0
        %2981 = vmatpush1.bf16.msra.mxu0 %v2893
        %2982 = vmatprep.subr.bf16.mxu0 0
        %2983 = vmatpush1.bf16.msra.mxu0 %v2896
        %2984 = vmatprep.subr.bf16.mxu0 0
        %2985 = vmatpush1.bf16.msra.mxu0 %v2899
        %2986 = vmatprep.subr.bf16.mxu0 0
        %2987 = vmatpush1.bf16.msra.mxu0 %v2902
        %2988 = vmatprep.subr.bf16.mxu0 0
        %2989 = vmatpush1.bf16.msra.mxu0 %v2905
        %2990 = vmatprep.subr.bf16.mxu0 0
        %2991 = vmatpush1.bf16.msra.mxu0 %v2908
        %2992 = vmatprep.subr.bf16.mxu0 0
        %2993 = vmatpush1.bf16.msra.mxu0 %v2911
        %2994 = vmatprep.subr.bf16.mxu0 0
        %2995 = vmatpush1.bf16.msra.mxu0 %v2914
        %2996 = vmatprep.subr.bf16.mxu0 0
        %2997 = vmatpush1.bf16.msra.mxu0 0
        %2998 = vmatprep.subr.bf16.mxu0 0
        %2999 = vmatpush1.bf16.msra.mxu0 0
        %3000 = vmatprep.subr.bf16.mxu0 0
        %3001 = vmatpush1.bf16.msra.mxu0 0
        %3002 = vmatprep.subr.bf16.mxu0 0
        %3003 = vmatpush1.bf16.msra.mxu0 0
        %3004 = vmatprep.subr.bf16.mxu0 0
        %3005 = vmatpush1.bf16.msra.mxu0 0
        %3006 = vmatprep.subr.bf16.mxu0 0
        %3007 = vmatpush1.bf16.msra.mxu0 0
        %3008 = vmatprep.subr.bf16.mxu0 0
        %3009 = vmatpush1.bf16.msra.mxu0 0
        %3010 = vmatprep.subr.bf16.mxu0 0
        %3011 = vmatpush1.bf16.msra.mxu0 0
        %3012 = vmatprep.mubr.bf16.mxu0 0
        %3013 = vmatmul.mubr.bf16.gmra.mrb[0].mxu0 %v1586
        %v3014 = vpop.f32.mrb[0].mxu0
        %v3015 = vadd.f32 %v2806, %v3014
        %v3016 = vpop.f32.mrb[0].mxu0
        %v3017 = vpop.f32.mrb[0].mxu0
        %v3018 = vpop.f32.mrb[0].mxu0
        %3019 = vdwg.mxu0
        %v3020 = vld [vmem:[#allocation11 + $0x18] ss:$0 sm:$0xff]
        %v3021 = vld [vmem:[#allocation11 + $0x19] ss:$0 sm:$0xff]
        %v3022 = vld [vmem:[#allocation11 + $0x1a] ss:$0 sm:$0xff]
        %v3023 = vld [vmem:[#allocation11 + $0x1b] ss:$0 sm:$0xff]
        %3024 = vmatprep.subr.bf16.mxu0 0
        %3025 = vmatpush1.bf16.msra.mxu0 %v2512
        %3026 = vmatprep.subr.bf16.mxu0 0
        %3027 = vmatpush1.bf16.msra.mxu0 %v2513
        %3028 = vmatprep.subr.bf16.mxu0 0
        %3029 = vmatpush1.bf16.msra.mxu0 %v2514
        %3030 = vmatprep.subr.bf16.mxu0 0
        %3031 = vmatpush1.bf16.msra.mxu0 %v2515
        %3032 = vmatprep.subr.bf16.mxu0 0
        %3033 = vmatpush1.bf16.msra.mxu0 %v2516
        %3034 = vmatprep.subr.bf16.mxu0 0
        %3035 = vmatpush1.bf16.msra.mxu0 %v2517
        %3036 = vmatprep.subr.bf16.mxu0 0
        %3037 = vmatpush1.bf16.msra.mxu0 %v2518
        %3038 = vmatprep.subr.bf16.mxu0 0
        %3039 = vmatpush1.bf16.msra.mxu0 %v2519
        %3040 = vmatprep.subr.bf16.mxu0 0
        %3041 = vmatpush1.bf16.msra.mxu0 %v2520
        %3042 = vmatprep.subr.bf16.mxu0 0
        %3043 = vmatpush1.bf16.msra.mxu0 %v2521
        %3044 = vmatprep.subr.bf16.mxu0 0
        %3045 = vmatpush1.bf16.msra.mxu0 %v2522
        %3046 = vmatprep.subr.bf16.mxu0 0
        %3047 = vmatpush1.bf16.msra.mxu0 %v2523
        %3048 = vmatprep.subr.bf16.mxu0 0
        %3049 = vmatpush1.bf16.msra.mxu0 %v2524
        %3050 = vmatprep.subr.bf16.mxu0 0
        %3051 = vmatpush1.bf16.msra.mxu0 %v2525
        %3052 = vmatprep.subr.bf16.mxu0 0
        %3053 = vmatpush1.bf16.msra.mxu0 %v2526
        %3054 = vmatprep.subr.bf16.mxu0 0
        %3055 = vmatpush1.bf16.msra.mxu0 %v2527
        %3056 = vmatprep.mubr.bf16.mxu0 %v572
        %3057 = vmatmul.mubr.bf16.gmra.mrb[0].mxu0 %v571
        %v3058 = vpop.f32.mrb[0].mxu0
        %v3059 = vadd.f32 0.0, %v3058
        %v3060 = vpop.f32.mrb[0].mxu0
        %v3061 = vpop.f32.mrb[0].mxu0
        %v3062 = vadd.f32 0.0, %v3061
        %v3063 = vpop.f32.mrb[0].mxu0
        %3064 = vmatprep.mubr.bf16.mxu0 %v574
        %3065 = vmatmul.mubr.bf16.gmra.mrb[0].mxu0 %v573
        %v3066 = vpop.f32.mrb[0].mxu0
        %v3067 = vadd.f32 0.0, %v3066
        %v3068 = vpop.f32.mrb[0].mxu0
        %v3069 = vpop.f32.mrb[0].mxu0
        %v3070 = vadd.f32 0.0, %v3069
        %v3071 = vpop.f32.mrb[0].mxu0
        %3072 = vmatprep.mubr.bf16.mxu0 %v576
        %3073 = vmatmul.mubr.bf16.gmra.mrb[0].mxu0 %v575
        %v3074 = vpop.f32.mrb[0].mxu0
        %v3075 = vadd.f32 0.0, %v3074
        %v3076 = vpop.f32.mrb[0].mxu0
        %v3077 = vpop.f32.mrb[0].mxu0
        %v3078 = vadd.f32 0.0, %v3077
        %v3079 = vpop.f32.mrb[0].mxu0
        %3080 = vmatprep.mubr.bf16.mxu0 %v578
        %3081 = vmatmul.mubr.bf16.gmra.mrb[0].mxu0 %v577
        %v3082 = vpop.f32.mrb[0].mxu0
        %v3083 = vadd.f32 0.0, %v3082
        %v3084 = vpop.f32.mrb[0].mxu0
        %v3085 = vpop.f32.mrb[0].mxu0
        %v3086 = vadd.f32 0.0, %v3085
        %v3087 = vpop.f32.mrb[0].mxu0
        %3088 = vmatprep.mubr.bf16.mxu0 %v580
        %3089 = vmatmul.mubr.bf16.gmra.mrb[0].mxu0 %v579
        %v3090 = vpop.f32.mrb[0].mxu0
        %v3091 = vadd.f32 0.0, %v3090
        %v3092 = vpop.f32.mrb[0].mxu0
        %v3093 = vpop.f32.mrb[0].mxu0
        %v3094 = vadd.f32 0.0, %v3093
        %v3095 = vpop.f32.mrb[0].mxu0
        %3096 = vmatprep.mubr.bf16.mxu0 %v582
        %3097 = vmatmul.mubr.bf16.gmra.mrb[0].mxu0 %v581
        %v3098 = vpop.f32.mrb[0].mxu0
        %v3099 = vadd.f32 0.0, %v3098
        %v3100 = vpop.f32.mrb[0].mxu0
        %v3101 = vpop.f32.mrb[0].mxu0
        %v3102 = vadd.f32 0.0, %v3101
        %v3103 = vpop.f32.mrb[0].mxu0
        %3104 = vmatprep.mubr.bf16.mxu0 %v584
        %3105 = vmatmul.mubr.bf16.gmra.mrb[0].mxu0 %v583
        %v3106 = vpop.f32.mrb[0].mxu0
        %v3107 = vadd.f32 0.0, %v3106
        %v3108 = vpop.f32.mrb[0].mxu0
        %v3109 = vpop.f32.mrb[0].mxu0
        %v3110 = vadd.f32 0.0, %v3109
        %v3111 = vpop.f32.mrb[0].mxu0
        %3112 = vmatprep.mubr.bf16.mxu0 %v586
        %3113 = vmatmul.mubr.bf16.gmra.mrb[0].mxu0 %v585
        %v3114 = vpop.f32.mrb[0].mxu0
        %v3115 = vadd.f32 0.0, %v3114
        %v3116 = vpop.f32.mrb[0].mxu0
        %v3117 = vpop.f32.mrb[0].mxu0
        %v3118 = vadd.f32 0.0, %v3117
        %v3119 = vpop.f32.mrb[0].mxu0
        %3120 = vmatprep.mubr.bf16.mxu0 %v588
        %3121 = vmatmul.mubr.bf16.gmra.mrb[0].mxu0 %v587
        %v3122 = vpop.f32.mrb[0].mxu0
        %v3123 = vadd.f32 0.0, %v3122
        %v3124 = vpop.f32.mrb[0].mxu0
        %v3125 = vpop.f32.mrb[0].mxu0
        %v3126 = vadd.f32 0.0, %v3125
        %v3127 = vpop.f32.mrb[0].mxu0
        %3128 = vmatprep.mubr.bf16.mxu0 %v590
        %3129 = vmatmul.mubr.bf16.gmra.mrb[0].mxu0 %v589
        %v3130 = vpop.f32.mrb[0].mxu0
        %v3131 = vadd.f32 0.0, %v3130
        %v3132 = vpop.f32.mrb[0].mxu0
        %v3133 = vpop.f32.mrb[0].mxu0
        %v3134 = vadd.f32 0.0, %v3133
        %v3135 = vpop.f32.mrb[0].mxu0
        %3136 = vmatprep.mubr.bf16.mxu0 %v592
        %3137 = vmatmul.mubr.bf16.gmra.mrb[0].mxu0 %v591
        %v3138 = vpop.f32.mrb[0].mxu0
        %v3139 = vadd.f32 0.0, %v3138
        %v3140 = vpop.f32.mrb[0].mxu0
        %v3141 = vpop.f32.mrb[0].mxu0
        %v3142 = vadd.f32 0.0, %v3141
        %v3143 = vpop.f32.mrb[0].mxu0
        %3144 = vmatprep.mubr.bf16.mxu0 %v594
        %3145 = vmatmul.mubr.bf16.gmra.mrb[0].mxu0 %v593
        %v3146 = vpop.f32.mrb[0].mxu0
        %v3147 = vadd.f32 0.0, %v3146
        %v3148 = vpop.f32.mrb[0].mxu0
        %v3149 = vpop.f32.mrb[0].mxu0
        %v3150 = vadd.f32 0.0, %v3149
        %v3151 = vpop.f32.mrb[0].mxu0
        %3152 = vmatprep.mubr.bf16.mxu0 %v596
        %3153 = vmatmul.mubr.bf16.gmra.mrb[0].mxu0 %v595
        %v3154 = vpop.f32.mrb[0].mxu0
        %v3155 = vadd.f32 0.0, %v3154
        %v3156 = vpop.f32.mrb[0].mxu0
        %v3157 = vpop.f32.mrb[0].mxu0
        %v3158 = vadd.f32 0.0, %v3157
        %v3159 = vpop.f32.mrb[0].mxu0
        %3160 = vmatprep.mubr.bf16.mxu0 %v598
        %3161 = vmatmul.mubr.bf16.gmra.mrb[0].mxu0 %v597
        %v3162 = vpop.f32.mrb[0].mxu0
        %v3163 = vadd.f32 0.0, %v3162
        %v3164 = vpop.f32.mrb[0].mxu0
        %v3165 = vpop.f32.mrb[0].mxu0
        %v3166 = vadd.f32 0.0, %v3165
        %v3167 = vpop.f32.mrb[0].mxu0
        %3168 = vmatprep.mubr.bf16.mxu0 %v600
        %3169 = vmatmul.mubr.bf16.gmra.mrb[0].mxu0 %v599
        %v3170 = vpop.f32.mrb[0].mxu0
        %v3171 = vadd.f32 0.0, %v3170
        %v3172 = vpop.f32.mrb[0].mxu0
        %v3173 = vpop.f32.mrb[0].mxu0
        %v3174 = vadd.f32 0.0, %v3173
        %v3175 = vpop.f32.mrb[0].mxu0
        %3176 = vmatprep.mubr.bf16.mxu0 %v602
        %3177 = vmatmul.mubr.bf16.gmra.mrb[0].mxu0 %v601
        %v3178 = vpop.f32.mrb[0].mxu0
        %v3179 = vadd.f32 0.0, %v3178
        %v3180 = vpop.f32.mrb[0].mxu0
        %v3181 = vpop.f32.mrb[0].mxu0
        %v3182 = vadd.f32 0.0, %v3181
        %v3183 = vpop.f32.mrb[0].mxu0
        %3184 = vdwg.mxu0
        %v3185 = vpack.c.bf16 %v3062, %v3059
        %v3186 = vpack.c.bf16 %v3070, %v3067
        %v3187 = vpack.c.bf16 %v3078, %v3075
        %v3188 = vpack.c.bf16 %v3086, %v3083
        %v3189 = vpack.c.bf16 %v3094, %v3091
        %v3190 = vpack.c.bf16 %v3102, %v3099
        %v3191 = vpack.c.bf16 %v3110, %v3107
        %v3192 = vpack.c.bf16 %v3118, %v3115
        %v3193 = vpack.c.bf16 %v3126, %v3123
        %v3194 = vpack.c.bf16 %v3134, %v3131
        %v3195 = vpack.c.bf16 %v3142, %v3139
        %v3196 = vpack.c.bf16 %v3150, %v3147
        %v3197 = vpack.c.bf16 %v3158, %v3155
        %v3198 = vpack.c.bf16 %v3166, %v3163
        %v3199 = vpack.c.bf16 %v3174, %v3171
        %v3200 = vpack.c.bf16 %v3182, %v3179
        %s3201 = scalar_lea.vmem [#allocation8], 128
        %v3202 = vld [vmem:[%s3201] sm:$0xf]
        %v3203 = vld [vmem:[%s3201 + $0x4] sm:$0xf]
        %v3204 = vld [vmem:[%s3201 + $0x8] sm:$0xf]
        %v3205 = vld [vmem:[%s3201 + $0xc] sm:$0xf]
        %v3206 = vld [vmem:[%s3201 + $0x10] sm:$0xf]
        %v3207 = vld [vmem:[%s3201 + $0x14] sm:$0xf]
        %v3208 = vld [vmem:[%s3201 + $0x18] sm:$0xf]
        %v3209 = vld [vmem:[%s3201 + $0x1c] sm:$0xf]
        %v3210 = vld [vmem:[%s3201 + $0x20] sm:$0xf]
        %v3211 = vld [vmem:[%s3201 + $0x24] sm:$0xf]
        %v3212 = vld [vmem:[%s3201 + $0x28] sm:$0xf]
        %v3213 = vld [vmem:[%s3201 + $0x2c] sm:$0xf]
        %v3214 = vld [vmem:[%s3201 + $0x30] sm:$0xf]
        %v3215 = vld [vmem:[%s3201 + $0x34] sm:$0xf]
        %v3216 = vld [vmem:[%s3201 + $0x38] sm:$0xf]
        %v3217 = vld [vmem:[%s3201 + $0x3c] sm:$0xf]
        %v3234 = vunpack.c.l.b16 %v3202
        %v3235 = vunpack.c.l.b16 %v3203
        %v3236 = vunpack.c.l.b16 %v3204
        %v3237 = vunpack.c.l.b16 %v3205
        %v3238 = vunpack.c.l.b16 %v3206
        %v3239 = vunpack.c.l.b16 %v3207
        %v3240 = vunpack.c.l.b16 %v3208
        %v3241 = vunpack.c.l.b16 %v3209
        %v3242 = vunpack.c.l.b16 %v3210
        %v3243 = vunpack.c.l.b16 %v3211
        %v3244 = vunpack.c.l.b16 %v3212
        %v3245 = vunpack.c.l.b16 %v3213
        %v3246 = vunpack.c.l.b16 %v3214
        %v3247 = vunpack.c.l.b16 %v3215
        %v3248 = vunpack.c.l.b16 %v3216
        %v3249 = vunpack.c.l.b16 %v3217
        %v3250 = vpack.c.b16 %v3235, %v3234
        %v3251 = vpack.c.b16 %v3237, %v3236
        %v3252 = vpack.c.b16 %v3239, %v3238
        %v3253 = vpack.c.b16 %v3241, %v3240
        %v3254 = vpack.c.b16 %v3243, %v3242
        %v3255 = vpack.c.b16 %v3245, %v3244
        %v3256 = vpack.c.b16 %v3247, %v3246
        %v3257 = vpack.c.b16 %v3249, %v3248
        %3266 = vmatprep.subr.bf16.mxu0 0
        %3267 = vmatpush1.bf16.msra.mxu0 %v3250
        %3268 = vmatprep.subr.bf16.mxu0 0
        %3269 = vmatpush1.bf16.msra.mxu0 %v3251
        %3270 = vmatprep.subr.bf16.mxu0 0
        %3271 = vmatpush1.bf16.msra.mxu0 %v3252
        %3272 = vmatprep.subr.bf16.mxu0 0
        %3273 = vmatpush1.bf16.msra.mxu0 %v3253
        %3274 = vmatprep.subr.bf16.mxu0 0
        %3275 = vmatpush1.bf16.msra.mxu0 %v3254
        %3276 = vmatprep.subr.bf16.mxu0 0
        %3277 = vmatpush1.bf16.msra.mxu0 %v3255
        %3278 = vmatprep.subr.bf16.mxu0 0
        %3279 = vmatpush1.bf16.msra.mxu0 %v3256
        %3280 = vmatprep.subr.bf16.mxu0 0
        %3281 = vmatpush1.bf16.msra.mxu0 %v3257
        %3282 = vmatprep.subr.bf16.mxu0 0
        %3283 = vmatpush1.bf16.msra.mxu0 0
        %3284 = vmatprep.subr.bf16.mxu0 0
        %3285 = vmatpush1.bf16.msra.mxu0 0
        %3286 = vmatprep.subr.bf16.mxu0 0
        %3287 = vmatpush1.bf16.msra.mxu0 0
        %3288 = vmatprep.subr.bf16.mxu0 0
        %3289 = vmatpush1.bf16.msra.mxu0 0
        %3290 = vmatprep.subr.bf16.mxu0 0
        %3291 = vmatpush1.bf16.msra.mxu0 0
        %3292 = vmatprep.subr.bf16.mxu0 0
        %3293 = vmatpush1.bf16.msra.mxu0 0
        %3294 = vmatprep.subr.bf16.mxu0 0
        %3295 = vmatpush1.bf16.msra.mxu0 0
        %3296 = vmatprep.subr.bf16.mxu0 0
        %3297 = vmatpush1.bf16.msra.mxu0 0
        %3298 = vmatprep.mubr.bf16.mxu0 0
        %3299 = vmatmul.mubr.bf16.gmra.mrb[0].mxu0 %v3185
        %v3300 = vpop.f32.mrb[0].mxu0
        %v3301 = vadd.f32 %v3020, %v3300
        %v3302 = vpop.f32.mrb[0].mxu0
        %v3303 = vpop.f32.mrb[0].mxu0
        %v3304 = vadd.f32 %v3020, %v3303
        %v3305 = vpop.f32.mrb[0].mxu0
        %3306 = vmatprep.mubr.bf16.mxu0 0
        %3307 = vmatmul.mubr.bf16.gmra.mrb[0].mxu0 %v3186
        %v3308 = vpop.f32.mrb[0].mxu0
        %v3309 = vadd.f32 %v3020, %v3308
        %v3310 = vpop.f32.mrb[0].mxu0
        %v3311 = vpop.f32.mrb[0].mxu0
        %v3312 = vadd.f32 %v3020, %v3311
        %v3313 = vpop.f32.mrb[0].mxu0
        %3314 = vmatprep.mubr.bf16.mxu0 0
        %3315 = vmatmul.mubr.bf16.gmra.mrb[0].mxu0 %v3187
        %v3316 = vpop.f32.mrb[0].mxu0
        %v3317 = vadd.f32 %v3020, %v3316
        %v3318 = vpop.f32.mrb[0].mxu0
        %v3319 = vpop.f32.mrb[0].mxu0
        %v3320 = vadd.f32 %v3020, %v3319
        %v3321 = vpop.f32.mrb[0].mxu0
        %3322 = vmatprep.mubr.bf16.mxu0 0
        %3323 = vmatmul.mubr.bf16.gmra.mrb[0].mxu0 %v3188
        %v3324 = vpop.f32.mrb[0].mxu0
        %v3325 = vadd.f32 %v3020, %v3324
        %v3326 = vpop.f32.mrb[0].mxu0
        %v3327 = vpop.f32.mrb[0].mxu0
        %v3328 = vadd.f32 %v3020, %v3327
        %v3329 = vpop.f32.mrb[0].mxu0
        %3330 = vmatprep.mubr.bf16.mxu0 0
        %3331 = vmatmul.mubr.bf16.gmra.mrb[0].mxu0 %v3189
        %v3332 = vpop.f32.mrb[0].mxu0
        %v3333 = vadd.f32 %v3020, %v3332
        %v3334 = vpop.f32.mrb[0].mxu0
        %v3335 = vpop.f32.mrb[0].mxu0
        %v3336 = vadd.f32 %v3020, %v3335
        %v3337 = vpop.f32.mrb[0].mxu0
        %3338 = vmatprep.mubr.bf16.mxu0 0
        %3339 = vmatmul.mubr.bf16.gmra.mrb[0].mxu0 %v3190
        %v3340 = vpop.f32.mrb[0].mxu0
        %v3341 = vadd.f32 %v3020, %v3340
        %v3342 = vpop.f32.mrb[0].mxu0
        %v3343 = vpop.f32.mrb[0].mxu0
        %v3344 = vadd.f32 %v3020, %v3343
        %v3345 = vpop.f32.mrb[0].mxu0
        %3346 = vmatprep.mubr.bf16.mxu0 0
        %3347 = vmatmul.mubr.bf16.gmra.mrb[0].mxu0 %v3191
        %v3348 = vpop.f32.mrb[0].mxu0
        %v3349 = vadd.f32 %v3020, %v3348
        %v3350 = vpop.f32.mrb[0].mxu0
        %v3351 = vpop.f32.mrb[0].mxu0
        %v3352 = vadd.f32 %v3020, %v3351
        %v3353 = vpop.f32.mrb[0].mxu0
        %3354 = vmatprep.mubr.bf16.mxu0 0
        %3355 = vmatmul.mubr.bf16.gmra.mrb[0].mxu0 %v3192
        %v3356 = vpop.f32.mrb[0].mxu0
        %v3357 = vadd.f32 %v3020, %v3356
        %v3358 = vpop.f32.mrb[0].mxu0
        %v3359 = vpop.f32.mrb[0].mxu0
        %v3360 = vadd.f32 %v3020, %v3359
        %v3361 = vpop.f32.mrb[0].mxu0
        %3362 = vmatprep.mubr.bf16.mxu0 0
        %3363 = vmatmul.mubr.bf16.gmra.mrb[0].mxu0 %v3193
        %v3364 = vpop.f32.mrb[0].mxu0
        %v3365 = vadd.f32 %v3020, %v3364
        %v3366 = vpop.f32.mrb[0].mxu0
        %v3367 = vpop.f32.mrb[0].mxu0
        %v3368 = vadd.f32 %v3020, %v3367
        %v3369 = vpop.f32.mrb[0].mxu0
        %3370 = vmatprep.mubr.bf16.mxu0 0
        %3371 = vmatmul.mubr.bf16.gmra.mrb[0].mxu0 %v3194
        %v3372 = vpop.f32.mrb[0].mxu0
        %v3373 = vadd.f32 %v3020, %v3372
        %v3374 = vpop.f32.mrb[0].mxu0
        %v3375 = vpop.f32.mrb[0].mxu0
        %v3376 = vadd.f32 %v3020, %v3375
        %v3377 = vpop.f32.mrb[0].mxu0
        %3378 = vmatprep.mubr.bf16.mxu0 0
        %3379 = vmatmul.mubr.bf16.gmra.mrb[0].mxu0 %v3195
        %v3380 = vpop.f32.mrb[0].mxu0
        %v3381 = vadd.f32 %v3020, %v3380
        %v3382 = vpop.f32.mrb[0].mxu0
        %v3383 = vpop.f32.mrb[0].mxu0
        %v3384 = vadd.f32 %v3020, %v3383
        %v3385 = vpop.f32.mrb[0].mxu0
        %3386 = vmatprep.mubr.bf16.mxu0 0
        %3387 = vmatmul.mubr.bf16.gmra.mrb[0].mxu0 %v3196
        %v3388 = vpop.f32.mrb[0].mxu0
        %v3389 = vadd.f32 %v3020, %v3388
        %v3390 = vpop.f32.mrb[0].mxu0
        %v3391 = vpop.f32.mrb[0].mxu0
        %v3392 = vadd.f32 %v3020, %v3391
        %v3393 = vpop.f32.mrb[0].mxu0
        %3394 = vmatprep.mubr.bf16.mxu0 0
        %3395 = vmatmul.mubr.bf16.gmra.mrb[0].mxu0 %v3197
        %v3396 = vpop.f32.mrb[0].mxu0
        %v3397 = vadd.f32 %v3020, %v3396
        %v3398 = vpop.f32.mrb[0].mxu0
        %v3399 = vpop.f32.mrb[0].mxu0
        %v3400 = vadd.f32 %v3020, %v3399
        %v3401 = vpop.f32.mrb[0].mxu0
        %3402 = vmatprep.mubr.bf16.mxu0 0
        %3403 = vmatmul.mubr.bf16.gmra.mrb[0].mxu0 %v3198
        %v3404 = vpop.f32.mrb[0].mxu0
        %v3405 = vadd.f32 %v3020, %v3404
        %v3406 = vpop.f32.mrb[0].mxu0
        %v3407 = vpop.f32.mrb[0].mxu0
        %v3408 = vadd.f32 %v3020, %v3407
        %v3409 = vpop.f32.mrb[0].mxu0
        %3410 = vmatprep.mubr.bf16.mxu0 0
        %3411 = vmatmul.mubr.bf16.gmra.mrb[0].mxu0 %v3199
        %v3412 = vpop.f32.mrb[0].mxu0
        %v3413 = vadd.f32 %v3020, %v3412
        %v3414 = vpop.f32.mrb[0].mxu0
        %v3415 = vpop.f32.mrb[0].mxu0
        %v3416 = vadd.f32 %v3020, %v3415
        %v3417 = vpop.f32.mrb[0].mxu0
        %3418 = vmatprep.mubr.bf16.mxu0 0
        %3419 = vmatmul.mubr.bf16.gmra.mrb[0].mxu0 %v3200
        %v3420 = vpop.f32.mrb[0].mxu0
        %v3421 = vadd.f32 %v3020, %v3420
        %v3422 = vpop.f32.mrb[0].mxu0
        %v3423 = vpop.f32.mrb[0].mxu0
        %v3424 = vadd.f32 %v3020, %v3423
        %v3425 = vpop.f32.mrb[0].mxu0
        %3426 = vdwg.mxu0
        %v3427 = vmax.f32 %v3301, 0.0
        %v3428 = vmax.f32 %v3304, 0.0
        %v3429 = vmax.f32 %v3309, 0.0
        %v3430 = vmax.f32 %v3312, 0.0
        %v3431 = vmax.f32 %v3317, 0.0
        %v3432 = vmax.f32 %v3320, 0.0
        %v3433 = vmax.f32 %v3325, 0.0
        %v3434 = vmax.f32 %v3328, 0.0
        %v3435 = vmax.f32 %v3333, 0.0
        %v3436 = vmax.f32 %v3336, 0.0
        %v3437 = vmax.f32 %v3341, 0.0
        %v3438 = vmax.f32 %v3344, 0.0
        %v3439 = vmax.f32 %v3349, 0.0
        %v3440 = vmax.f32 %v3352, 0.0
        %v3441 = vmax.f32 %v3357, 0.0
        %v3442 = vmax.f32 %v3360, 0.0
        %v3443 = vmax.f32 %v3365, 0.0
        %v3444 = vmax.f32 %v3368, 0.0
        %v3445 = vmax.f32 %v3373, 0.0
        %v3446 = vmax.f32 %v3376, 0.0
        %v3447 = vmax.f32 %v3381, 0.0
        %v3448 = vmax.f32 %v3384, 0.0
        %v3449 = vmax.f32 %v3389, 0.0
        %v3450 = vmax.f32 %v3392, 0.0
        %v3451 = vmax.f32 %v3397, 0.0
        %v3452 = vmax.f32 %v3400, 0.0
        %v3453 = vmax.f32 %v3405, 0.0
        %v3454 = vmax.f32 %v3408, 0.0
        %v3455 = vmax.f32 %v3413, 0.0
        %v3456 = vmax.f32 %v3416, 0.0
        %v3457 = vmax.f32 %v3421, 0.0
        %v3458 = vmax.f32 %v3424, 0.0
        %v3459 = vpack.c.bf16 %v3428, %v3427
        %v3460 = vpack.c.bf16 %v3430, %v3429
        %v3461 = vpack.c.bf16 %v3432, %v3431
        %v3462 = vpack.c.bf16 %v3434, %v3433
        %v3463 = vpack.c.bf16 %v3436, %v3435
        %v3464 = vpack.c.bf16 %v3438, %v3437
        %v3465 = vpack.c.bf16 %v3440, %v3439
        %v3466 = vpack.c.bf16 %v3442, %v3441
        %v3467 = vpack.c.bf16 %v3444, %v3443
        %v3468 = vpack.c.bf16 %v3446, %v3445
        %v3469 = vpack.c.bf16 %v3448, %v3447
        %v3470 = vpack.c.bf16 %v3450, %v3449
        %v3471 = vpack.c.bf16 %v3452, %v3451
        %v3472 = vpack.c.bf16 %v3454, %v3453
        %v3473 = vpack.c.bf16 %v3456, %v3455
        %v3474 = vpack.c.bf16 %v3458, %v3457
        %s3475 = scalar_lea.vmem [#allocation8], 320
        %v3476 = vld [vmem:[%s3475] sm:$0xf]
        %v3477 = vld [vmem:[%s3475 + $0x4] sm:$0xf]
        %v3478 = vld [vmem:[%s3475 + $0x8] sm:$0xf]
        %v3479 = vld [vmem:[%s3475 + $0xc] sm:$0xf]
        %v3480 = vld [vmem:[%s3475 + $0x10] sm:$0xf]
        %v3481 = vld [vmem:[%s3475 + $0x14] sm:$0xf]
        %v3482 = vld [vmem:[%s3475 + $0x18] sm:$0xf]
        %v3483 = vld [vmem:[%s3475 + $0x1c] sm:$0xf]
        %v3484 = vld [vmem:[%s3475 + $0x20] sm:$0xf]
        %v3485 = vld [vmem:[%s3475 + $0x24] sm:$0xf]
        %v3486 = vld [vmem:[%s3475 + $0x28] sm:$0xf]
        %v3487 = vld [vmem:[%s3475 + $0x2c] sm:$0xf]
        %v3488 = vld [vmem:[%s3475 + $0x30] sm:$0xf]
        %v3489 = vld [vmem:[%s3475 + $0x34] sm:$0xf]
        %v3490 = vld [vmem:[%s3475 + $0x38] sm:$0xf]
        %v3491 = vld [vmem:[%s3475 + $0x3c] sm:$0xf]
        %v3508 = vunpack.c.l.b16 %v3476
        %v3509 = vunpack.c.l.b16 %v3477
        %v3510 = vunpack.c.l.b16 %v3478
        %v3511 = vunpack.c.l.b16 %v3479
        %v3512 = vunpack.c.l.b16 %v3480
        %v3513 = vunpack.c.l.b16 %v3481
        %v3514 = vunpack.c.l.b16 %v3482
        %v3515 = vunpack.c.l.b16 %v3483
        %v3516 = vunpack.c.l.b16 %v3484
        %v3517 = vunpack.c.l.b16 %v3485
        %v3518 = vunpack.c.l.b16 %v3486
        %v3519 = vunpack.c.l.b16 %v3487
        %v3520 = vunpack.c.l.b16 %v3488
        %v3521 = vunpack.c.l.b16 %v3489
        %v3522 = vunpack.c.l.b16 %v3490
        %v3523 = vunpack.c.l.b16 %v3491
        %v3524 = vpack.c.b16 %v3509, %v3508
        %v3525 = vpack.c.b16 %v3511, %v3510
        %v3526 = vpack.c.b16 %v3513, %v3512
        %v3527 = vpack.c.b16 %v3515, %v3514
        %v3528 = vpack.c.b16 %v3517, %v3516
        %v3529 = vpack.c.b16 %v3519, %v3518
        %v3530 = vpack.c.b16 %v3521, %v3520
        %v3531 = vpack.c.b16 %v3523, %v3522
        %3540 = vmatprep.subr.bf16.mxu0 0
        %3541 = vmatpush1.bf16.msra.mxu0 %v3524
        %3542 = vmatprep.subr.bf16.mxu0 0
        %3543 = vmatpush1.bf16.msra.mxu0 %v3525
        %3544 = vmatprep.subr.bf16.mxu0 0
        %3545 = vmatpush1.bf16.msra.mxu0 %v3526
        %3546 = vmatprep.subr.bf16.mxu0 0
        %3547 = vmatpush1.bf16.msra.mxu0 %v3527
        %3548 = vmatprep.subr.bf16.mxu0 0
        %3549 = vmatpush1.bf16.msra.mxu0 %v3528
        %3550 = vmatprep.subr.bf16.mxu0 0
        %3551 = vmatpush1.bf16.msra.mxu0 %v3529
        %3552 = vmatprep.subr.bf16.mxu0 0
        %3553 = vmatpush1.bf16.msra.mxu0 %v3530
        %3554 = vmatprep.subr.bf16.mxu0 0
        %3555 = vmatpush1.bf16.msra.mxu0 %v3531
        %3556 = vmatprep.subr.bf16.mxu0 0
        %3557 = vmatpush1.bf16.msra.mxu0 0
        %3558 = vmatprep.subr.bf16.mxu0 0
        %3559 = vmatpush1.bf16.msra.mxu0 0
        %3560 = vmatprep.subr.bf16.mxu0 0
        %3561 = vmatpush1.bf16.msra.mxu0 0
        %3562 = vmatprep.subr.bf16.mxu0 0
        %3563 = vmatpush1.bf16.msra.mxu0 0
        %3564 = vmatprep.subr.bf16.mxu0 0
        %3565 = vmatpush1.bf16.msra.mxu0 0
        %3566 = vmatprep.subr.bf16.mxu0 0
        %3567 = vmatpush1.bf16.msra.mxu0 0
        %3568 = vmatprep.subr.bf16.mxu0 0
        %3569 = vmatpush1.bf16.msra.mxu0 0
        %3570 = vmatprep.subr.bf16.mxu0 0
        %3571 = vmatpush1.bf16.msra.mxu0 0
        %3572 = vmatprep.mubr.bf16.mxu0 0
        %3573 = vmatmul.mubr.bf16.gmra.mrb[0].mxu0 %v3459
        %v3574 = vpop.f32.mrb[0].mxu0
        %v3575 = vadd.f32 %v3021, %v3574
        %v3576 = vpop.f32.mrb[0].mxu0
        %v3577 = vpop.f32.mrb[0].mxu0
        %v3578 = vadd.f32 %v3021, %v3577
        %v3579 = vpop.f32.mrb[0].mxu0
        %3580 = vmatprep.mubr.bf16.mxu0 0
        %3581 = vmatmul.mubr.bf16.gmra.mrb[0].mxu0 %v3460
        %v3582 = vpop.f32.mrb[0].mxu0
        %v3583 = vadd.f32 %v3021, %v3582
        %v3584 = vpop.f32.mrb[0].mxu0
        %v3585 = vpop.f32.mrb[0].mxu0
        %v3586 = vadd.f32 %v3021, %v3585
        %v3587 = vpop.f32.mrb[0].mxu0
        %3588 = vmatprep.mubr.bf16.mxu0 0
        %3589 = vmatmul.mubr.bf16.gmra.mrb[0].mxu0 %v3461
        %v3590 = vpop.f32.mrb[0].mxu0
        %v3591 = vadd.f32 %v3021, %v3590
        %v3592 = vpop.f32.mrb[0].mxu0
        %v3593 = vpop.f32.mrb[0].mxu0
        %v3594 = vadd.f32 %v3021, %v3593
        %v3595 = vpop.f32.mrb[0].mxu0
        %3596 = vmatprep.mubr.bf16.mxu0 0
        %3597 = vmatmul.mubr.bf16.gmra.mrb[0].mxu0 %v3462
        %v3598 = vpop.f32.mrb[0].mxu0
        %v3599 = vadd.f32 %v3021, %v3598
        %v3600 = vpop.f32.mrb[0].mxu0
        %v3601 = vpop.f32.mrb[0].mxu0
        %v3602 = vadd.f32 %v3021, %v3601
        %v3603 = vpop.f32.mrb[0].mxu0
        %3604 = vmatprep.mubr.bf16.mxu0 0
        %3605 = vmatmul.mubr.bf16.gmra.mrb[0].mxu0 %v3463
        %v3606 = vpop.f32.mrb[0].mxu0
        %v3607 = vadd.f32 %v3021, %v3606
        %v3608 = vpop.f32.mrb[0].mxu0
        %v3609 = vpop.f32.mrb[0].mxu0
        %v3610 = vadd.f32 %v3021, %v3609
        %v3611 = vpop.f32.mrb[0].mxu0
        %3612 = vmatprep.mubr.bf16.mxu0 0
        %3613 = vmatmul.mubr.bf16.gmra.mrb[0].mxu0 %v3464
        %v3614 = vpop.f32.mrb[0].mxu0
        %v3615 = vadd.f32 %v3021, %v3614
        %v3616 = vpop.f32.mrb[0].mxu0
        %v3617 = vpop.f32.mrb[0].mxu0
        %v3618 = vadd.f32 %v3021, %v3617
        %v3619 = vpop.f32.mrb[0].mxu0
        %3620 = vmatprep.mubr.bf16.mxu0 0
        %3621 = vmatmul.mubr.bf16.gmra.mrb[0].mxu0 %v3465
        %v3622 = vpop.f32.mrb[0].mxu0
        %v3623 = vadd.f32 %v3021, %v3622
        %v3624 = vpop.f32.mrb[0].mxu0
        %v3625 = vpop.f32.mrb[0].mxu0
        %v3626 = vadd.f32 %v3021, %v3625
        %v3627 = vpop.f32.mrb[0].mxu0
        %3628 = vmatprep.mubr.bf16.mxu0 0
        %3629 = vmatmul.mubr.bf16.gmra.mrb[0].mxu0 %v3466
        %v3630 = vpop.f32.mrb[0].mxu0
        %v3631 = vadd.f32 %v3021, %v3630
        %v3632 = vpop.f32.mrb[0].mxu0
        %v3633 = vpop.f32.mrb[0].mxu0
        %v3634 = vadd.f32 %v3021, %v3633
        %v3635 = vpop.f32.mrb[0].mxu0
        %3636 = vmatprep.mubr.bf16.mxu0 0
        %3637 = vmatmul.mubr.bf16.gmra.mrb[0].mxu0 %v3467
        %v3638 = vpop.f32.mrb[0].mxu0
        %v3639 = vadd.f32 %v3021, %v3638
        %v3640 = vpop.f32.mrb[0].mxu0
        %v3641 = vpop.f32.mrb[0].mxu0
        %v3642 = vadd.f32 %v3021, %v3641
        %v3643 = vpop.f32.mrb[0].mxu0
        %3644 = vmatprep.mubr.bf16.mxu0 0
        %3645 = vmatmul.mubr.bf16.gmra.mrb[0].mxu0 %v3468
        %v3646 = vpop.f32.mrb[0].mxu0
        %v3647 = vadd.f32 %v3021, %v3646
        %v3648 = vpop.f32.mrb[0].mxu0
        %v3649 = vpop.f32.mrb[0].mxu0
        %v3650 = vadd.f32 %v3021, %v3649
        %v3651 = vpop.f32.mrb[0].mxu0
        %3652 = vmatprep.mubr.bf16.mxu0 0
        %3653 = vmatmul.mubr.bf16.gmra.mrb[0].mxu0 %v3469
        %v3654 = vpop.f32.mrb[0].mxu0
        %v3655 = vadd.f32 %v3021, %v3654
        %v3656 = vpop.f32.mrb[0].mxu0
        %v3657 = vpop.f32.mrb[0].mxu0
        %v3658 = vadd.f32 %v3021, %v3657
        %v3659 = vpop.f32.mrb[0].mxu0
        %3660 = vmatprep.mubr.bf16.mxu0 0
        %3661 = vmatmul.mubr.bf16.gmra.mrb[0].mxu0 %v3470
        %v3662 = vpop.f32.mrb[0].mxu0
        %v3663 = vadd.f32 %v3021, %v3662
        %v3664 = vpop.f32.mrb[0].mxu0
        %v3665 = vpop.f32.mrb[0].mxu0
        %v3666 = vadd.f32 %v3021, %v3665
        %v3667 = vpop.f32.mrb[0].mxu0
        %3668 = vmatprep.mubr.bf16.mxu0 0
        %3669 = vmatmul.mubr.bf16.gmra.mrb[0].mxu0 %v3471
        %v3670 = vpop.f32.mrb[0].mxu0
        %v3671 = vadd.f32 %v3021, %v3670
        %v3672 = vpop.f32.mrb[0].mxu0
        %v3673 = vpop.f32.mrb[0].mxu0
        %v3674 = vadd.f32 %v3021, %v3673
        %v3675 = vpop.f32.mrb[0].mxu0
        %3676 = vmatprep.mubr.bf16.mxu0 0
        %3677 = vmatmul.mubr.bf16.gmra.mrb[0].mxu0 %v3472
        %v3678 = vpop.f32.mrb[0].mxu0
        %v3679 = vadd.f32 %v3021, %v3678
        %v3680 = vpop.f32.mrb[0].mxu0
        %v3681 = vpop.f32.mrb[0].mxu0
        %v3682 = vadd.f32 %v3021, %v3681
        %v3683 = vpop.f32.mrb[0].mxu0
        %3684 = vmatprep.mubr.bf16.mxu0 0
        %3685 = vmatmul.mubr.bf16.gmra.mrb[0].mxu0 %v3473
        %v3686 = vpop.f32.mrb[0].mxu0
        %v3687 = vadd.f32 %v3021, %v3686
        %v3688 = vpop.f32.mrb[0].mxu0
        %v3689 = vpop.f32.mrb[0].mxu0
        %v3690 = vadd.f32 %v3021, %v3689
        %v3691 = vpop.f32.mrb[0].mxu0
        %3692 = vmatprep.mubr.bf16.mxu0 0
        %3693 = vmatmul.mubr.bf16.gmra.mrb[0].mxu0 %v3474
        %v3694 = vpop.f32.mrb[0].mxu0
        %v3695 = vadd.f32 %v3021, %v3694
        %v3696 = vpop.f32.mrb[0].mxu0
        %v3697 = vpop.f32.mrb[0].mxu0
        %v3698 = vadd.f32 %v3021, %v3697
        %v3699 = vpop.f32.mrb[0].mxu0
        %3700 = vdwg.mxu0
        %v3701 = vmax.f32 %v3575, 0.0
        %v3702 = vmax.f32 %v3578, 0.0
        %v3703 = vmax.f32 %v3583, 0.0
        %v3704 = vmax.f32 %v3586, 0.0
        %v3705 = vmax.f32 %v3591, 0.0
        %v3706 = vmax.f32 %v3594, 0.0
        %v3707 = vmax.f32 %v3599, 0.0
        %v3708 = vmax.f32 %v3602, 0.0
        %v3709 = vmax.f32 %v3607, 0.0
        %v3710 = vmax.f32 %v3610, 0.0
        %v3711 = vmax.f32 %v3615, 0.0
        %v3712 = vmax.f32 %v3618, 0.0
        %v3713 = vmax.f32 %v3623, 0.0
        %v3714 = vmax.f32 %v3626, 0.0
        %v3715 = vmax.f32 %v3631, 0.0
        %v3716 = vmax.f32 %v3634, 0.0
        %v3717 = vmax.f32 %v3639, 0.0
        %v3718 = vmax.f32 %v3642, 0.0
        %v3719 = vmax.f32 %v3647, 0.0
        %v3720 = vmax.f32 %v3650, 0.0
        %v3721 = vmax.f32 %v3655, 0.0
        %v3722 = vmax.f32 %v3658, 0.0
        %v3723 = vmax.f32 %v3663, 0.0
        %v3724 = vmax.f32 %v3666, 0.0
        %v3725 = vmax.f32 %v3671, 0.0
        %v3726 = vmax.f32 %v3674, 0.0
        %v3727 = vmax.f32 %v3679, 0.0
        %v3728 = vmax.f32 %v3682, 0.0
        %v3729 = vmax.f32 %v3687, 0.0
        %v3730 = vmax.f32 %v3690, 0.0
        %v3731 = vmax.f32 %v3695, 0.0
        %v3732 = vmax.f32 %v3698, 0.0
        %v3733 = vadd.f32 %v3701, %v3702
        %v3734 = vadd.f32 %v3733, %v3703
        %v3735 = vadd.f32 %v3734, %v3704
        %v3736 = vadd.f32 %v3735, %v3705
        %v3737 = vadd.f32 %v3736, %v3706
        %v3738 = vadd.f32 %v3737, %v3707
        %v3739 = vadd.f32 %v3738, %v3708
        %v3740 = vadd.f32 %v3739, %v3709
        %v3741 = vadd.f32 %v3740, %v3710
        %v3742 = vadd.f32 %v3741, %v3711
        %v3743 = vadd.f32 %v3742, %v3712
        %v3744 = vadd.f32 %v3743, %v3713
        %v3745 = vadd.f32 %v3744, %v3714
        %v3746 = vadd.f32 %v3745, %v3715
        %v3747 = vadd.f32 %v3746, %v3716
        %v3748 = vadd.f32 %v3747, %v3717
        %v3749 = vadd.f32 %v3748, %v3718
        %v3750 = vadd.f32 %v3749, %v3719
        %v3751 = vadd.f32 %v3750, %v3720
        %v3752 = vadd.f32 %v3751, %v3721
        %v3753 = vadd.f32 %v3752, %v3722
        %v3754 = vadd.f32 %v3753, %v3723
        %v3755 = vadd.f32 %v3754, %v3724
        %v3756 = vadd.f32 %v3755, %v3725
        %v3757 = vadd.f32 %v3756, %v3726
        %v3758 = vadd.f32 %v3757, %v3727
        %v3759 = vadd.f32 %v3758, %v3728
        %v3760 = vadd.f32 %v3759, %v3729
        %v3761 = vadd.f32 %v3760, %v3730
        %v3762 = vadd.f32 %v3761, %v3731
        %v3763 = vadd.f32 %v3762, %v3732
        %v3764 = vrot.slane %v3763, 4
        %v3765 = vadd.f32 %v3763, %v3764
        %v3766 = vrot.slane %v3765, 2
        %v3767 = vadd.f32 %v3765, %v3766
        %v3768 = vrot.slane %v3767, 1
        %v3769 = vadd.f32 %v3767, %v3768
        %v3770 = vmul.f32 %v3701, %v3701
        %v3771 = vmul.f32 %v3702, %v3702
        %v3772 = vmul.f32 %v3703, %v3703
        %v3773 = vmul.f32 %v3704, %v3704
        %v3774 = vmul.f32 %v3705, %v3705
        %v3775 = vmul.f32 %v3706, %v3706
        %v3776 = vmul.f32 %v3707, %v3707
        %v3777 = vmul.f32 %v3708, %v3708
        %v3778 = vmul.f32 %v3709, %v3709
        %v3779 = vmul.f32 %v3710, %v3710
        %v3780 = vmul.f32 %v3711, %v3711
        %v3781 = vmul.f32 %v3712, %v3712
        %v3782 = vmul.f32 %v3713, %v3713
        %v3783 = vmul.f32 %v3714, %v3714
        %v3784 = vmul.f32 %v3715, %v3715
        %v3785 = vmul.f32 %v3716, %v3716
        %v3786 = vmul.f32 %v3717, %v3717
        %v3787 = vmul.f32 %v3718, %v3718
        %v3788 = vmul.f32 %v3719, %v3719
        %v3789 = vmul.f32 %v3720, %v3720
        %v3790 = vmul.f32 %v3721, %v3721
        %v3791 = vmul.f32 %v3722, %v3722
        %v3792 = vmul.f32 %v3723, %v3723
        %v3793 = vmul.f32 %v3724, %v3724
        %v3794 = vmul.f32 %v3725, %v3725
        %v3795 = vmul.f32 %v3726, %v3726
        %v3796 = vmul.f32 %v3727, %v3727
        %v3797 = vmul.f32 %v3728, %v3728
        %v3798 = vmul.f32 %v3729, %v3729
        %v3799 = vmul.f32 %v3730, %v3730
        %v3800 = vmul.f32 %v3731, %v3731
        %v3801 = vmul.f32 %v3732, %v3732
        %v3802 = vadd.f32 %v3770, %v3771
        %v3803 = vadd.f32 %v3802, %v3772
        %v3804 = vadd.f32 %v3803, %v3773
        %v3805 = vadd.f32 %v3804, %v3774
        %v3806 = vadd.f32 %v3805, %v3775
        %v3807 = vadd.f32 %v3806, %v3776
        %v3808 = vadd.f32 %v3807, %v3777
        %v3809 = vadd.f32 %v3808, %v3778
        %v3810 = vadd.f32 %v3809, %v3779
        %v3811 = vadd.f32 %v3810, %v3780
        %v3812 = vadd.f32 %v3811, %v3781
        %v3813 = vadd.f32 %v3812, %v3782
        %v3814 = vadd.f32 %v3813, %v3783
        %v3815 = vadd.f32 %v3814, %v3784
        %v3816 = vadd.f32 %v3815, %v3785
        %v3817 = vadd.f32 %v3816, %v3786
        %v3818 = vadd.f32 %v3817, %v3787
        %v3819 = vadd.f32 %v3818, %v3788
        %v3820 = vadd.f32 %v3819, %v3789
        %v3821 = vadd.f32 %v3820, %v3790
        %v3822 = vadd.f32 %v3821, %v3791
        %v3823 = vadd.f32 %v3822, %v3792
        %v3824 = vadd.f32 %v3823, %v3793
        %v3825 = vadd.f32 %v3824, %v3794
        %v3826 = vadd.f32 %v3825, %v3795
        %v3827 = vadd.f32 %v3826, %v3796
        %v3828 = vadd.f32 %v3827, %v3797
        %v3829 = vadd.f32 %v3828, %v3798
        %v3830 = vadd.f32 %v3829, %v3799
        %v3831 = vadd.f32 %v3830, %v3800
        %v3832 = vadd.f32 %v3831, %v3801
        %v3833 = vrot.slane %v3832, 4
        %v3834 = vadd.f32 %v3832, %v3833
        %v3835 = vrot.slane %v3834, 2
        %v3836 = vadd.f32 %v3834, %v3835
        %v3837 = vrot.slane %v3836, 1
        %v3838 = vadd.f32 %v3836, %v3837
        %v3839 = vmul.f32 %v3769, 0.00390625
        %v3840 = vmul.f32 %v3838, 0.00390625
        %v3841 = vmul.f32 %v3839, %v3839
        %v3842 = vsub.f32 %v3840, %v3841
        %v3843 = vmax.f32 %v3842, 0.0
        %v3844 = vadd.f32 %v3843, 1e-05
        %v3845 = vrsqrt.pop %v3844
        %v3846 = vmul.f32 %v3845, %v3022
        %v3847 = vmul.f32 %v3839, %v3846
        %v3848 = vsub.f32 %v3023, %v3847
        %v3849 = vmul.f32 %v3701, %v3846
        %v3850 = vmul.f32 %v3702, %v3846
        %v3851 = vmul.f32 %v3703, %v3846
        %v3852 = vmul.f32 %v3704, %v3846
        %v3853 = vmul.f32 %v3705, %v3846
        %v3854 = vmul.f32 %v3706, %v3846
        %v3855 = vmul.f32 %v3707, %v3846
        %v3856 = vmul.f32 %v3708, %v3846
        %v3857 = vmul.f32 %v3709, %v3846
        %v3858 = vmul.f32 %v3710, %v3846
        %v3859 = vmul.f32 %v3711, %v3846
        %v3860 = vmul.f32 %v3712, %v3846
        %v3861 = vmul.f32 %v3713, %v3846
        %v3862 = vmul.f32 %v3714, %v3846
        %v3863 = vmul.f32 %v3715, %v3846
        %v3864 = vmul.f32 %v3716, %v3846
        %v3865 = vmul.f32 %v3717, %v3846
        %v3866 = vmul.f32 %v3718, %v3846
        %v3867 = vmul.f32 %v3719, %v3846
        %v3868 = vmul.f32 %v3720, %v3846
        %v3869 = vmul.f32 %v3721, %v3846
        %v3870 = vmul.f32 %v3722, %v3846
        %v3871 = vmul.f32 %v3723, %v3846
        %v3872 = vmul.f32 %v3724, %v3846
        %v3873 = vmul.f32 %v3725, %v3846
        %v3874 = vmul.f32 %v3726, %v3846
        %v3875 = vmul.f32 %v3727, %v3846
        %v3876 = vmul.f32 %v3728, %v3846
        %v3877 = vmul.f32 %v3729, %v3846
        %v3878 = vmul.f32 %v3730, %v3846
        %v3879 = vmul.f32 %v3731, %v3846
        %v3880 = vmul.f32 %v3732, %v3846
        %v3881 = vadd.f32 %v3849, %v3848
        %v3882 = vadd.f32 %v3850, %v3848
        %v3883 = vadd.f32 %v3851, %v3848
        %v3884 = vadd.f32 %v3852, %v3848
        %v3885 = vadd.f32 %v3853, %v3848
        %v3886 = vadd.f32 %v3854, %v3848
        %v3887 = vadd.f32 %v3855, %v3848
        %v3888 = vadd.f32 %v3856, %v3848
        %v3889 = vadd.f32 %v3857, %v3848
        %v3890 = vadd.f32 %v3858, %v3848
        %v3891 = vadd.f32 %v3859, %v3848
        %v3892 = vadd.f32 %v3860, %v3848
        %v3893 = vadd.f32 %v3861, %v3848
        %v3894 = vadd.f32 %v3862, %v3848
        %v3895 = vadd.f32 %v3863, %v3848
        %v3896 = vadd.f32 %v3864, %v3848
        %v3897 = vadd.f32 %v3865, %v3848
        %v3898 = vadd.f32 %v3866, %v3848
        %v3899 = vadd.f32 %v3867, %v3848
        %v3900 = vadd.f32 %v3868, %v3848
        %v3901 = vadd.f32 %v3869, %v3848
        %v3902 = vadd.f32 %v3870, %v3848
        %v3903 = vadd.f32 %v3871, %v3848
        %v3904 = vadd.f32 %v3872, %v3848
        %v3905 = vadd.f32 %v3873, %v3848
        %v3906 = vadd.f32 %v3874, %v3848
        %v3907 = vadd.f32 %v3875, %v3848
        %v3908 = vadd.f32 %v3876, %v3848
        %v3909 = vadd.f32 %v3877, %v3848
        %v3910 = vadd.f32 %v3878, %v3848
        %v3911 = vadd.f32 %v3879, %v3848
        %v3912 = vadd.f32 %v3880, %v3848
        %v3913 = vpack.c.bf16 %v3882, %v3881
        %v3914 = vpack.c.bf16 %v3884, %v3883
        %v3915 = vpack.c.bf16 %v3886, %v3885
        %v3916 = vpack.c.bf16 %v3888, %v3887
        %v3917 = vpack.c.bf16 %v3890, %v3889
        %v3918 = vpack.c.bf16 %v3892, %v3891
        %v3919 = vpack.c.bf16 %v3894, %v3893
        %v3920 = vpack.c.bf16 %v3896, %v3895
        %v3921 = vpack.c.bf16 %v3898, %v3897
        %v3922 = vpack.c.bf16 %v3900, %v3899
        %v3923 = vpack.c.bf16 %v3902, %v3901
        %v3924 = vpack.c.bf16 %v3904, %v3903
        %v3925 = vpack.c.bf16 %v3906, %v3905
        %v3926 = vpack.c.bf16 %v3908, %v3907
        %v3927 = vpack.c.bf16 %v3910, %v3909
        %v3928 = vpack.c.bf16 %v3912, %v3911
        %3929 = vmatprep.subr.bf16.mxu0 0
        %3930 = vmatpush1.bf16.msra.mxu0 %v3913
        %3931 = vmatprep.subr.bf16.mxu0 0
        %3932 = vmatpush1.bf16.msra.mxu0 %v3914
        %3933 = vmatprep.subr.bf16.mxu0 0
        %3934 = vmatpush1.bf16.msra.mxu0 %v3915
        %3935 = vmatprep.subr.bf16.mxu0 0
        %3936 = vmatpush1.bf16.msra.mxu0 %v3916
        %3937 = vmatprep.subr.bf16.mxu0 0
        %3938 = vmatpush1.bf16.msra.mxu0 %v3917
        %3939 = vmatprep.subr.bf16.mxu0 0
        %3940 = vmatpush1.bf16.msra.mxu0 %v3918
        %3941 = vmatprep.subr.bf16.mxu0 0
        %3942 = vmatpush1.bf16.msra.mxu0 %v3919
        %3943 = vmatprep.subr.bf16.mxu0 0
        %3944 = vmatpush1.bf16.msra.mxu0 %v3920
        %3945 = vmatprep.subr.bf16.mxu0 0
        %3946 = vmatpush1.bf16.msra.mxu0 %v3921
        %3947 = vmatprep.subr.bf16.mxu0 0
        %3948 = vmatpush1.bf16.msra.mxu0 %v3922
        %3949 = vmatprep.subr.bf16.mxu0 0
        %3950 = vmatpush1.bf16.msra.mxu0 %v3923
        %3951 = vmatprep.subr.bf16.mxu0 0
        %3952 = vmatpush1.bf16.msra.mxu0 %v3924
        %3953 = vmatprep.subr.bf16.mxu0 0
        %3954 = vmatpush1.bf16.msra.mxu0 %v3925
        %3955 = vmatprep.subr.bf16.mxu0 0
        %3956 = vmatpush1.bf16.msra.mxu0 %v3926
        %3957 = vmatprep.subr.bf16.mxu0 0
        %3958 = vmatpush1.bf16.msra.mxu0 %v3927
        %3959 = vmatprep.subr.bf16.mxu0 0
        %3960 = vmatpush1.bf16.msra.mxu0 %v3928
        %3961 = vmatprep.mubr.bf16.mxu0 %v1543
        %3962 = vmatmul.mubr.bf16.gmra.mrb[0].mxu0 %v1542
        %v3963 = vpop.f32.mrb[0].mxu0
        %v3964 = vadd.f32 0.0, %v3963
        %v3965 = vpop.f32.mrb[0].mxu0
        %v3966 = vpop.f32.mrb[0].mxu0
        %v3967 = vpop.f32.mrb[0].mxu0
        %3968 = vdwg.mxu0
        %v3969 = vpack.c.bf16 %v3964, %v3964
        %s3970 = scalar_lea.vmem [#allocation10], 384
        %v3971 = vld [vmem:[%s3970] sm:$0xff]
        %v3972 = vld [vmem:[%s3970 + $0x8] sm:$0xf]
        %v3973 = vld [vmem:[%s3970 + $0xc] sm:$0xff]
        %v3974 = vld [vmem:[%s3970 + $0x14] sm:$0xf]
        %v3975 = vld [vmem:[%s3970 + $0x18] sm:$0xff]
        %v3976 = vld [vmem:[%s3970 + $0x20] sm:$0xf]
        %v3977 = vld [vmem:[%s3970 + $0x24] sm:$0xff]
        %v3978 = vld [vmem:[%s3970 + $0x2c] sm:$0xf]
        %v3979 = vld [vmem:[%s3970 + $0x30] sm:$0xff]
        %v3980 = vld [vmem:[%s3970 + $0x38] sm:$0xf]
        %v3981 = vld [vmem:[%s3970 + $0x3c] sm:$0xff]
        %v3982 = vld [vmem:[%s3970 + $0x44] sm:$0xf]
        %v3983 = vld [vmem:[%s3970 + $0x48] sm:$0xff]
        %v3984 = vld [vmem:[%s3970 + $0x50] sm:$0xf]
        %v3985 = vld [vmem:[%s3970 + $0x54] sm:$0xff]
        %v3986 = vld [vmem:[%s3970 + $0x5c] sm:$0xf]
        %v3987 = vld [vmem:[%s3970 + $0x60] sm:$0xff]
        %v3988 = vld [vmem:[%s3970 + $0x68] sm:$0xf]
        %v3989 = vld [vmem:[%s3970 + $0x6c] sm:$0xff]
        %v3990 = vld [vmem:[%s3970 + $0x74] sm:$0xf]
        %v3991 = vld [vmem:[%s3970 + $0x78] sm:$0xff]
        %v3992 = vld [vmem:[%s3970 + $0x80] sm:$0xf]
        %v3993 = vld [vmem:[%s3970 + $0x84] sm:$0xff]
        %v3994 = vld [vmem:[%s3970 + $0x8c] sm:$0xf]
        %v3995 = vld [vmem:[%s3970 + $0x90] sm:$0xff]
        %v3996 = vld [vmem:[%s3970 + $0x98] sm:$0xf]
        %v3997 = vld [vmem:[%s3970 + $0x9c] sm:$0xff]
        %v3998 = vld [vmem:[%s3970 + $0xa4] sm:$0xf]
        %v3999 = vld [vmem:[%s3970 + $0xa8] sm:$0xff]
        %v4000 = vld [vmem:[%s3970 + $0xb0] sm:$0xf]
        %v4001 = vld [vmem:[%s3970 + $0xb4] sm:$0xff]
        %v4002 = vld [vmem:[%s3970 + $0xbc] sm:$0xf]
        %v4035 = vunpack.c.l.b16 %v3971
        %v4036 = vunpack.c.h.b16 %v3971
        %v4037 = vunpack.c.l.b16 %v3972
        %v4038 = vunpack.c.l.b16 %v3973
        %v4039 = vunpack.c.h.b16 %v3973
        %v4040 = vunpack.c.l.b16 %v3974
        %v4041 = vunpack.c.l.b16 %v3975
        %v4042 = vunpack.c.h.b16 %v3975
        %v4043 = vunpack.c.l.b16 %v3976
        %v4044 = vunpack.c.l.b16 %v3977
        %v4045 = vunpack.c.h.b16 %v3977
        %v4046 = vunpack.c.l.b16 %v3978
        %v4047 = vunpack.c.l.b16 %v3979
        %v4048 = vunpack.c.h.b16 %v3979
        %v4049 = vunpack.c.l.b16 %v3980
        %v4050 = vunpack.c.l.b16 %v3981
        %v4051 = vunpack.c.h.b16 %v3981
        %v4052 = vunpack.c.l.b16 %v3982
        %v4053 = vunpack.c.l.b16 %v3983
        %v4054 = vunpack.c.h.b16 %v3983
        %v4055 = vunpack.c.l.b16 %v3984
        %v4056 = vunpack.c.l.b16 %v3985
        %v4057 = vunpack.c.h.b16 %v3985
        %v4058 = vunpack.c.l.b16 %v3986
        %v4059 = vunpack.c.l.b16 %v3987
        %v4060 = vunpack.c.h.b16 %v3987
        %v4061 = vunpack.c.l.b16 %v3988
        %v4062 = vunpack.c.l.b16 %v3989
        %v4063 = vunpack.c.h.b16 %v3989
        %v4064 = vunpack.c.l.b16 %v3990
        %v4065 = vunpack.c.l.b16 %v3991
        %v4066 = vunpack.c.h.b16 %v3991
        %v4067 = vunpack.c.l.b16 %v3992
        %v4068 = vunpack.c.l.b16 %v3993
        %v4069 = vunpack.c.h.b16 %v3993
        %v4070 = vunpack.c.l.b16 %v3994
        %v4071 = vunpack.c.l.b16 %v3995
        %v4072 = vunpack.c.h.b16 %v3995
        %v4073 = vunpack.c.l.b16 %v3996
        %v4074 = vunpack.c.l.b16 %v3997
        %v4075 = vunpack.c.h.b16 %v3997
        %v4076 = vunpack.c.l.b16 %v3998
        %v4077 = vunpack.c.l.b16 %v3999
        %v4078 = vunpack.c.h.b16 %v3999
        %v4079 = vunpack.c.l.b16 %v4000
        %v4080 = vunpack.c.l.b16 %v4001
        %v4081 = vunpack.c.h.b16 %v4001
        %v4082 = vunpack.c.l.b16 %v4002
        %v4083 = vpack.c.b16 %v4038, %v4035
        %v4084 = vpack.c.b16 %v4039, %v4036
        %v4085 = vpack.c.b16 %v4040, %v4037
        %v4086 = vpack.c.b16 %v4044, %v4041
        %v4087 = vpack.c.b16 %v4045, %v4042
        %v4088 = vpack.c.b16 %v4046, %v4043
        %v4089 = vpack.c.b16 %v4050, %v4047
        %v4090 = vpack.c.b16 %v4051, %v4048
        %v4091 = vpack.c.b16 %v4052, %v4049
        %v4092 = vpack.c.b16 %v4056, %v4053
        %v4093 = vpack.c.b16 %v4057, %v4054
        %v4094 = vpack.c.b16 %v4058, %v4055
        %v4095 = vpack.c.b16 %v4062, %v4059
        %v4096 = vpack.c.b16 %v4063, %v4060
        %v4097 = vpack.c.b16 %v4064, %v4061
        %v4098 = vpack.c.b16 %v4068, %v4065
        %v4099 = vpack.c.b16 %v4069, %v4066
        %v4100 = vpack.c.b16 %v4070, %v4067
        %v4101 = vpack.c.b16 %v4074, %v4071
        %v4102 = vpack.c.b16 %v4075, %v4072
        %v4103 = vpack.c.b16 %v4076, %v4073
        %v4104 = vpack.c.b16 %v4080, %v4077
        %v4105 = vpack.c.b16 %v4081, %v4078
        %v4106 = vpack.c.b16 %v4082, %v4079
        %4131 = vmatprep.subr.bf16.mxu0 %v4084
        %4132 = vmatpush1.bf16.msra.mxu0 %v4083
        %4133 = vmatprep.subr.bf16.mxu0 %v4087
        %4134 = vmatpush1.bf16.msra.mxu0 %v4086
        %4135 = vmatprep.subr.bf16.mxu0 %v4090
        %4136 = vmatpush1.bf16.msra.mxu0 %v4089
        %4137 = vmatprep.subr.bf16.mxu0 %v4093
        %4138 = vmatpush1.bf16.msra.mxu0 %v4092
        %4139 = vmatprep.subr.bf16.mxu0 %v4096
        %4140 = vmatpush1.bf16.msra.mxu0 %v4095
        %4141 = vmatprep.subr.bf16.mxu0 %v4099
        %4142 = vmatpush1.bf16.msra.mxu0 %v4098
        %4143 = vmatprep.subr.bf16.mxu0 %v4102
        %4144 = vmatpush1.bf16.msra.mxu0 %v4101
        %4145 = vmatprep.subr.bf16.mxu0 %v4105
        %4146 = vmatpush1.bf16.msra.mxu0 %v4104
        %4147 = vmatprep.subr.bf16.mxu0 0
        %4148 = vmatpush1.bf16.msra.mxu0 0
        %4149 = vmatprep.subr.bf16.mxu0 0
        %4150 = vmatpush1.bf16.msra.mxu0 0
        %4151 = vmatprep.subr.bf16.mxu0 0
        %4152 = vmatpush1.bf16.msra.mxu0 0
        %4153 = vmatprep.subr.bf16.mxu0 0
        %4154 = vmatpush1.bf16.msra.mxu0 0
        %4155 = vmatprep.subr.bf16.mxu0 0
        %4156 = vmatpush1.bf16.msra.mxu0 0
        %4157 = vmatprep.subr.bf16.mxu0 0
        %4158 = vmatpush1.bf16.msra.mxu0 0
        %4159 = vmatprep.subr.bf16.mxu0 0
        %4160 = vmatpush1.bf16.msra.mxu0 0
        %4161 = vmatprep.subr.bf16.mxu0 0
        %4162 = vmatpush1.bf16.msra.mxu0 0
        %4163 = vmatprep.mubr.bf16.mxu0 0
        %4164 = vmatmul.mubr.bf16.gmra.mrb[0].mxu0 %v3969
        %v4165 = vpop.f32.mrb[0].mxu0
        %v4166 = vadd.f32 0.0, %v4165
        %v4167 = vpop.f32.mrb[0].mxu0
        %v4168 = vadd.f32 0.0, %v4167
        %v4169 = vpop.f32.mrb[0].mxu0
        %v4170 = vpop.f32.mrb[0].mxu0
        %4171 = vdwg.mxu0
        %4172 = vmatprep.subr.bf16.mxu0 0
        %4173 = vmatpush1.bf16.msra.mxu0 %v4085
        %4174 = vmatprep.subr.bf16.mxu0 0
        %4175 = vmatpush1.bf16.msra.mxu0 %v4088
        %4176 = vmatprep.subr.bf16.mxu0 0
        %4177 = vmatpush1.bf16.msra.mxu0 %v4091
        %4178 = vmatprep.subr.bf16.mxu0 0
        %4179 = vmatpush1.bf16.msra.mxu0 %v4094
        %4180 = vmatprep.subr.bf16.mxu0 0
        %4181 = vmatpush1.bf16.msra.mxu0 %v4097
        %4182 = vmatprep.subr.bf16.mxu0 0
        %4183 = vmatpush1.bf16.msra.mxu0 %v4100
        %4184 = vmatprep.subr.bf16.mxu0 0
        %4185 = vmatpush1.bf16.msra.mxu0 %v4103
        %4186 = vmatprep.subr.bf16.mxu0 0
        %4187 = vmatpush1.bf16.msra.mxu0 %v4106
        %4188 = vmatprep.subr.bf16.mxu0 0
        %4189 = vmatpush1.bf16.msra.mxu0 0
        %4190 = vmatprep.subr.bf16.mxu0 0
        %4191 = vmatpush1.bf16.msra.mxu0 0
        %4192 = vmatprep.subr.bf16.mxu0 0
        %4193 = vmatpush1.bf16.msra.mxu0 0
        %4194 = vmatprep.subr.bf16.mxu0 0
        %4195 = vmatpush1.bf16.msra.mxu0 0
        %4196 = vmatprep.subr.bf16.mxu0 0
        %4197 = vmatpush1.bf16.msra.mxu0 0
        %4198 = vmatprep.subr.bf16.mxu0 0
        %4199 = vmatpush1.bf16.msra.mxu0 0
        %4200 = vmatprep.subr.bf16.mxu0 0
        %4201 = vmatpush1.bf16.msra.mxu0 0
        %4202 = vmatprep.subr.bf16.mxu0 0
        %4203 = vmatpush1.bf16.msra.mxu0 0
        %4204 = vmatprep.mubr.bf16.mxu0 0
        %4205 = vmatmul.mubr.bf16.gmra.mrb[0].mxu0 %v3969
        %v4206 = vpop.f32.mrb[0].mxu0
        %v4207 = vadd.f32 0.0, %v4206
        %v4208 = vpop.f32.mrb[0].mxu0
        %v4209 = vpop.f32.mrb[0].mxu0
        %v4210 = vpop.f32.mrb[0].mxu0
        %4211 = vdwg.mxu0
        %v4212 = vadd.f32 %v2974, %v4166
        %v4213 = vadd.f32 %v2976, %v4168
        %v4214 = vadd.f32 %v3015, %v4207
        %s4215 = scalar_lea.vmem [#allocation11], 28
        %v4216 = vld [vmem:[%s4215] ss:$8 sm:$0x7]
        %s4217 = scalar_lea.vmem [#allocation11], 29
        %v4218 = vld [vmem:[%s4217] ss:$8 sm:$0x7]
        %v4220 = vlaneseq
        %v4221 = vshrl.u32 %v4220, 7
        %v4222 = vsub.s32 0, %v4221
        %v4223 = vrot.slane %v4216, %v4222
        %v4224 = vlaneseq
        %v4225 = vshrl.u32 %v4224, 7
        %v4226 = vsub.s32 1, %v4225
        %v4227 = vrot.slane %v4216, %v4226
        %v4228 = vlaneseq
        %v4229 = vshrl.u32 %v4228, 7
        %v4230 = vsub.s32 2, %v4229
        %v4231 = vrot.slane %v4216, %v4230
        %v4235 = vadd.f32 %v4212, %v4223
        %v4236 = vadd.f32 %v4213, %v4227
        %v4237 = vadd.f32 %v4214, %v4231
        %v4238 = vmax.f32 %v4235, 0.0
        %v4239 = vmax.f32 %v4236, 0.0
        %v4240 = vmax.f32 %v4237, 0.0
        %v4241 = vpack.c.bf16 %v4238, %v4238
        %v4242 = vpack.c.bf16 %v4239, %v4239
        %v4243 = vpack.c.bf16 %v4240, %v4240
        %s4244 = scalar_lea.vmem [#allocation10], 576
        %v4245 = vld [vmem:[%s4244] sm:$0xff]
        %v4246 = vld [vmem:[%s4244 + $0x8] sm:$0xf]
        %v4247 = vld [vmem:[%s4244 + $0xc] sm:$0xff]
        %v4248 = vld [vmem:[%s4244 + $0x14] sm:$0xf]
        %v4249 = vld [vmem:[%s4244 + $0x18] sm:$0xff]
        %v4250 = vld [vmem:[%s4244 + $0x20] sm:$0xf]
        %v4251 = vld [vmem:[%s4244 + $0x24] sm:$0xff]
        %v4252 = vld [vmem:[%s4244 + $0x2c] sm:$0xf]
        %v4253 = vld [vmem:[%s4244 + $0x30] sm:$0xff]
        %v4254 = vld [vmem:[%s4244 + $0x38] sm:$0xf]
        %v4255 = vld [vmem:[%s4244 + $0x3c] sm:$0xff]
        %v4256 = vld [vmem:[%s4244 + $0x44] sm:$0xf]
        %v4257 = vld [vmem:[%s4244 + $0x48] sm:$0xff]
        %v4258 = vld [vmem:[%s4244 + $0x50] sm:$0xf]
        %v4259 = vld [vmem:[%s4244 + $0x54] sm:$0xff]
        %v4260 = vld [vmem:[%s4244 + $0x5c] sm:$0xf]
        %v4261 = vld [vmem:[%s4244 + $0x60] sm:$0xff]
        %v4262 = vld [vmem:[%s4244 + $0x68] sm:$0xf]
        %v4263 = vld [vmem:[%s4244 + $0x6c] sm:$0xff]
        %v4264 = vld [vmem:[%s4244 + $0x74] sm:$0xf]
        %v4265 = vld [vmem:[%s4244 + $0x78] sm:$0xff]
        %v4266 = vld [vmem:[%s4244 + $0x80] sm:$0xf]
        %v4267 = vld [vmem:[%s4244 + $0x84] sm:$0xff]
        %v4268 = vld [vmem:[%s4244 + $0x8c] sm:$0xf]
        %v4269 = vld [vmem:[%s4244 + $0x90] sm:$0xff]
        %v4270 = vld [vmem:[%s4244 + $0x98] sm:$0xf]
        %v4271 = vld [vmem:[%s4244 + $0x9c] sm:$0xff]
        %v4272 = vld [vmem:[%s4244 + $0xa4] sm:$0xf]
        %v4273 = vld [vmem:[%s4244 + $0xa8] sm:$0xff]
        %v4274 = vld [vmem:[%s4244 + $0xb0] sm:$0xf]
        %v4275 = vld [vmem:[%s4244 + $0xb4] sm:$0xff]
        %v4276 = vld [vmem:[%s4244 + $0xbc] sm:$0xf]
        %v4309 = vunpack.c.l.b16 %v4245
        %v4310 = vunpack.c.h.b16 %v4245
        %v4311 = vunpack.c.l.b16 %v4246
        %v4312 = vunpack.c.l.b16 %v4247
        %v4313 = vunpack.c.h.b16 %v4247
        %v4314 = vunpack.c.l.b16 %v4248
        %v4315 = vunpack.c.l.b16 %v4249
        %v4316 = vunpack.c.h.b16 %v4249
        %v4317 = vunpack.c.l.b16 %v4250
        %v4318 = vunpack.c.l.b16 %v4251
        %v4319 = vunpack.c.h.b16 %v4251
        %v4320 = vunpack.c.l.b16 %v4252
        %v4321 = vunpack.c.l.b16 %v4253
        %v4322 = vunpack.c.h.b16 %v4253
        %v4323 = vunpack.c.l.b16 %v4254
        %v4324 = vunpack.c.l.b16 %v4255
        %v4325 = vunpack.c.h.b16 %v4255
        %v4326 = vunpack.c.l.b16 %v4256
        %v4327 = vunpack.c.l.b16 %v4257
        %v4328 = vunpack.c.h.b16 %v4257
        %v4329 = vunpack.c.l.b16 %v4258
        %v4330 = vunpack.c.l.b16 %v4259
        %v4331 = vunpack.c.h.b16 %v4259
        %v4332 = vunpack.c.l.b16 %v4260
        %v4333 = vunpack.c.l.b16 %v4261
        %v4334 = vunpack.c.h.b16 %v4261
        %v4335 = vunpack.c.l.b16 %v4262
        %v4336 = vunpack.c.l.b16 %v4263
        %v4337 = vunpack.c.h.b16 %v4263
        %v4338 = vunpack.c.l.b16 %v4264
        %v4339 = vunpack.c.l.b16 %v4265
        %v4340 = vunpack.c.h.b16 %v4265
        %v4341 = vunpack.c.l.b16 %v4266
        %v4342 = vunpack.c.l.b16 %v4267
        %v4343 = vunpack.c.h.b16 %v4267
        %v4344 = vunpack.c.l.b16 %v4268
        %v4345 = vunpack.c.l.b16 %v4269
        %v4346 = vunpack.c.h.b16 %v4269
        %v4347 = vunpack.c.l.b16 %v4270
        %v4348 = vunpack.c.l.b16 %v4271
        %v4349 = vunpack.c.h.b16 %v4271
        %v4350 = vunpack.c.l.b16 %v4272
        %v4351 = vunpack.c.l.b16 %v4273
        %v4352 = vunpack.c.h.b16 %v4273
        %v4353 = vunpack.c.l.b16 %v4274
        %v4354 = vunpack.c.l.b16 %v4275
        %v4355 = vunpack.c.h.b16 %v4275
        %v4356 = vunpack.c.l.b16 %v4276
        %v4357 = vpack.c.b16 %v4312, %v4309
        %v4358 = vpack.c.b16 %v4313, %v4310
        %v4359 = vpack.c.b16 %v4314, %v4311
        %v4360 = vpack.c.b16 %v4318, %v4315
        %v4361 = vpack.c.b16 %v4319, %v4316
        %v4362 = vpack.c.b16 %v4320, %v4317
        %v4363 = vpack.c.b16 %v4324, %v4321
        %v4364 = vpack.c.b16 %v4325, %v4322
        %v4365 = vpack.c.b16 %v4326, %v4323
        %v4366 = vpack.c.b16 %v4330, %v4327
        %v4367 = vpack.c.b16 %v4331, %v4328
        %v4368 = vpack.c.b16 %v4332, %v4329
        %v4369 = vpack.c.b16 %v4336, %v4333
        %v4370 = vpack.c.b16 %v4337, %v4334
        %v4371 = vpack.c.b16 %v4338, %v4335
        %v4372 = vpack.c.b16 %v4342, %v4339
        %v4373 = vpack.c.b16 %v4343, %v4340
        %v4374 = vpack.c.b16 %v4344, %v4341
        %v4375 = vpack.c.b16 %v4348, %v4345
        %v4376 = vpack.c.b16 %v4349, %v4346
        %v4377 = vpack.c.b16 %v4350, %v4347
        %v4378 = vpack.c.b16 %v4354, %v4351
        %v4379 = vpack.c.b16 %v4355, %v4352
        %v4380 = vpack.c.b16 %v4356, %v4353
        %4405 = vmatprep.subr.bf16.mxu0 %v4358
        %4406 = vmatpush1.bf16.msra.mxu0 %v4357
        %4407 = vmatprep.subr.bf16.mxu0 %v4361
        %4408 = vmatpush1.bf16.msra.mxu0 %v4360
        %4409 = vmatprep.subr.bf16.mxu0 %v4364
        %4410 = vmatpush1.bf16.msra.mxu0 %v4363
        %4411 = vmatprep.subr.bf16.mxu0 %v4367
        %4412 = vmatpush1.bf16.msra.mxu0 %v4366
        %4413 = vmatprep.subr.bf16.mxu0 %v4370
        %4414 = vmatpush1.bf16.msra.mxu0 %v4369
        %4415 = vmatprep.subr.bf16.mxu0 %v4373
        %4416 = vmatpush1.bf16.msra.mxu0 %v4372
        %4417 = vmatprep.subr.bf16.mxu0 %v4376
        %4418 = vmatpush1.bf16.msra.mxu0 %v4375
        %4419 = vmatprep.subr.bf16.mxu0 %v4379
        %4420 = vmatpush1.bf16.msra.mxu0 %v4378
        %4421 = vmatprep.subr.bf16.mxu0 0
        %4422 = vmatpush1.bf16.msra.mxu0 0
        %4423 = vmatprep.subr.bf16.mxu0 0
        %4424 = vmatpush1.bf16.msra.mxu0 0
        %4425 = vmatprep.subr.bf16.mxu0 0
        %4426 = vmatpush1.bf16.msra.mxu0 0
        %4427 = vmatprep.subr.bf16.mxu0 0
        %4428 = vmatpush1.bf16.msra.mxu0 0
        %4429 = vmatprep.subr.bf16.mxu0 0
        %4430 = vmatpush1.bf16.msra.mxu0 0
        %4431 = vmatprep.subr.bf16.mxu0 0
        %4432 = vmatpush1.bf16.msra.mxu0 0
        %4433 = vmatprep.subr.bf16.mxu0 0
        %4434 = vmatpush1.bf16.msra.mxu0 0
        %4435 = vmatprep.subr.bf16.mxu0 0
        %4436 = vmatpush1.bf16.msra.mxu0 0
        %4437 = vmatprep.mubr.bf16.mxu0 0
        %4438 = vmatmul.mubr.bf16.gmra.mrb[0].mxu0 %v4241
        %v4439 = vpop.f32.mrb[0].mxu0
        %v4440 = vadd.f32 0.0, %v4439
        %v4441 = vpop.f32.mrb[0].mxu0
        %v4442 = vadd.f32 0.0, %v4441
        %v4443 = vpop.f32.mrb[0].mxu0
        %v4444 = vpop.f32.mrb[0].mxu0
        %4445 = vdwg.mxu0
        %4446 = vmatprep.subr.bf16.mxu0 0
        %4447 = vmatpush1.bf16.msra.mxu0 %v4359
        %4448 = vmatprep.subr.bf16.mxu0 0
        %4449 = vmatpush1.bf16.msra.mxu0 %v4362
        %4450 = vmatprep.subr.bf16.mxu0 0
        %4451 = vmatpush1.bf16.msra.mxu0 %v4365
        %4452 = vmatprep.subr.bf16.mxu0 0
        %4453 = vmatpush1.bf16.msra.mxu0 %v4368
        %4454 = vmatprep.subr.bf16.mxu0 0
        %4455 = vmatpush1.bf16.msra.mxu0 %v4371
        %4456 = vmatprep.subr.bf16.mxu0 0
        %4457 = vmatpush1.bf16.msra.mxu0 %v4374
        %4458 = vmatprep.subr.bf16.mxu0 0
        %4459 = vmatpush1.bf16.msra.mxu0 %v4377
        %4460 = vmatprep.subr.bf16.mxu0 0
        %4461 = vmatpush1.bf16.msra.mxu0 %v4380
        %4462 = vmatprep.subr.bf16.mxu0 0
        %4463 = vmatpush1.bf16.msra.mxu0 0
        %4464 = vmatprep.subr.bf16.mxu0 0
        %4465 = vmatpush1.bf16.msra.mxu0 0
        %4466 = vmatprep.subr.bf16.mxu0 0
        %4467 = vmatpush1.bf16.msra.mxu0 0
        %4468 = vmatprep.subr.bf16.mxu0 0
        %4469 = vmatpush1.bf16.msra.mxu0 0
        %4470 = vmatprep.subr.bf16.mxu0 0
        %4471 = vmatpush1.bf16.msra.mxu0 0
        %4472 = vmatprep.subr.bf16.mxu0 0
        %4473 = vmatpush1.bf16.msra.mxu0 0
        %4474 = vmatprep.subr.bf16.mxu0 0
        %4475 = vmatpush1.bf16.msra.mxu0 0
        %4476 = vmatprep.subr.bf16.mxu0 0
        %4477 = vmatpush1.bf16.msra.mxu0 0
        %4478 = vmatprep.mubr.bf16.mxu0 0
        %4479 = vmatmul.mubr.bf16.gmra.mrb[0].mxu0 %v4241
        %v4480 = vpop.f32.mrb[0].mxu0
        %v4481 = vadd.f32 0.0, %v4480
        %v4482 = vpop.f32.mrb[0].mxu0
        %v4483 = vpop.f32.mrb[0].mxu0
        %v4484 = vpop.f32.mrb[0].mxu0
        %4485 = vdwg.mxu0
        %v4487 = vlaneseq
        %v4488 = vshrl.u32 %v4487, 7
        %v4489 = vsub.s32 0, %v4488
        %v4490 = vrot.slane %v4218, %v4489
        %v4491 = vlaneseq
        %v4492 = vshrl.u32 %v4491, 7
        %v4493 = vsub.s32 1, %v4492
        %v4494 = vrot.slane %v4218, %v4493
        %v4495 = vlaneseq
        %v4496 = vshrl.u32 %v4495, 7
        %v4497 = vsub.s32 2, %v4496
        %v4498 = vrot.slane %v4218, %v4497
        %v4502 = vadd.f32 %v4490, %v4440
        %v4503 = vadd.f32 %v4494, %v4442
        %v4504 = vadd.f32 %v4498, %v4481
        %s4505 = scalar_lea.vmem [#allocation10], 768
        %v4506 = vld [vmem:[%s4505] sm:$0xff]
        %v4507 = vld [vmem:[%s4505 + $0x8] sm:$0xf]
        %v4508 = vld [vmem:[%s4505 + $0xc] sm:$0xff]
        %v4509 = vld [vmem:[%s4505 + $0x14] sm:$0xf]
        %v4510 = vld [vmem:[%s4505 + $0x18] sm:$0xff]
        %v4511 = vld [vmem:[%s4505 + $0x20] sm:$0xf]
        %v4512 = vld [vmem:[%s4505 + $0x24] sm:$0xff]
        %v4513 = vld [vmem:[%s4505 + $0x2c] sm:$0xf]
        %v4514 = vld [vmem:[%s4505 + $0x30] sm:$0xff]
        %v4515 = vld [vmem:[%s4505 + $0x38] sm:$0xf]
        %v4516 = vld [vmem:[%s4505 + $0x3c] sm:$0xff]
        %v4517 = vld [vmem:[%s4505 + $0x44] sm:$0xf]
        %v4518 = vld [vmem:[%s4505 + $0x48] sm:$0xff]
        %v4519 = vld [vmem:[%s4505 + $0x50] sm:$0xf]
        %v4520 = vld [vmem:[%s4505 + $0x54] sm:$0xff]
        %v4521 = vld [vmem:[%s4505 + $0x5c] sm:$0xf]
        %v4522 = vld [vmem:[%s4505 + $0x60] sm:$0xff]
        %v4523 = vld [vmem:[%s4505 + $0x68] sm:$0xf]
        %v4524 = vld [vmem:[%s4505 + $0x6c] sm:$0xff]
        %v4525 = vld [vmem:[%s4505 + $0x74] sm:$0xf]
        %v4526 = vld [vmem:[%s4505 + $0x78] sm:$0xff]
        %v4527 = vld [vmem:[%s4505 + $0x80] sm:$0xf]
        %v4528 = vld [vmem:[%s4505 + $0x84] sm:$0xff]
        %v4529 = vld [vmem:[%s4505 + $0x8c] sm:$0xf]
        %v4530 = vld [vmem:[%s4505 + $0x90] sm:$0xff]
        %v4531 = vld [vmem:[%s4505 + $0x98] sm:$0xf]
        %v4532 = vld [vmem:[%s4505 + $0x9c] sm:$0xff]
        %v4533 = vld [vmem:[%s4505 + $0xa4] sm:$0xf]
        %v4534 = vld [vmem:[%s4505 + $0xa8] sm:$0xff]
        %v4535 = vld [vmem:[%s4505 + $0xb0] sm:$0xf]
        %v4536 = vld [vmem:[%s4505 + $0xb4] sm:$0xff]
        %v4537 = vld [vmem:[%s4505 + $0xbc] sm:$0xf]
        %v4570 = vunpack.c.l.b16 %v4506
        %v4571 = vunpack.c.h.b16 %v4506
        %v4572 = vunpack.c.l.b16 %v4507
        %v4573 = vunpack.c.l.b16 %v4508
        %v4574 = vunpack.c.h.b16 %v4508
        %v4575 = vunpack.c.l.b16 %v4509
        %v4576 = vunpack.c.l.b16 %v4510
        %v4577 = vunpack.c.h.b16 %v4510
        %v4578 = vunpack.c.l.b16 %v4511
        %v4579 = vunpack.c.l.b16 %v4512
        %v4580 = vunpack.c.h.b16 %v4512
        %v4581 = vunpack.c.l.b16 %v4513
        %v4582 = vunpack.c.l.b16 %v4514
        %v4583 = vunpack.c.h.b16 %v4514
        %v4584 = vunpack.c.l.b16 %v4515
        %v4585 = vunpack.c.l.b16 %v4516
        %v4586 = vunpack.c.h.b16 %v4516
        %v4587 = vunpack.c.l.b16 %v4517
        %v4588 = vunpack.c.l.b16 %v4518
        %v4589 = vunpack.c.h.b16 %v4518
        %v4590 = vunpack.c.l.b16 %v4519
        %v4591 = vunpack.c.l.b16 %v4520
        %v4592 = vunpack.c.h.b16 %v4520
        %v4593 = vunpack.c.l.b16 %v4521
        %v4594 = vunpack.c.l.b16 %v4522
        %v4595 = vunpack.c.h.b16 %v4522
        %v4596 = vunpack.c.l.b16 %v4523
        %v4597 = vunpack.c.l.b16 %v4524
        %v4598 = vunpack.c.h.b16 %v4524
        %v4599 = vunpack.c.l.b16 %v4525
        %v4600 = vunpack.c.l.b16 %v4526
        %v4601 = vunpack.c.h.b16 %v4526
        %v4602 = vunpack.c.l.b16 %v4527
        %v4603 = vunpack.c.l.b16 %v4528
        %v4604 = vunpack.c.h.b16 %v4528
        %v4605 = vunpack.c.l.b16 %v4529
        %v4606 = vunpack.c.l.b16 %v4530
        %v4607 = vunpack.c.h.b16 %v4530
        %v4608 = vunpack.c.l.b16 %v4531
        %v4609 = vunpack.c.l.b16 %v4532
        %v4610 = vunpack.c.h.b16 %v4532
        %v4611 = vunpack.c.l.b16 %v4533
        %v4612 = vunpack.c.l.b16 %v4534
        %v4613 = vunpack.c.h.b16 %v4534
        %v4614 = vunpack.c.l.b16 %v4535
        %v4615 = vunpack.c.l.b16 %v4536
        %v4616 = vunpack.c.h.b16 %v4536
        %v4617 = vunpack.c.l.b16 %v4537
        %v4618 = vpack.c.b16 %v4573, %v4570
        %v4619 = vpack.c.b16 %v4574, %v4571
        %v4620 = vpack.c.b16 %v4575, %v4572
        %v4621 = vpack.c.b16 %v4579, %v4576
        %v4622 = vpack.c.b16 %v4580, %v4577
        %v4623 = vpack.c.b16 %v4581, %v4578
        %v4624 = vpack.c.b16 %v4585, %v4582
        %v4625 = vpack.c.b16 %v4586, %v4583
        %v4626 = vpack.c.b16 %v4587, %v4584
        %v4627 = vpack.c.b16 %v4591, %v4588
        %v4628 = vpack.c.b16 %v4592, %v4589
        %v4629 = vpack.c.b16 %v4593, %v4590
        %v4630 = vpack.c.b16 %v4597, %v4594
        %v4631 = vpack.c.b16 %v4598, %v4595
        %v4632 = vpack.c.b16 %v4599, %v4596
        %v4633 = vpack.c.b16 %v4603, %v4600
        %v4634 = vpack.c.b16 %v4604, %v4601
        %v4635 = vpack.c.b16 %v4605, %v4602
        %v4636 = vpack.c.b16 %v4609, %v4606
        %v4637 = vpack.c.b16 %v4610, %v4607
        %v4638 = vpack.c.b16 %v4611, %v4608
        %v4639 = vpack.c.b16 %v4615, %v4612
        %v4640 = vpack.c.b16 %v4616, %v4613
        %v4641 = vpack.c.b16 %v4617, %v4614
        %4666 = vmatprep.subr.bf16.mxu0 %v4619
        %4667 = vmatpush1.bf16.msra.mxu0 %v4618
        %4668 = vmatprep.subr.bf16.mxu0 %v4622
        %4669 = vmatpush1.bf16.msra.mxu0 %v4621
        %4670 = vmatprep.subr.bf16.mxu0 %v4625
        %4671 = vmatpush1.bf16.msra.mxu0 %v4624
        %4672 = vmatprep.subr.bf16.mxu0 %v4628
        %4673 = vmatpush1.bf16.msra.mxu0 %v4627
        %4674 = vmatprep.subr.bf16.mxu0 %v4631
        %4675 = vmatpush1.bf16.msra.mxu0 %v4630
        %4676 = vmatprep.subr.bf16.mxu0 %v4634
        %4677 = vmatpush1.bf16.msra.mxu0 %v4633
        %4678 = vmatprep.subr.bf16.mxu0 %v4637
        %4679 = vmatpush1.bf16.msra.mxu0 %v4636
        %4680 = vmatprep.subr.bf16.mxu0 %v4640
        %4681 = vmatpush1.bf16.msra.mxu0 %v4639
        %4682 = vmatprep.subr.bf16.mxu0 0
        %4683 = vmatpush1.bf16.msra.mxu0 0
        %4684 = vmatprep.subr.bf16.mxu0 0
        %4685 = vmatpush1.bf16.msra.mxu0 0
        %4686 = vmatprep.subr.bf16.mxu0 0
        %4687 = vmatpush1.bf16.msra.mxu0 0
        %4688 = vmatprep.subr.bf16.mxu0 0
        %4689 = vmatpush1.bf16.msra.mxu0 0
        %4690 = vmatprep.subr.bf16.mxu0 0
        %4691 = vmatpush1.bf16.msra.mxu0 0
        %4692 = vmatprep.subr.bf16.mxu0 0
        %4693 = vmatpush1.bf16.msra.mxu0 0
        %4694 = vmatprep.subr.bf16.mxu0 0
        %4695 = vmatpush1.bf16.msra.mxu0 0
        %4696 = vmatprep.subr.bf16.mxu0 0
        %4697 = vmatpush1.bf16.msra.mxu0 0
        %4698 = vmatprep.mubr.bf16.mxu0 0
        %4699 = vmatmul.mubr.bf16.gmra.mrb[0].mxu0 %v4242
        %v4700 = vpop.f32.mrb[0].mxu0
        %v4701 = vadd.f32 0.0, %v4700
        %v4702 = vpop.f32.mrb[0].mxu0
        %v4703 = vadd.f32 0.0, %v4702
        %v4704 = vpop.f32.mrb[0].mxu0
        %v4705 = vpop.f32.mrb[0].mxu0
        %4706 = vdwg.mxu0
        %4707 = vmatprep.subr.bf16.mxu0 0
        %4708 = vmatpush1.bf16.msra.mxu0 %v4620
        %4709 = vmatprep.subr.bf16.mxu0 0
        %4710 = vmatpush1.bf16.msra.mxu0 %v4623
        %4711 = vmatprep.subr.bf16.mxu0 0
        %4712 = vmatpush1.bf16.msra.mxu0 %v4626
        %4713 = vmatprep.subr.bf16.mxu0 0
        %4714 = vmatpush1.bf16.msra.mxu0 %v4629
        %4715 = vmatprep.subr.bf16.mxu0 0
        %4716 = vmatpush1.bf16.msra.mxu0 %v4632
        %4717 = vmatprep.subr.bf16.mxu0 0
        %4718 = vmatpush1.bf16.msra.mxu0 %v4635
        %4719 = vmatprep.subr.bf16.mxu0 0
        %4720 = vmatpush1.bf16.msra.mxu0 %v4638
        %4721 = vmatprep.subr.bf16.mxu0 0
        %4722 = vmatpush1.bf16.msra.mxu0 %v4641
        %4723 = vmatprep.subr.bf16.mxu0 0
        %4724 = vmatpush1.bf16.msra.mxu0 0
        %4725 = vmatprep.subr.bf16.mxu0 0
        %4726 = vmatpush1.bf16.msra.mxu0 0
        %4727 = vmatprep.subr.bf16.mxu0 0
        %4728 = vmatpush1.bf16.msra.mxu0 0
        %4729 = vmatprep.subr.bf16.mxu0 0
        %4730 = vmatpush1.bf16.msra.mxu0 0
        %4731 = vmatprep.subr.bf16.mxu0 0
        %4732 = vmatpush1.bf16.msra.mxu0 0
        %4733 = vmatprep.subr.bf16.mxu0 0
        %4734 = vmatpush1.bf16.msra.mxu0 0
        %4735 = vmatprep.subr.bf16.mxu0 0
        %4736 = vmatpush1.bf16.msra.mxu0 0
        %4737 = vmatprep.subr.bf16.mxu0 0
        %4738 = vmatpush1.bf16.msra.mxu0 0
        %4739 = vmatprep.mubr.bf16.mxu0 0
        %4740 = vmatmul.mubr.bf16.gmra.mrb[0].mxu0 %v4242
        %v4741 = vpop.f32.mrb[0].mxu0
        %v4742 = vadd.f32 0.0, %v4741
        %v4743 = vpop.f32.mrb[0].mxu0
        %v4744 = vpop.f32.mrb[0].mxu0
        %v4745 = vpop.f32.mrb[0].mxu0
        %4746 = vdwg.mxu0
        %v4747 = vadd.f32 %v4502, %v4701
        %v4748 = vadd.f32 %v4503, %v4703
        %v4749 = vadd.f32 %v4504, %v4742
        %s4750 = scalar_lea.vmem [#allocation10], 960
        %v4751 = vld [vmem:[%s4750] sm:$0xff]
        %v4752 = vld [vmem:[%s4750 + $0x8] sm:$0xf]
        %v4753 = vld [vmem:[%s4750 + $0xc] sm:$0xff]
        %v4754 = vld [vmem:[%s4750 + $0x14] sm:$0xf]
        %v4755 = vld [vmem:[%s4750 + $0x18] sm:$0xff]
        %v4756 = vld [vmem:[%s4750 + $0x20] sm:$0xf]
        %v4757 = vld [vmem:[%s4750 + $0x24] sm:$0xff]
        %v4758 = vld [vmem:[%s4750 + $0x2c] sm:$0xf]
        %v4759 = vld [vmem:[%s4750 + $0x30] sm:$0xff]
        %v4760 = vld [vmem:[%s4750 + $0x38] sm:$0xf]
        %v4761 = vld [vmem:[%s4750 + $0x3c] sm:$0xff]
        %v4762 = vld [vmem:[%s4750 + $0x44] sm:$0xf]
        %v4763 = vld [vmem:[%s4750 + $0x48] sm:$0xff]
        %v4764 = vld [vmem:[%s4750 + $0x50] sm:$0xf]
        %v4765 = vld [vmem:[%s4750 + $0x54] sm:$0xff]
        %v4766 = vld [vmem:[%s4750 + $0x5c] sm:$0xf]
        %v4767 = vld [vmem:[%s4750 + $0x60] sm:$0xff]
        %v4768 = vld [vmem:[%s4750 + $0x68] sm:$0xf]
        %v4769 = vld [vmem:[%s4750 + $0x6c] sm:$0xff]
        %v4770 = vld [vmem:[%s4750 + $0x74] sm:$0xf]
        %v4771 = vld [vmem:[%s4750 + $0x78] sm:$0xff]
        %v4772 = vld [vmem:[%s4750 + $0x80] sm:$0xf]
        %v4773 = vld [vmem:[%s4750 + $0x84] sm:$0xff]
        %v4774 = vld [vmem:[%s4750 + $0x8c] sm:$0xf]
        %v4775 = vld [vmem:[%s4750 + $0x90] sm:$0xff]
        %v4776 = vld [vmem:[%s4750 + $0x98] sm:$0xf]
        %v4777 = vld [vmem:[%s4750 + $0x9c] sm:$0xff]
        %v4778 = vld [vmem:[%s4750 + $0xa4] sm:$0xf]
        %v4779 = vld [vmem:[%s4750 + $0xa8] sm:$0xff]
        %v4780 = vld [vmem:[%s4750 + $0xb0] sm:$0xf]
        %v4781 = vld [vmem:[%s4750 + $0xb4] sm:$0xff]
        %v4782 = vld [vmem:[%s4750 + $0xbc] sm:$0xf]
        %v4815 = vunpack.c.l.b16 %v4751
        %v4816 = vunpack.c.h.b16 %v4751
        %v4817 = vunpack.c.l.b16 %v4752
        %v4818 = vunpack.c.l.b16 %v4753
        %v4819 = vunpack.c.h.b16 %v4753
        %v4820 = vunpack.c.l.b16 %v4754
        %v4821 = vunpack.c.l.b16 %v4755
        %v4822 = vunpack.c.h.b16 %v4755
        %v4823 = vunpack.c.l.b16 %v4756
        %v4824 = vunpack.c.l.b16 %v4757
        %v4825 = vunpack.c.h.b16 %v4757
        %v4826 = vunpack.c.l.b16 %v4758
        %v4827 = vunpack.c.l.b16 %v4759
        %v4828 = vunpack.c.h.b16 %v4759
        %v4829 = vunpack.c.l.b16 %v4760
        %v4830 = vunpack.c.l.b16 %v4761
        %v4831 = vunpack.c.h.b16 %v4761
        %v4832 = vunpack.c.l.b16 %v4762
        %v4833 = vunpack.c.l.b16 %v4763
        %v4834 = vunpack.c.h.b16 %v4763
        %v4835 = vunpack.c.l.b16 %v4764
        %v4836 = vunpack.c.l.b16 %v4765
        %v4837 = vunpack.c.h.b16 %v4765
        %v4838 = vunpack.c.l.b16 %v4766
        %v4839 = vunpack.c.l.b16 %v4767
        %v4840 = vunpack.c.h.b16 %v4767
        %v4841 = vunpack.c.l.b16 %v4768
        %v4842 = vunpack.c.l.b16 %v4769
        %v4843 = vunpack.c.h.b16 %v4769
        %v4844 = vunpack.c.l.b16 %v4770
        %v4845 = vunpack.c.l.b16 %v4771
        %v4846 = vunpack.c.h.b16 %v4771
        %v4847 = vunpack.c.l.b16 %v4772
        %v4848 = vunpack.c.l.b16 %v4773
        %v4849 = vunpack.c.h.b16 %v4773
        %v4850 = vunpack.c.l.b16 %v4774
        %v4851 = vunpack.c.l.b16 %v4775
        %v4852 = vunpack.c.h.b16 %v4775
        %v4853 = vunpack.c.l.b16 %v4776
        %v4854 = vunpack.c.l.b16 %v4777
        %v4855 = vunpack.c.h.b16 %v4777
        %v4856 = vunpack.c.l.b16 %v4778
        %v4857 = vunpack.c.l.b16 %v4779
        %v4858 = vunpack.c.h.b16 %v4779
        %v4859 = vunpack.c.l.b16 %v4780
        %v4860 = vunpack.c.l.b16 %v4781
        %v4861 = vunpack.c.h.b16 %v4781
        %v4862 = vunpack.c.l.b16 %v4782
        %v4863 = vpack.c.b16 %v4818, %v4815
        %v4864 = vpack.c.b16 %v4819, %v4816
        %v4865 = vpack.c.b16 %v4820, %v4817
        %v4866 = vpack.c.b16 %v4824, %v4821
        %v4867 = vpack.c.b16 %v4825, %v4822
        %v4868 = vpack.c.b16 %v4826, %v4823
        %v4869 = vpack.c.b16 %v4830, %v4827
        %v4870 = vpack.c.b16 %v4831, %v4828
        %v4871 = vpack.c.b16 %v4832, %v4829
        %v4872 = vpack.c.b16 %v4836, %v4833
        %v4873 = vpack.c.b16 %v4837, %v4834
        %v4874 = vpack.c.b16 %v4838, %v4835
        %v4875 = vpack.c.b16 %v4842, %v4839
        %v4876 = vpack.c.b16 %v4843, %v4840
        %v4877 = vpack.c.b16 %v4844, %v4841
        %v4878 = vpack.c.b16 %v4848, %v4845
        %v4879 = vpack.c.b16 %v4849, %v4846
        %v4880 = vpack.c.b16 %v4850, %v4847
        %v4881 = vpack.c.b16 %v4854, %v4851
        %v4882 = vpack.c.b16 %v4855, %v4852
        %v4883 = vpack.c.b16 %v4856, %v4853
        %v4884 = vpack.c.b16 %v4860, %v4857
        %v4885 = vpack.c.b16 %v4861, %v4858
        %v4886 = vpack.c.b16 %v4862, %v4859
        %4911 = vmatprep.subr.bf16.mxu0 %v4864
        %4912 = vmatpush1.bf16.msra.mxu0 %v4863
        %4913 = vmatprep.subr.bf16.mxu0 %v4867
        %4914 = vmatpush1.bf16.msra.mxu0 %v4866
        %4915 = vmatprep.subr.bf16.mxu0 %v4870
        %4916 = vmatpush1.bf16.msra.mxu0 %v4869
        %4917 = vmatprep.subr.bf16.mxu0 %v4873
        %4918 = vmatpush1.bf16.msra.mxu0 %v4872
        %4919 = vmatprep.subr.bf16.mxu0 %v4876
        %4920 = vmatpush1.bf16.msra.mxu0 %v4875
        %4921 = vmatprep.subr.bf16.mxu0 %v4879
        %4922 = vmatpush1.bf16.msra.mxu0 %v4878
        %4923 = vmatprep.subr.bf16.mxu0 %v4882
        %4924 = vmatpush1.bf16.msra.mxu0 %v4881
        %4925 = vmatprep.subr.bf16.mxu0 %v4885
        %4926 = vmatpush1.bf16.msra.mxu0 %v4884
        %4927 = vmatprep.subr.bf16.mxu0 0
        %4928 = vmatpush1.bf16.msra.mxu0 0
        %4929 = vmatprep.subr.bf16.mxu0 0
        %4930 = vmatpush1.bf16.msra.mxu0 0
        %4931 = vmatprep.subr.bf16.mxu0 0
        %4932 = vmatpush1.bf16.msra.mxu0 0
        %4933 = vmatprep.subr.bf16.mxu0 0
        %4934 = vmatpush1.bf16.msra.mxu0 0
        %4935 = vmatprep.subr.bf16.mxu0 0
        %4936 = vmatpush1.bf16.msra.mxu0 0
        %4937 = vmatprep.subr.bf16.mxu0 0
        %4938 = vmatpush1.bf16.msra.mxu0 0
        %4939 = vmatprep.subr.bf16.mxu0 0
        %4940 = vmatpush1.bf16.msra.mxu0 0
        %4941 = vmatprep.subr.bf16.mxu0 0
        %4942 = vmatpush1.bf16.msra.mxu0 0
        %4943 = vmatprep.mubr.bf16.mxu0 0
        %4944 = vmatmul.mubr.bf16.gmra.mrb[0].mxu0 %v4243
        %v4945 = vpop.f32.mrb[0].mxu0
        %v4946 = vadd.f32 0.0, %v4945
        %v4947 = vpop.f32.mrb[0].mxu0
        %v4948 = vadd.f32 0.0, %v4947
        %v4949 = vpop.f32.mrb[0].mxu0
        %v4950 = vpop.f32.mrb[0].mxu0
        %4951 = vdwg.mxu0
        %4952 = vmatprep.subr.bf16.mxu0 0
        %4953 = vmatpush1.bf16.msra.mxu0 %v4865
        %4954 = vmatprep.subr.bf16.mxu0 0
        %4955 = vmatpush1.bf16.msra.mxu0 %v4868
        %4956 = vmatprep.subr.bf16.mxu0 0
        %4957 = vmatpush1.bf16.msra.mxu0 %v4871
        %4958 = vmatprep.subr.bf16.mxu0 0
        %4959 = vmatpush1.bf16.msra.mxu0 %v4874
        %4960 = vmatprep.subr.bf16.mxu0 0
        %4961 = vmatpush1.bf16.msra.mxu0 %v4877
        %4962 = vmatprep.subr.bf16.mxu0 0
        %4963 = vmatpush1.bf16.msra.mxu0 %v4880
        %4964 = vmatprep.subr.bf16.mxu0 0
        %4965 = vmatpush1.bf16.msra.mxu0 %v4883
        %4966 = vmatprep.subr.bf16.mxu0 0
        %4967 = vmatpush1.bf16.msra.mxu0 %v4886
        %4968 = vmatprep.subr.bf16.mxu0 0
        %4969 = vmatpush1.bf16.msra.mxu0 0
        %4970 = vmatprep.subr.bf16.mxu0 0
        %4971 = vmatpush1.bf16.msra.mxu0 0
        %4972 = vmatprep.subr.bf16.mxu0 0
        %4973 = vmatpush1.bf16.msra.mxu0 0
        %4974 = vmatprep.subr.bf16.mxu0 0
        %4975 = vmatpush1.bf16.msra.mxu0 0
        %4976 = vmatprep.subr.bf16.mxu0 0
        %4977 = vmatpush1.bf16.msra.mxu0 0
        %4978 = vmatprep.subr.bf16.mxu0 0
        %4979 = vmatpush1.bf16.msra.mxu0 0
        %4980 = vmatprep.subr.bf16.mxu0 0
        %4981 = vmatpush1.bf16.msra.mxu0 0
        %4982 = vmatprep.subr.bf16.mxu0 0
        %4983 = vmatpush1.bf16.msra.mxu0 0
        %4984 = vmatprep.mubr.bf16.mxu0 0
        %4985 = vmatmul.mubr.bf16.gmra.mrb[0].mxu0 %v4243
        %v4986 = vpop.f32.mrb[0].mxu0
        %v4987 = vadd.f32 0.0, %v4986
        %v4988 = vpop.f32.mrb[0].mxu0
        %v4989 = vpop.f32.mrb[0].mxu0
        %v4990 = vpop.f32.mrb[0].mxu0
        %4991 = vdwg.mxu0
        %v4992 = vadd.f32 %v4747, %v4946
        %v4993 = vadd.f32 %v4748, %v4948
        %v4994 = vadd.f32 %v4749, %v4987
        %4995 = vst [vmem:[%s388] sm:$0xff] %v4992
        %4996 = vst [vmem:[%s388 + $0x8] sm:$0xff] %v4993
        %4997 = vst [vmem:[%s388 + $0x10] sm:$0xff] %v4994
        %s4998 = sand.u32 %s177, 1
        %s4999 = scalar_lea.sflag [#allocation4], %s4998
        %s5000 = sand.u32 %s177, 1
        %s5001 = smul.addr %s5000, 24
        %s5002 = scalar_lea.vmem [#allocation13], %s5001
        // Predicated region
        $region69: #{tpu_custom_call.1} parent=43 // pred_check
          %p5003 = pneg %p187
        $region70: #{tpu_custom_call.1} parent=43 // pred_check_branch
          %5005 = sbr.rel (%p5003) target = $region72
        $region71: #{tpu_custom_call.1} parent=43 // pred_region
          %s5007 = ssub.s32 384, 384
          %5008 = vsyncadd %s4999, %s5007
          %s5009 = smul.addr %s28, 3
          %s5010 = smul.addr %s5009, 128
          %s5011 = scalar_lea.hbm %s6, %s5010
          %s5013 = sshll.u32 %s5002, 4
          %s5014 = int_to_ptr.vmem [resolvable:$true] %s5013
          %5016 = dma.vmem_to_hbm [thread:$0]  %s5014, 384, %s5011, %s4999
        $region72: #{tpu_custom_call.1} parent=43 // pred_fallthru
          _
      $region44: #{tpu_custom_call.1} parent=5 // pred_fallthru
        _
      %p5017 = scmp.le.s32.totalorder 2, %s23
      // Predicated region
      $region73: #{tpu_custom_call.1} parent=5 // pred_check
        %p5018 = pneg %p5017
      $region74: #{tpu_custom_call.1} parent=5 // pred_check_branch
        %5020 = sbr.rel (%p5018) target = $region76
      $region75: #{tpu_custom_call.1} parent=5 // pred_region
        %s5021 = ssub.s32 %s23, 2
        // Predicated region
        $region77: #{tpu_custom_call.1} parent=75 // pred_check
          %p5022 = pneg %p193
        $region78: #{tpu_custom_call.1} parent=75 // pred_check_branch
          %5024 = sbr.rel (%p5022) target = $region80
        $region79: #{tpu_custom_call.1} parent=75 // pred_region
          %s5025 = sand.u32 %s178, 1
          %s5026 = scalar_lea.sflag [#allocation4], %s5025
          %s5027 = sand.u32 %s178, 1
          %s5028 = smul.addr %s5027, 24
          %s5029 = scalar_lea.vmem [#allocation13], %s5028
          %5030 = dma.done %s5026, 384
        $region80: #{tpu_custom_call.1} parent=75 // pred_fallthru
          _
      $region76: #{tpu_custom_call.1} parent=5 // pred_fallthru
        _
    $region6: #{tpu_custom_call.1} parent=1 // loop_footer
      %s27 = sadd.s32 1, %s23
    $region7: #{tpu_custom_call.1} parent=1 // loop_footer_branch
      %22 = sbr.rel target = $region3
    $region8: #{tpu_custom_call.1} parent=1 // loop_exit
      _
    %5031 = vsyncpa [#allocation3], 1
    %s5032 = scalar_lea.sflag [#allocation3], 1
    %5033 = vsyncpa %s5032, 1
    %5034 = vsyncpa [#allocation6], 1
    %s5035 = scalar_lea.sflag [#allocation6], 1
    %5036 = vsyncpa %s5035, 1
    %5037 = vsyncpa [#allocation9], 1
    %5038 = vsyncpa [#allocation12], 1
    %5039 = vsyncpa [#allocation4], 1
    %s5040 = scalar_lea.sflag [#allocation4], 1
    %5041 = vsyncpa %s5040, 1

</llo_original>
